<compile_context>
chip_gen: v7x
topology: tpu7x:2x2x1
jax: 0.10.0
libtpu: 0.0.40
codegen_flags: <defaults>
</compile_context>

<pallas_src>
import jax
import jax.numpy as jnp
from jax import lax
from jax.experimental import pallas as pl
from jax.experimental.pallas import tpu as pltpu


H = W = 16                 # input spatial size
HP, WP = H // 2, W // 2    # pooled spatial size (8, 8)
C1, C2 = 16, 32            # conv channel counts
NCLS = 2
KH = KW = 3

B = 16                     # samples per grid step
LANES = B * WP             # 128 lanes = (sample, pooled column)
ROWS2 = HP * LANES         # 1024 conv2 output pixels per step, cols = (i, b, wp)
K2 = KH * KW * C1          # 144 im2col contraction size


def fused_forward_kernel(e0_ref, o0_ref, e1_ref, o1_ref,
                         w1_ref, b1_ref, w2_ref, b2_ref,
                         ssel_ref, wfc_ref, bfc_ref, o_ref):
    """Whole forward pass for B samples, everything VMEM/vreg resident.

    e0/o0/e1/o1_ref : (H+2, LANES) padded-input column-parity views,
                      lane = b*WP + pooled_col
    w1_ref          : (KH, KW, C1, LANES) conv1 weights pre-broadcast over lanes
    b1_ref          : (C1, LANES)
    w2_ref          : (C2, K2)   conv2 weights, cols ordered (kh, kw, c1)
    b2_ref          : (C2, 1)
    ssel_ref        : (ROWS2, B) constant 1/64 per-sample selection matrix
    wfc_ref         : (NCLS, C2)
    bfc_ref         : (NCLS, B)
    o_ref           : (NCLS, B)  logits (transposed; wrapper untransposes)
    """
    f32 = jnp.float32

    # -------- hoisted constants --------------------------------------------
    w1 = [[w1_ref[kh, kw] for kw in range(KW)] for kh in range(KH)]   # (C1,LANES)
    b1 = b1_ref[...]                                                  # (C1,LANES)
    lane = lax.broadcasted_iota(jnp.int32, (C1, LANES), 1)
    jmod = lane & (WP - 1)                       # pooled column within sample
    zcol = jnp.zeros((C1, 1), f32)
    zblk = jnp.zeros((C1, LANES), f32)

    # -------- conv1 (3x3,pad=1) + ReLU, one output row at a time -----------
    # Even/odd output columns come from the parity-split views; channels sit
    # in sublanes so the pooled rows are already in conv2's preferred layout.
    def conv1_row(h):
        acc_e = jnp.zeros((C1, LANES), f32)
        acc_o = jnp.zeros((C1, LANES), f32)
        for kh in range(KH):
            r = h + kh
            e0 = e0_ref[r:r + 1, :]              # (1, LANES), broadcasts over C1
            o0 = o0_ref[r:r + 1, :]
            e1 = e1_ref[r:r + 1, :]
            o1 = o1_ref[r:r + 1, :]
            wa, wb, wc = w1[kh]                  # (C1, LANES) each
            acc_e = acc_e + e0 * wa + o0 * wb + e1 * wc
            acc_o = acc_o + o0 * wa + e1 * wb + o1 * wc
        ye = jnp.maximum(acc_e + b1, 0.0)
        yo = jnp.maximum(acc_o + b1, 0.0)
        return jnp.maximum(ye, yo)               # W-direction maxpool

    # -------- MaxPool2d(2): H-direction pairs ------------------------------
    pooled = []
    for i in range(HP):
        pooled.append(jnp.maximum(conv1_row(2 * i), conv1_row(2 * i + 1)))
        # pooled[i] : (C1, LANES), lane = b*WP + pooled_col

    # -------- j-shifted copies for conv2 im2col (lane shift + const mask) ---
    p_l, p_r = [], []
    for i in range(HP):
        base = pooled[i]
        shl = jnp.concatenate([zcol, base[:, :LANES - 1]], axis=1)   # col j-1
        shr = jnp.concatenate([base[:, 1:], zcol], axis=1)           # col j+1
        p_l.append(jnp.where(jmod != 0, shl, 0.0))
        p_r.append(jnp.where(jmod != WP - 1, shr, 0.0))
    variants = (p_l, pooled, p_r)                # indexed by kw

    # -------- conv2 (3x3,pad=1) + ReLU as ONE (C2,144)x(144,1024) matmul ----
    col_blocks = []
    for i_out in range(HP):
        rows = []
        for kh in range(KH):
            ii = i_out + kh - 1
            for kw in range(KW):
                rows.append(variants[kw][ii] if 0 <= ii < HP else zblk)
        col_blocks.append(jnp.concatenate(rows, axis=0))             # (K2, LANES)
    big = jnp.concatenate(col_blocks, axis=1)                        # (K2, ROWS2)

    y2 = jnp.dot(w2_ref[...], big, preferred_element_type=f32)       # (C2, ROWS2)
    y2 = jnp.maximum(y2 + b2_ref[...], 0.0)

    # -------- AdaptiveAvgPool2d(1): one matmul with a 1/64 selection matrix -
    pooled2 = jnp.dot(y2, ssel_ref[...], preferred_element_type=f32)  # (C2, B)

    # -------- Linear(32, 2) --------------------------------------------------
    logits = jnp.dot(wfc_ref[...], pooled2,
                     preferred_element_type=f32) + bfc_ref[...]       # (NCLS, B)
    o_ref[...] = logits


def forward(x_nchw, params):
    """x_nchw: (N, 1, H, W) float32, exactly like the PyTorch module."""
    w1, b1, w2, b2, wfc, bfc = params            # conv weights in HWIO layout
    N = x_nchw.shape[0]
    nblk = pl.cdiv(N, B)
    npad = nblk * B

    # Tiny XLA-side prep: pad, split by column parity, pack (b, col) into lanes.
    x = x_nchw[:, 0]                                          # (N, H, W)
    if npad != N:
        x = jnp.pad(x, ((0, npad - N), (0, 0), (0, 0)))
    xpad = jnp.pad(x, ((0, 0), (1, 1), (1, 1)))               # (npad, H+2, W+2)
    xe = xpad[:, :, 0::2]                                     # (npad, H+2, WP+1)
    xo = xpad[:, :, 1::2]

    def mkview(v):                                            # -> (nblk, H+2, LANES)
        return v.reshape(nblk, B, H + 2, WP).transpose(0, 2, 1, 3).reshape(
            nblk, H + 2, LANES)

    e0 = mkview(xe[:, :, 0:WP])
    e1 = mkview(xe[:, :, 1:WP + 1])
    o0 = mkview(xo[:, :, 0:WP])
    o1 = mkview(xo[:, :, 1:WP + 1])

    # Kernel-friendly, lane-dense parameter layouts (all tiny, VMEM-resident).
    w1b = jnp.broadcast_to(w1[:, :, 0, :, None], (KH, KW, C1, LANES))
    b1b = jnp.broadcast_to(b1[:, None], (C1, LANES))
    w2p = jnp.transpose(w2, (3, 0, 1, 2)).reshape(C2, K2)     # cols = (kh,kw,c1)
    b2c = b2.reshape(C2, 1)
    cols = jnp.arange(ROWS2)
    ssel = ((cols[:, None] // WP) % B == jnp.arange(B)[None, :]).astype(
        jnp.float32) / float(HP * WP)                         # (ROWS2, B)
    wfct = wfc.T                                              # (NCLS, C2)
    bfcb = jnp.broadcast_to(bfc[:, None], (NCLS, B))

    out = pl.pallas_call(
        fused_forward_kernel,
        out_shape=jax.ShapeDtypeStruct((nblk, NCLS, B), jnp.float32),
        grid=(nblk,),
        in_specs=[
            pl.BlockSpec((None, H + 2, LANES), lambda i: (i, 0, 0)),
            pl.BlockSpec((None, H + 2, LANES), lambda i: (i, 0, 0)),
            pl.BlockSpec((None, H + 2, LANES), lambda i: (i, 0, 0)),
            pl.BlockSpec((None, H + 2, LANES), lambda i: (i, 0, 0)),
            pl.BlockSpec((KH, KW, C1, LANES), lambda i: (0, 0, 0, 0)),
            pl.BlockSpec((C1, LANES), lambda i: (0, 0)),
            pl.BlockSpec((C2, K2), lambda i: (0, 0)),
            pl.BlockSpec((C2, 1), lambda i: (0, 0)),
            pl.BlockSpec((ROWS2, B), lambda i: (0, 0)),
            pl.BlockSpec((NCLS, C2), lambda i: (0, 0)),
            pl.BlockSpec((NCLS, B), lambda i: (0, 0)),
        ],
        out_specs=pl.BlockSpec((None, NCLS, B), lambda i: (i, 0, 0)),
        compiler_params=pltpu.CompilerParams(
            dimension_semantics=("parallel",)),
    )(e0, o0, e1, o1, w1b, b1b, w2p, b2c, ssel, wfct, bfcb)

    # (nblk, NCLS, B) -> (N, NCLS)
    return jnp.transpose(out, (0, 2, 1)).reshape(npad, NCLS)[:N]


def ref_forward(x_nchw, params):
    """Pure-JAX reference (matches PyTorch semantics) for validation."""
    w1, b1, w2, b2, wfc, bfc = params
    dn = ('NHWC', 'HWIO', 'NHWC')
    x = jnp.transpose(x_nchw, (0, 2, 3, 1))
    y = lax.conv_general_dilated(x, w1, (1, 1), 'SAME', dimension_numbers=dn) + b1
    y = jnp.maximum(y, 0.0)
    y = lax.reduce_window(y, -jnp.inf, lax.max, (1, 2, 2, 1), (1, 2, 2, 1), 'VALID')
    y = lax.conv_general_dilated(y, w2, (1, 1), 'SAME', dimension_numbers=dn) + b2
    y = jnp.maximum(y, 0.0)
    y = jnp.mean(y, axis=(1, 2))
    return y @ wfc + bfc


if __name__ == "__main__":
    key = jax.random.PRNGKey(0)
    ks = jax.random.split(key, 7)
    N = 2

    x = jax.random.normal(ks[0], (N, 1, H, W), jnp.float32)   # NCHW like PyTorch

    # Deterministic synthetic parameters (HWIO conv weights, (in,out) FC weight).
    w1 = jax.random.normal(ks[1], (3, 3, 1, C1), jnp.float32) * 0.1
    b1 = jax.random.normal(ks[2], (C1,), jnp.float32) * 0.01
    w2 = jax.random.normal(ks[3], (3, 3, C1, C2), jnp.float32) * 0.1
    b2 = jax.random.normal(ks[4], (C2,), jnp.float32) * 0.01
    wfc = jax.random.normal(ks[5], (C2, NCLS), jnp.float32) * 0.1
    bfc = jax.random.normal(ks[6], (NCLS,), jnp.float32) * 0.01
    params = (w1, b1, w2, b2, wfc, bfc)

    fwd = jax.jit(forward)
    out = jax.block_until_ready(fwd(x, params))
    ref = jax.block_until_ready(ref_forward(x, params))

    assert out.shape == (N, NCLS), out.shape
    assert jnp.allclose(out, ref, atol=1e-3, rtol=1e-3), (out, ref)
    print("KERNEL_OK")
</pallas_src>

<mosaic_0001>
module attributes {stable_mosaic.version = 11 : i64} {
  func.func @fused_forward_kernel(%arg0: i32, %arg1: memref<1x18x128xf32, #tpu.memory_space<vmem>>, %arg2: memref<1x18x128xf32, #tpu.memory_space<vmem>>, %arg3: memref<1x18x128xf32, #tpu.memory_space<vmem>>, %arg4: memref<1x18x128xf32, #tpu.memory_space<vmem>>, %arg5: memref<3x3x16x128xf32, #tpu.memory_space<vmem>>, %arg6: memref<16x128xf32, #tpu.memory_space<vmem>>, %arg7: memref<32x144xf32, #tpu.memory_space<vmem>>, %arg8: memref<32x1xf32, #tpu.memory_space<vmem>>, %arg9: memref<1024x16xf32, #tpu.memory_space<vmem>>, %arg10: memref<2x32xf32, #tpu.memory_space<vmem>>, %arg11: memref<2x16xf32, #tpu.memory_space<vmem>>, %arg12: memref<1x2x16xf32, #tpu.memory_space<vmem>>) attributes {dimension_semantics = [#tpu.dimension_semantics<parallel>], iteration_bounds = array<i64: 1>, scalar_prefetch = 0 : i64, scratch_operands = 0 : i64, tpu.core_type = #tpu.core_type<tc>, window_params = [{transform_indices = @transform_0, window_bounds = array<i64: 1, 18, 128>}, {transform_indices = @transform_1, window_bounds = array<i64: 1, 18, 128>}, {transform_indices = @transform_2, window_bounds = array<i64: 1, 18, 128>}, {transform_indices = @transform_3, window_bounds = array<i64: 1, 18, 128>}, {pipeline_mode = #tpu.pipeline_mode<synchronous>, transform_indices = @transform_4, window_bounds = array<i64: 3, 3, 16, 128>}, {pipeline_mode = #tpu.pipeline_mode<synchronous>, transform_indices = @transform_5, window_bounds = array<i64: 16, 128>}, {pipeline_mode = #tpu.pipeline_mode<synchronous>, transform_indices = @transform_6, window_bounds = array<i64: 32, 144>}, {pipeline_mode = #tpu.pipeline_mode<synchronous>, transform_indices = @transform_7, window_bounds = array<i64: 32, 1>}, {pipeline_mode = #tpu.pipeline_mode<synchronous>, transform_indices = @transform_8, window_bounds = array<i64: 1024, 16>}, {pipeline_mode = #tpu.pipeline_mode<synchronous>, transform_indices = @transform_9, window_bounds = array<i64: 2, 32>}, {pipeline_mode = #tpu.pipeline_mode<synchronous>, transform_indices = @transform_10, window_bounds = array<i64: 2, 16>}, {transform_indices = @transform_11, window_bounds = array<i64: 1, 2, 16>}]} {
    %c0 = arith.constant 0 : index
    %c0_0 = arith.constant 0 : index
    %c0_1 = arith.constant 0 : index
    %c0_2 = arith.constant 0 : index
    %0 = vector.load %arg5[%c0, %c0_0, %c0_1, %c0_2] : memref<3x3x16x128xf32, #tpu.memory_space<vmem>>, vector<1x1x16x128xf32>
    %1 = vector.shape_cast %0 : vector<1x1x16x128xf32> to vector<16x128xf32>
    %c0_3 = arith.constant 0 : index
    %c1 = arith.constant 1 : index
    %c0_4 = arith.constant 0 : index
    %c0_5 = arith.constant 0 : index
    %2 = vector.load %arg5[%c0_3, %c1, %c0_4, %c0_5] : memref<3x3x16x128xf32, #tpu.memory_space<vmem>>, vector<1x1x16x128xf32>
    %3 = vector.shape_cast %2 : vector<1x1x16x128xf32> to vector<16x128xf32>
    %c0_6 = arith.constant 0 : index
    %c2 = arith.constant 2 : index
    %c0_7 = arith.constant 0 : index
    %c0_8 = arith.constant 0 : index
    %4 = vector.load %arg5[%c0_6, %c2, %c0_7, %c0_8] : memref<3x3x16x128xf32, #tpu.memory_space<vmem>>, vector<1x1x16x128xf32>
    %5 = vector.shape_cast %4 : vector<1x1x16x128xf32> to vector<16x128xf32>
    %c1_9 = arith.constant 1 : index
    %c0_10 = arith.constant 0 : index
    %c0_11 = arith.constant 0 : index
    %c0_12 = arith.constant 0 : index
    %6 = vector.load %arg5[%c1_9, %c0_10, %c0_11, %c0_12] : memref<3x3x16x128xf32, #tpu.memory_space<vmem>>, vector<1x1x16x128xf32>
    %7 = vector.shape_cast %6 : vector<1x1x16x128xf32> to vector<16x128xf32>
    %c1_13 = arith.constant 1 : index
    %c1_14 = arith.constant 1 : index
    %c0_15 = arith.constant 0 : index
    %c0_16 = arith.constant 0 : index
    %8 = vector.load %arg5[%c1_13, %c1_14, %c0_15, %c0_16] : memref<3x3x16x128xf32, #tpu.memory_space<vmem>>, vector<1x1x16x128xf32>
    %9 = vector.shape_cast %8 : vector<1x1x16x128xf32> to vector<16x128xf32>
    %c1_17 = arith.constant 1 : index
    %c2_18 = arith.constant 2 : index
    %c0_19 = arith.constant 0 : index
    %c0_20 = arith.constant 0 : index
    %10 = vector.load %arg5[%c1_17, %c2_18, %c0_19, %c0_20] : memref<3x3x16x128xf32, #tpu.memory_space<vmem>>, vector<1x1x16x128xf32>
    %11 = vector.shape_cast %10 : vector<1x1x16x128xf32> to vector<16x128xf32>
    %c2_21 = arith.constant 2 : index
    %c0_22 = arith.constant 0 : index
    %c0_23 = arith.constant 0 : index
    %c0_24 = arith.constant 0 : index
    %12 = vector.load %arg5[%c2_21, %c0_22, %c0_23, %c0_24] : memref<3x3x16x128xf32, #tpu.memory_space<vmem>>, vector<1x1x16x128xf32>
    %13 = vector.shape_cast %12 : vector<1x1x16x128xf32> to vector<16x128xf32>
    %c2_25 = arith.constant 2 : index
    %c1_26 = arith.constant 1 : index
    %c0_27 = arith.constant 0 : index
    %c0_28 = arith.constant 0 : index
    %14 = vector.load %arg5[%c2_25, %c1_26, %c0_27, %c0_28] : memref<3x3x16x128xf32, #tpu.memory_space<vmem>>, vector<1x1x16x128xf32>
    %15 = vector.shape_cast %14 : vector<1x1x16x128xf32> to vector<16x128xf32>
    %c2_29 = arith.constant 2 : index
    %c2_30 = arith.constant 2 : index
    %c0_31 = arith.constant 0 : index
    %c0_32 = arith.constant 0 : index
    %16 = vector.load %arg5[%c2_29, %c2_30, %c0_31, %c0_32] : memref<3x3x16x128xf32, #tpu.memory_space<vmem>>, vector<1x1x16x128xf32>
    %17 = vector.shape_cast %16 : vector<1x1x16x128xf32> to vector<16x128xf32>
    %c0_33 = arith.constant 0 : index
    %c0_34 = arith.constant 0 : index
    %18 = vector.load %arg6[%c0_33, %c0_34] : memref<16x128xf32, #tpu.memory_space<vmem>>, vector<16x128xf32>
    %19 = tpu.iota {dimensions = array<i32: 1>} : vector<16x128xi32>
    %c7_i32 = arith.constant 7 : i32
    %20 = vector.broadcast %c7_i32 : i32 to vector<16x128xi32>
    %21 = arith.andi %19, %20 : vector<16x128xi32>
    %cst = arith.constant 0.000000e+00 : f32
    %22 = vector.broadcast %cst : f32 to vector<16x1xf32>
    %cst_35 = arith.constant 0.000000e+00 : f32
    %23 = vector.broadcast %cst_35 : f32 to vector<16x128xf32>
    %cst_36 = arith.constant 0.000000e+00 : f32
    %24 = vector.broadcast %cst_36 : f32 to vector<16x128xf32>
    %cst_37 = arith.constant 0.000000e+00 : f32
    %25 = vector.broadcast %cst_37 : f32 to vector<16x128xf32>
    %c0_38 = arith.constant 0 : index
    %c0_39 = arith.constant 0 : index
    %c0_40 = arith.constant 0 : index
    %26 = vector.load %arg1[%c0_38, %c0_39, %c0_40] : memref<1x18x128xf32, #tpu.memory_space<vmem>>, vector<1x1x128xf32>
    %27 = vector.shape_cast %26 : vector<1x1x128xf32> to vector<1x128xf32>
    %c0_41 = arith.constant 0 : index
    %c0_42 = arith.constant 0 : index
    %c0_43 = arith.constant 0 : index
    %28 = vector.load %arg2[%c0_41, %c0_42, %c0_43] : memref<1x18x128xf32, #tpu.memory_space<vmem>>, vector<1x1x128xf32>
    %29 = vector.shape_cast %28 : vector<1x1x128xf32> to vector<1x128xf32>
    %c0_44 = arith.constant 0 : index
    %c0_45 = arith.constant 0 : index
    %c0_46 = arith.constant 0 : index
    %30 = vector.load %arg3[%c0_44, %c0_45, %c0_46] : memref<1x18x128xf32, #tpu.memory_space<vmem>>, vector<1x1x128xf32>
    %31 = vector.shape_cast %30 : vector<1x1x128xf32> to vector<1x128xf32>
    %c0_47 = arith.constant 0 : index
    %c0_48 = arith.constant 0 : index
    %c0_49 = arith.constant 0 : index
    %32 = vector.load %arg4[%c0_47, %c0_48, %c0_49] : memref<1x18x128xf32, #tpu.memory_space<vmem>>, vector<1x1x128xf32>
    %33 = vector.shape_cast %32 : vector<1x1x128xf32> to vector<1x128xf32>
    %34 = vector.broadcast %27 : vector<1x128xf32> to vector<16x128xf32>
    %35 = arith.mulf %34, %1 : vector<16x128xf32>
    %36 = arith.addf %24, %35 : vector<16x128xf32>
    %37 = vector.broadcast %29 : vector<1x128xf32> to vector<16x128xf32>
    %38 = arith.mulf %37, %3 : vector<16x128xf32>
    %39 = arith.addf %36, %38 : vector<16x128xf32>
    %40 = vector.broadcast %31 : vector<1x128xf32> to vector<16x128xf32>
    %41 = arith.mulf %40, %5 : vector<16x128xf32>
    %42 = arith.addf %39, %41 : vector<16x128xf32>
    %43 = vector.broadcast %29 : vector<1x128xf32> to vector<16x128xf32>
    %44 = arith.mulf %43, %1 : vector<16x128xf32>
    %45 = arith.addf %25, %44 : vector<16x128xf32>
    %46 = vector.broadcast %31 : vector<1x128xf32> to vector<16x128xf32>
    %47 = arith.mulf %46, %3 : vector<16x128xf32>
    %48 = arith.addf %45, %47 : vector<16x128xf32>
    %49 = vector.broadcast %33 : vector<1x128xf32> to vector<16x128xf32>
    %50 = arith.mulf %49, %5 : vector<16x128xf32>
    %51 = arith.addf %48, %50 : vector<16x128xf32>
    %c0_50 = arith.constant 0 : index
    %c1_51 = arith.constant 1 : index
    %c0_52 = arith.constant 0 : index
    %52 = vector.load %arg1[%c0_50, %c1_51, %c0_52] : memref<1x18x128xf32, #tpu.memory_space<vmem>>, vector<1x1x128xf32>
    %53 = vector.shape_cast %52 : vector<1x1x128xf32> to vector<1x128xf32>
    %c0_53 = arith.constant 0 : index
    %c1_54 = arith.constant 1 : index
    %c0_55 = arith.constant 0 : index
    %54 = vector.load %arg2[%c0_53, %c1_54, %c0_55] : memref<1x18x128xf32, #tpu.memory_space<vmem>>, vector<1x1x128xf32>
    %55 = vector.shape_cast %54 : vector<1x1x128xf32> to vector<1x128xf32>
    %c0_56 = arith.constant 0 : index
    %c1_57 = arith.constant 1 : index
    %c0_58 = arith.constant 0 : index
    %56 = vector.load %arg3[%c0_56, %c1_57, %c0_58] : memref<1x18x128xf32, #tpu.memory_space<vmem>>, vector<1x1x128xf32>
    %57 = vector.shape_cast %56 : vector<1x1x128xf32> to vector<1x128xf32>
    %c0_59 = arith.constant 0 : index
    %c1_60 = arith.constant 1 : index
    %c0_61 = arith.constant 0 : index
    %58 = vector.load %arg4[%c0_59, %c1_60, %c0_61] : memref<1x18x128xf32, #tpu.memory_space<vmem>>, vector<1x1x128xf32>
    %59 = vector.shape_cast %58 : vector<1x1x128xf32> to vector<1x128xf32>
    %60 = vector.broadcast %53 : vector<1x128xf32> to vector<16x128xf32>
    %61 = arith.mulf %60, %7 : vector<16x128xf32>
    %62 = arith.addf %42, %61 : vector<16x128xf32>
    %63 = vector.broadcast %55 : vector<1x128xf32> to vector<16x128xf32>
    %64 = arith.mulf %63, %9 : vector<16x128xf32>
    %65 = arith.addf %62, %64 : vector<16x128xf32>
    %66 = vector.broadcast %57 : vector<1x128xf32> to vector<16x128xf32>
    %67 = arith.mulf %66, %11 : vector<16x128xf32>
    %68 = arith.addf %65, %67 : vector<16x128xf32>
    %69 = vector.broadcast %55 : vector<1x128xf32> to vector<16x128xf32>
    %70 = arith.mulf %69, %7 : vector<16x128xf32>
    %71 = arith.addf %51, %70 : vector<16x128xf32>
    %72 = vector.broadcast %57 : vector<1x128xf32> to vector<16x128xf32>
    %73 = arith.mulf %72, %9 : vector<16x128xf32>
    %74 = arith.addf %71, %73 : vector<16x128xf32>
    %75 = vector.broadcast %59 : vector<1x128xf32> to vector<16x128xf32>
    %76 = arith.mulf %75, %11 : vector<16x128xf32>
    %77 = arith.addf %74, %76 : vector<16x128xf32>
    %c0_62 = arith.constant 0 : index
    %c2_63 = arith.constant 2 : index
    %c0_64 = arith.constant 0 : index
    %78 = vector.load %arg1[%c0_62, %c2_63, %c0_64] : memref<1x18x128xf32, #tpu.memory_space<vmem>>, vector<1x1x128xf32>
    %79 = vector.shape_cast %78 : vector<1x1x128xf32> to vector<1x128xf32>
    %c0_65 = arith.constant 0 : index
    %c2_66 = arith.constant 2 : index
    %c0_67 = arith.constant 0 : index
    %80 = vector.load %arg2[%c0_65, %c2_66, %c0_67] : memref<1x18x128xf32, #tpu.memory_space<vmem>>, vector<1x1x128xf32>
    %81 = vector.shape_cast %80 : vector<1x1x128xf32> to vector<1x128xf32>
    %c0_68 = arith.constant 0 : index
    %c2_69 = arith.constant 2 : index
    %c0_70 = arith.constant 0 : index
    %82 = vector.load %arg3[%c0_68, %c2_69, %c0_70] : memref<1x18x128xf32, #tpu.memory_space<vmem>>, vector<1x1x128xf32>
    %83 = vector.shape_cast %82 : vector<1x1x128xf32> to vector<1x128xf32>
    %c0_71 = arith.constant 0 : index
    %c2_72 = arith.constant 2 : index
    %c0_73 = arith.constant 0 : index
    %84 = vector.load %arg4[%c0_71, %c2_72, %c0_73] : memref<1x18x128xf32, #tpu.memory_space<vmem>>, vector<1x1x128xf32>
    %85 = vector.shape_cast %84 : vector<1x1x128xf32> to vector<1x128xf32>
    %86 = vector.broadcast %79 : vector<1x128xf32> to vector<16x128xf32>
    %87 = arith.mulf %86, %13 : vector<16x128xf32>
    %88 = arith.addf %68, %87 : vector<16x128xf32>
    %89 = vector.broadcast %81 : vector<1x128xf32> to vector<16x128xf32>
    %90 = arith.mulf %89, %15 : vector<16x128xf32>
    %91 = arith.addf %88, %90 : vector<16x128xf32>
    %92 = vector.broadcast %83 : vector<1x128xf32> to vector<16x128xf32>
    %93 = arith.mulf %92, %17 : vector<16x128xf32>
    %94 = arith.addf %91, %93 : vector<16x128xf32>
    %95 = vector.broadcast %81 : vector<1x128xf32> to vector<16x128xf32>
    %96 = arith.mulf %95, %13 : vector<16x128xf32>
    %97 = arith.addf %77, %96 : vector<16x128xf32>
    %98 = vector.broadcast %83 : vector<1x128xf32> to vector<16x128xf32>
    %99 = arith.mulf %98, %15 : vector<16x128xf32>
    %100 = arith.addf %97, %99 : vector<16x128xf32>
    %101 = vector.broadcast %85 : vector<1x128xf32> to vector<16x128xf32>
    %102 = arith.mulf %101, %17 : vector<16x128xf32>
    %103 = arith.addf %100, %102 : vector<16x128xf32>
    %104 = arith.addf %94, %18 : vector<16x128xf32>
    %cst_74 = arith.constant 0.000000e+00 : f32
    %105 = vector.broadcast %cst_74 : f32 to vector<16x128xf32>
    %106 = arith.maximumf %104, %105 : vector<16x128xf32>
    %107 = arith.addf %103, %18 : vector<16x128xf32>
    %cst_75 = arith.constant 0.000000e+00 : f32
    %108 = vector.broadcast %cst_75 : f32 to vector<16x128xf32>
    %109 = arith.maximumf %107, %108 : vector<16x128xf32>
    %110 = arith.maximumf %106, %109 : vector<16x128xf32>
    %cst_76 = arith.constant 0.000000e+00 : f32
    %111 = vector.broadcast %cst_76 : f32 to vector<16x128xf32>
    %cst_77 = arith.constant 0.000000e+00 : f32
    %112 = vector.broadcast %cst_77 : f32 to vector<16x128xf32>
    %c0_78 = arith.constant 0 : index
    %c1_79 = arith.constant 1 : index
    %c0_80 = arith.constant 0 : index
    %113 = vector.load %arg1[%c0_78, %c1_79, %c0_80] : memref<1x18x128xf32, #tpu.memory_space<vmem>>, vector<1x1x128xf32>
    %114 = vector.shape_cast %113 : vector<1x1x128xf32> to vector<1x128xf32>
    %c0_81 = arith.constant 0 : index
    %c1_82 = arith.constant 1 : index
    %c0_83 = arith.constant 0 : index
    %115 = vector.load %arg2[%c0_81, %c1_82, %c0_83] : memref<1x18x128xf32, #tpu.memory_space<vmem>>, vector<1x1x128xf32>
    %116 = vector.shape_cast %115 : vector<1x1x128xf32> to vector<1x128xf32>
    %c0_84 = arith.constant 0 : index
    %c1_85 = arith.constant 1 : index
    %c0_86 = arith.constant 0 : index
    %117 = vector.load %arg3[%c0_84, %c1_85, %c0_86] : memref<1x18x128xf32, #tpu.memory_space<vmem>>, vector<1x1x128xf32>
    %118 = vector.shape_cast %117 : vector<1x1x128xf32> to vector<1x128xf32>
    %c0_87 = arith.constant 0 : index
    %c1_88 = arith.constant 1 : index
    %c0_89 = arith.constant 0 : index
    %119 = vector.load %arg4[%c0_87, %c1_88, %c0_89] : memref<1x18x128xf32, #tpu.memory_space<vmem>>, vector<1x1x128xf32>
    %120 = vector.shape_cast %119 : vector<1x1x128xf32> to vector<1x128xf32>
    %121 = vector.broadcast %114 : vector<1x128xf32> to vector<16x128xf32>
    %122 = arith.mulf %121, %1 : vector<16x128xf32>
    %123 = arith.addf %111, %122 : vector<16x128xf32>
    %124 = vector.broadcast %116 : vector<1x128xf32> to vector<16x128xf32>
    %125 = arith.mulf %124, %3 : vector<16x128xf32>
    %126 = arith.addf %123, %125 : vector<16x128xf32>
    %127 = vector.broadcast %118 : vector<1x128xf32> to vector<16x128xf32>
    %128 = arith.mulf %127, %5 : vector<16x128xf32>
    %129 = arith.addf %126, %128 : vector<16x128xf32>
    %130 = vector.broadcast %116 : vector<1x128xf32> to vector<16x128xf32>
    %131 = arith.mulf %130, %1 : vector<16x128xf32>
    %132 = arith.addf %112, %131 : vector<16x128xf32>
    %133 = vector.broadcast %118 : vector<1x128xf32> to vector<16x128xf32>
    %134 = arith.mulf %133, %3 : vector<16x128xf32>
    %135 = arith.addf %132, %134 : vector<16x128xf32>
    %136 = vector.broadcast %120 : vector<1x128xf32> to vector<16x128xf32>
    %137 = arith.mulf %136, %5 : vector<16x128xf32>
    %138 = arith.addf %135, %137 : vector<16x128xf32>
    %c0_90 = arith.constant 0 : index
    %c2_91 = arith.constant 2 : index
    %c0_92 = arith.constant 0 : index
    %139 = vector.load %arg1[%c0_90, %c2_91, %c0_92] : memref<1x18x128xf32, #tpu.memory_space<vmem>>, vector<1x1x128xf32>
    %140 = vector.shape_cast %139 : vector<1x1x128xf32> to vector<1x128xf32>
    %c0_93 = arith.constant 0 : index
    %c2_94 = arith.constant 2 : index
    %c0_95 = arith.constant 0 : index
    %141 = vector.load %arg2[%c0_93, %c2_94, %c0_95] : memref<1x18x128xf32, #tpu.memory_space<vmem>>, vector<1x1x128xf32>
    %142 = vector.shape_cast %141 : vector<1x1x128xf32> to vector<1x128xf32>
    %c0_96 = arith.constant 0 : index
    %c2_97 = arith.constant 2 : index
    %c0_98 = arith.constant 0 : index
    %143 = vector.load %arg3[%c0_96, %c2_97, %c0_98] : memref<1x18x128xf32, #tpu.memory_space<vmem>>, vector<1x1x128xf32>
    %144 = vector.shape_cast %143 : vector<1x1x128xf32> to vector<1x128xf32>
    %c0_99 = arith.constant 0 : index
    %c2_100 = arith.constant 2 : index
    %c0_101 = arith.constant 0 : index
    %145 = vector.load %arg4[%c0_99, %c2_100, %c0_101] : memref<1x18x128xf32, #tpu.memory_space<vmem>>, vector<1x1x128xf32>
    %146 = vector.shape_cast %145 : vector<1x1x128xf32> to vector<1x128xf32>
    %147 = vector.broadcast %140 : vector<1x128xf32> to vector<16x128xf32>
    %148 = arith.mulf %147, %7 : vector<16x128xf32>
    %149 = arith.addf %129, %148 : vector<16x128xf32>
    %150 = vector.broadcast %142 : vector<1x128xf32> to vector<16x128xf32>
    %151 = arith.mulf %150, %9 : vector<16x128xf32>
    %152 = arith.addf %149, %151 : vector<16x128xf32>
    %153 = vector.broadcast %144 : vector<1x128xf32> to vector<16x128xf32>
    %154 = arith.mulf %153, %11 : vector<16x128xf32>
    %155 = arith.addf %152, %154 : vector<16x128xf32>
    %156 = vector.broadcast %142 : vector<1x128xf32> to vector<16x128xf32>
    %157 = arith.mulf %156, %7 : vector<16x128xf32>
    %158 = arith.addf %138, %157 : vector<16x128xf32>
    %159 = vector.broadcast %144 : vector<1x128xf32> to vector<16x128xf32>
    %160 = arith.mulf %159, %9 : vector<16x128xf32>
    %161 = arith.addf %158, %160 : vector<16x128xf32>
    %162 = vector.broadcast %146 : vector<1x128xf32> to vector<16x128xf32>
    %163 = arith.mulf %162, %11 : vector<16x128xf32>
    %164 = arith.addf %161, %163 : vector<16x128xf32>
    %c0_102 = arith.constant 0 : index
    %c3 = arith.constant 3 : index
    %c0_103 = arith.constant 0 : index
    %165 = vector.load %arg1[%c0_102, %c3, %c0_103] : memref<1x18x128xf32, #tpu.memory_space<vmem>>, vector<1x1x128xf32>
    %166 = vector.shape_cast %165 : vector<1x1x128xf32> to vector<1x128xf32>
    %c0_104 = arith.constant 0 : index
    %c3_105 = arith.constant 3 : index
    %c0_106 = arith.constant 0 : index
    %167 = vector.load %arg2[%c0_104, %c3_105, %c0_106] : memref<1x18x128xf32, #tpu.memory_space<vmem>>, vector<1x1x128xf32>
    %168 = vector.shape_cast %167 : vector<1x1x128xf32> to vector<1x128xf32>
    %c0_107 = arith.constant 0 : index
    %c3_108 = arith.constant 3 : index
    %c0_109 = arith.constant 0 : index
    %169 = vector.load %arg3[%c0_107, %c3_108, %c0_109] : memref<1x18x128xf32, #tpu.memory_space<vmem>>, vector<1x1x128xf32>
    %170 = vector.shape_cast %169 : vector<1x1x128xf32> to vector<1x128xf32>
    %c0_110 = arith.constant 0 : index
    %c3_111 = arith.constant 3 : index
    %c0_112 = arith.constant 0 : index
    %171 = vector.load %arg4[%c0_110, %c3_111, %c0_112] : memref<1x18x128xf32, #tpu.memory_space<vmem>>, vector<1x1x128xf32>
    %172 = vector.shape_cast %171 : vector<1x1x128xf32> to vector<1x128xf32>
    %173 = vector.broadcast %166 : vector<1x128xf32> to vector<16x128xf32>
    %174 = arith.mulf %173, %13 : vector<16x128xf32>
    %175 = arith.addf %155, %174 : vector<16x128xf32>
    %176 = vector.broadcast %168 : vector<1x128xf32> to vector<16x128xf32>
    %177 = arith.mulf %176, %15 : vector<16x128xf32>
    %178 = arith.addf %175, %177 : vector<16x128xf32>
    %179 = vector.broadcast %170 : vector<1x128xf32> to vector<16x128xf32>
    %180 = arith.mulf %179, %17 : vector<16x128xf32>
    %181 = arith.addf %178, %180 : vector<16x128xf32>
    %182 = vector.broadcast %168 : vector<1x128xf32> to vector<16x128xf32>
    %183 = arith.mulf %182, %13 : vector<16x128xf32>
    %184 = arith.addf %164, %183 : vector<16x128xf32>
    %185 = vector.broadcast %170 : vector<1x128xf32> to vector<16x128xf32>
    %186 = arith.mulf %185, %15 : vector<16x128xf32>
    %187 = arith.addf %184, %186 : vector<16x128xf32>
    %188 = vector.broadcast %172 : vector<1x128xf32> to vector<16x128xf32>
    %189 = arith.mulf %188, %17 : vector<16x128xf32>
    %190 = arith.addf %187, %189 : vector<16x128xf32>
    %191 = arith.addf %181, %18 : vector<16x128xf32>
    %cst_113 = arith.constant 0.000000e+00 : f32
    %192 = vector.broadcast %cst_113 : f32 to vector<16x128xf32>
    %193 = arith.maximumf %191, %192 : vector<16x128xf32>
    %194 = arith.addf %190, %18 : vector<16x128xf32>
    %cst_114 = arith.constant 0.000000e+00 : f32
    %195 = vector.broadcast %cst_114 : f32 to vector<16x128xf32>
    %196 = arith.maximumf %194, %195 : vector<16x128xf32>
    %197 = arith.maximumf %193, %196 : vector<16x128xf32>
    %198 = arith.maximumf %110, %197 : vector<16x128xf32>
    %cst_115 = arith.constant 0.000000e+00 : f32
    %199 = vector.broadcast %cst_115 : f32 to vector<16x128xf32>
    %cst_116 = arith.constant 0.000000e+00 : f32
    %200 = vector.broadcast %cst_116 : f32 to vector<16x128xf32>
    %c0_117 = arith.constant 0 : index
    %c2_118 = arith.constant 2 : index
    %c0_119 = arith.constant 0 : index
    %201 = vector.load %arg1[%c0_117, %c2_118, %c0_119] : memref<1x18x128xf32, #tpu.memory_space<vmem>>, vector<1x1x128xf32>
    %202 = vector.shape_cast %201 : vector<1x1x128xf32> to vector<1x128xf32>
    %c0_120 = arith.constant 0 : index
    %c2_121 = arith.constant 2 : index
    %c0_122 = arith.constant 0 : index
    %203 = vector.load %arg2[%c0_120, %c2_121, %c0_122] : memref<1x18x128xf32, #tpu.memory_space<vmem>>, vector<1x1x128xf32>
    %204 = vector.shape_cast %203 : vector<1x1x128xf32> to vector<1x128xf32>
    %c0_123 = arith.constant 0 : index
    %c2_124 = arith.constant 2 : index
    %c0_125 = arith.constant 0 : index
    %205 = vector.load %arg3[%c0_123, %c2_124, %c0_125] : memref<1x18x128xf32, #tpu.memory_space<vmem>>, vector<1x1x128xf32>
    %206 = vector.shape_cast %205 : vector<1x1x128xf32> to vector<1x128xf32>
    %c0_126 = arith.constant 0 : index
    %c2_127 = arith.constant 2 : index
    %c0_128 = arith.constant 0 : index
    %207 = vector.load %arg4[%c0_126, %c2_127, %c0_128] : memref<1x18x128xf32, #tpu.memory_space<vmem>>, vector<1x1x128xf32>
    %208 = vector.shape_cast %207 : vector<1x1x128xf32> to vector<1x128xf32>
    %209 = vector.broadcast %202 : vector<1x128xf32> to vector<16x128xf32>
    %210 = arith.mulf %209, %1 : vector<16x128xf32>
    %211 = arith.addf %199, %210 : vector<16x128xf32>
    %212 = vector.broadcast %204 : vector<1x128xf32> to vector<16x128xf32>
    %213 = arith.mulf %212, %3 : vector<16x128xf32>
    %214 = arith.addf %211, %213 : vector<16x128xf32>
    %215 = vector.broadcast %206 : vector<1x128xf32> to vector<16x128xf32>
    %216 = arith.mulf %215, %5 : vector<16x128xf32>
    %217 = arith.addf %214, %216 : vector<16x128xf32>
    %218 = vector.broadcast %204 : vector<1x128xf32> to vector<16x128xf32>
    %219 = arith.mulf %218, %1 : vector<16x128xf32>
    %220 = arith.addf %200, %219 : vector<16x128xf32>
    %221 = vector.broadcast %206 : vector<1x128xf32> to vector<16x128xf32>
    %222 = arith.mulf %221, %3 : vector<16x128xf32>
    %223 = arith.addf %220, %222 : vector<16x128xf32>
    %224 = vector.broadcast %208 : vector<1x128xf32> to vector<16x128xf32>
    %225 = arith.mulf %224, %5 : vector<16x128xf32>
    %226 = arith.addf %223, %225 : vector<16x128xf32>
    %c0_129 = arith.constant 0 : index
    %c3_130 = arith.constant 3 : index
    %c0_131 = arith.constant 0 : index
    %227 = vector.load %arg1[%c0_129, %c3_130, %c0_131] : memref<1x18x128xf32, #tpu.memory_space<vmem>>, vector<1x1x128xf32>
    %228 = vector.shape_cast %227 : vector<1x1x128xf32> to vector<1x128xf32>
    %c0_132 = arith.constant 0 : index
    %c3_133 = arith.constant 3 : index
    %c0_134 = arith.constant 0 : index
    %229 = vector.load %arg2[%c0_132, %c3_133, %c0_134] : memref<1x18x128xf32, #tpu.memory_space<vmem>>, vector<1x1x128xf32>
    %230 = vector.shape_cast %229 : vector<1x1x128xf32> to vector<1x128xf32>
    %c0_135 = arith.constant 0 : index
    %c3_136 = arith.constant 3 : index
    %c0_137 = arith.constant 0 : index
    %231 = vector.load %arg3[%c0_135, %c3_136, %c0_137] : memref<1x18x128xf32, #tpu.memory_space<vmem>>, vector<1x1x128xf32>
    %232 = vector.shape_cast %231 : vector<1x1x128xf32> to vector<1x128xf32>
    %c0_138 = arith.constant 0 : index
    %c3_139 = arith.constant 3 : index
    %c0_140 = arith.constant 0 : index
    %233 = vector.load %arg4[%c0_138, %c3_139, %c0_140] : memref<1x18x128xf32, #tpu.memory_space<vmem>>, vector<1x1x128xf32>
    %234 = vector.shape_cast %233 : vector<1x1x128xf32> to vector<1x128xf32>
    %235 = vector.broadcast %228 : vector<1x128xf32> to vector<16x128xf32>
    %236 = arith.mulf %235, %7 : vector<16x128xf32>
    %237 = arith.addf %217, %236 : vector<16x128xf32>
    %238 = vector.broadcast %230 : vector<1x128xf32> to vector<16x128xf32>
    %239 = arith.mulf %238, %9 : vector<16x128xf32>
    %240 = arith.addf %237, %239 : vector<16x128xf32>
    %241 = vector.broadcast %232 : vector<1x128xf32> to vector<16x128xf32>
    %242 = arith.mulf %241, %11 : vector<16x128xf32>
    %243 = arith.addf %240, %242 : vector<16x128xf32>
    %244 = vector.broadcast %230 : vector<1x128xf32> to vector<16x128xf32>
    %245 = arith.mulf %244, %7 : vector<16x128xf32>
    %246 = arith.addf %226, %245 : vector<16x128xf32>
    %247 = vector.broadcast %232 : vector<1x128xf32> to vector<16x128xf32>
    %248 = arith.mulf %247, %9 : vector<16x128xf32>
    %249 = arith.addf %246, %248 : vector<16x128xf32>
    %250 = vector.broadcast %234 : vector<1x128xf32> to vector<16x128xf32>
    %251 = arith.mulf %250, %11 : vector<16x128xf32>
    %252 = arith.addf %249, %251 : vector<16x128xf32>
    %c0_141 = arith.constant 0 : index
    %c4 = arith.constant 4 : index
    %c0_142 = arith.constant 0 : index
    %253 = vector.load %arg1[%c0_141, %c4, %c0_142] : memref<1x18x128xf32, #tpu.memory_space<vmem>>, vector<1x1x128xf32>
    %254 = vector.shape_cast %253 : vector<1x1x128xf32> to vector<1x128xf32>
    %c0_143 = arith.constant 0 : index
    %c4_144 = arith.constant 4 : index
    %c0_145 = arith.constant 0 : index
    %255 = vector.load %arg2[%c0_143, %c4_144, %c0_145] : memref<1x18x128xf32, #tpu.memory_space<vmem>>, vector<1x1x128xf32>
    %256 = vector.shape_cast %255 : vector<1x1x128xf32> to vector<1x128xf32>
    %c0_146 = arith.constant 0 : index
    %c4_147 = arith.constant 4 : index
    %c0_148 = arith.constant 0 : index
    %257 = vector.load %arg3[%c0_146, %c4_147, %c0_148] : memref<1x18x128xf32, #tpu.memory_space<vmem>>, vector<1x1x128xf32>
    %258 = vector.shape_cast %257 : vector<1x1x128xf32> to vector<1x128xf32>
    %c0_149 = arith.constant 0 : index
    %c4_150 = arith.constant 4 : index
    %c0_151 = arith.constant 0 : index
    %259 = vector.load %arg4[%c0_149, %c4_150, %c0_151] : memref<1x18x128xf32, #tpu.memory_space<vmem>>, vector<1x1x128xf32>
    %260 = vector.shape_cast %259 : vector<1x1x128xf32> to vector<1x128xf32>
    %261 = vector.broadcast %254 : vector<1x128xf32> to vector<16x128xf32>
    %262 = arith.mulf %261, %13 : vector<16x128xf32>
    %263 = arith.addf %243, %262 : vector<16x128xf32>
    %264 = vector.broadcast %256 : vector<1x128xf32> to vector<16x128xf32>
    %265 = arith.mulf %264, %15 : vector<16x128xf32>
    %266 = arith.addf %263, %265 : vector<16x128xf32>
    %267 = vector.broadcast %258 : vector<1x128xf32> to vector<16x128xf32>
    %268 = arith.mulf %267, %17 : vector<16x128xf32>
    %269 = arith.addf %266, %268 : vector<16x128xf32>
    %270 = vector.broadcast %256 : vector<1x128xf32> to vector<16x128xf32>
    %271 = arith.mulf %270, %13 : vector<16x128xf32>
    %272 = arith.addf %252, %271 : vector<16x128xf32>
    %273 = vector.broadcast %258 : vector<1x128xf32> to vector<16x128xf32>
    %274 = arith.mulf %273, %15 : vector<16x128xf32>
    %275 = arith.addf %272, %274 : vector<16x128xf32>
    %276 = vector.broadcast %260 : vector<1x128xf32> to vector<16x128xf32>
    %277 = arith.mulf %276, %17 : vector<16x128xf32>
    %278 = arith.addf %275, %277 : vector<16x128xf32>
    %279 = arith.addf %269, %18 : vector<16x128xf32>
    %cst_152 = arith.constant 0.000000e+00 : f32
    %280 = vector.broadcast %cst_152 : f32 to vector<16x128xf32>
    %281 = arith.maximumf %279, %280 : vector<16x128xf32>
    %282 = arith.addf %278, %18 : vector<16x128xf32>
    %cst_153 = arith.constant 0.000000e+00 : f32
    %283 = vector.broadcast %cst_153 : f32 to vector<16x128xf32>
    %284 = arith.maximumf %282, %283 : vector<16x128xf32>
    %285 = arith.maximumf %281, %284 : vector<16x128xf32>
    %cst_154 = arith.constant 0.000000e+00 : f32
    %286 = vector.broadcast %cst_154 : f32 to vector<16x128xf32>
    %cst_155 = arith.constant 0.000000e+00 : f32
    %287 = vector.broadcast %cst_155 : f32 to vector<16x128xf32>
    %c0_156 = arith.constant 0 : index
    %c3_157 = arith.constant 3 : index
    %c0_158 = arith.constant 0 : index
    %288 = vector.load %arg1[%c0_156, %c3_157, %c0_158] : memref<1x18x128xf32, #tpu.memory_space<vmem>>, vector<1x1x128xf32>
    %289 = vector.shape_cast %288 : vector<1x1x128xf32> to vector<1x128xf32>
    %c0_159 = arith.constant 0 : index
    %c3_160 = arith.constant 3 : index
    %c0_161 = arith.constant 0 : index
    %290 = vector.load %arg2[%c0_159, %c3_160, %c0_161] : memref<1x18x128xf32, #tpu.memory_space<vmem>>, vector<1x1x128xf32>
    %291 = vector.shape_cast %290 : vector<1x1x128xf32> to vector<1x128xf32>
    %c0_162 = arith.constant 0 : index
    %c3_163 = arith.constant 3 : index
    %c0_164 = arith.constant 0 : index
    %292 = vector.load %arg3[%c0_162, %c3_163, %c0_164] : memref<1x18x128xf32, #tpu.memory_space<vmem>>, vector<1x1x128xf32>
    %293 = vector.shape_cast %292 : vector<1x1x128xf32> to vector<1x128xf32>
    %c0_165 = arith.constant 0 : index
    %c3_166 = arith.constant 3 : index
    %c0_167 = arith.constant 0 : index
    %294 = vector.load %arg4[%c0_165, %c3_166, %c0_167] : memref<1x18x128xf32, #tpu.memory_space<vmem>>, vector<1x1x128xf32>
    %295 = vector.shape_cast %294 : vector<1x1x128xf32> to vector<1x128xf32>
    %296 = vector.broadcast %289 : vector<1x128xf32> to vector<16x128xf32>
    %297 = arith.mulf %296, %1 : vector<16x128xf32>
    %298 = arith.addf %286, %297 : vector<16x128xf32>
    %299 = vector.broadcast %291 : vector<1x128xf32> to vector<16x128xf32>
    %300 = arith.mulf %299, %3 : vector<16x128xf32>
    %301 = arith.addf %298, %300 : vector<16x128xf32>
    %302 = vector.broadcast %293 : vector<1x128xf32> to vector<16x128xf32>
    %303 = arith.mulf %302, %5 : vector<16x128xf32>
    %304 = arith.addf %301, %303 : vector<16x128xf32>
    %305 = vector.broadcast %291 : vector<1x128xf32> to vector<16x128xf32>
    %306 = arith.mulf %305, %1 : vector<16x128xf32>
    %307 = arith.addf %287, %306 : vector<16x128xf32>
    %308 = vector.broadcast %293 : vector<1x128xf32> to vector<16x128xf32>
    %309 = arith.mulf %308, %3 : vector<16x128xf32>
    %310 = arith.addf %307, %309 : vector<16x128xf32>
    %311 = vector.broadcast %295 : vector<1x128xf32> to vector<16x128xf32>
    %312 = arith.mulf %311, %5 : vector<16x128xf32>
    %313 = arith.addf %310, %312 : vector<16x128xf32>
    %c0_168 = arith.constant 0 : index
    %c4_169 = arith.constant 4 : index
    %c0_170 = arith.constant 0 : index
    %314 = vector.load %arg1[%c0_168, %c4_169, %c0_170] : memref<1x18x128xf32, #tpu.memory_space<vmem>>, vector<1x1x128xf32>
    %315 = vector.shape_cast %314 : vector<1x1x128xf32> to vector<1x128xf32>
    %c0_171 = arith.constant 0 : index
    %c4_172 = arith.constant 4 : index
    %c0_173 = arith.constant 0 : index
    %316 = vector.load %arg2[%c0_171, %c4_172, %c0_173] : memref<1x18x128xf32, #tpu.memory_space<vmem>>, vector<1x1x128xf32>
    %317 = vector.shape_cast %316 : vector<1x1x128xf32> to vector<1x128xf32>
    %c0_174 = arith.constant 0 : index
    %c4_175 = arith.constant 4 : index
    %c0_176 = arith.constant 0 : index
    %318 = vector.load %arg3[%c0_174, %c4_175, %c0_176] : memref<1x18x128xf32, #tpu.memory_space<vmem>>, vector<1x1x128xf32>
    %319 = vector.shape_cast %318 : vector<1x1x128xf32> to vector<1x128xf32>
    %c0_177 = arith.constant 0 : index
    %c4_178 = arith.constant 4 : index
    %c0_179 = arith.constant 0 : index
    %320 = vector.load %arg4[%c0_177, %c4_178, %c0_179] : memref<1x18x128xf32, #tpu.memory_space<vmem>>, vector<1x1x128xf32>
    %321 = vector.shape_cast %320 : vector<1x1x128xf32> to vector<1x128xf32>
    %322 = vector.broadcast %315 : vector<1x128xf32> to vector<16x128xf32>
    %323 = arith.mulf %322, %7 : vector<16x128xf32>
    %324 = arith.addf %304, %323 : vector<16x128xf32>
    %325 = vector.broadcast %317 : vector<1x128xf32> to vector<16x128xf32>
    %326 = arith.mulf %325, %9 : vector<16x128xf32>
    %327 = arith.addf %324, %326 : vector<16x128xf32>
    %328 = vector.broadcast %319 : vector<1x128xf32> to vector<16x128xf32>
    %329 = arith.mulf %328, %11 : vector<16x128xf32>
    %330 = arith.addf %327, %329 : vector<16x128xf32>
    %331 = vector.broadcast %317 : vector<1x128xf32> to vector<16x128xf32>
    %332 = arith.mulf %331, %7 : vector<16x128xf32>
    %333 = arith.addf %313, %332 : vector<16x128xf32>
    %334 = vector.broadcast %319 : vector<1x128xf32> to vector<16x128xf32>
    %335 = arith.mulf %334, %9 : vector<16x128xf32>
    %336 = arith.addf %333, %335 : vector<16x128xf32>
    %337 = vector.broadcast %321 : vector<1x128xf32> to vector<16x128xf32>
    %338 = arith.mulf %337, %11 : vector<16x128xf32>
    %339 = arith.addf %336, %338 : vector<16x128xf32>
    %c0_180 = arith.constant 0 : index
    %c5 = arith.constant 5 : index
    %c0_181 = arith.constant 0 : index
    %340 = vector.load %arg1[%c0_180, %c5, %c0_181] : memref<1x18x128xf32, #tpu.memory_space<vmem>>, vector<1x1x128xf32>
    %341 = vector.shape_cast %340 : vector<1x1x128xf32> to vector<1x128xf32>
    %c0_182 = arith.constant 0 : index
    %c5_183 = arith.constant 5 : index
    %c0_184 = arith.constant 0 : index
    %342 = vector.load %arg2[%c0_182, %c5_183, %c0_184] : memref<1x18x128xf32, #tpu.memory_space<vmem>>, vector<1x1x128xf32>
    %343 = vector.shape_cast %342 : vector<1x1x128xf32> to vector<1x128xf32>
    %c0_185 = arith.constant 0 : index
    %c5_186 = arith.constant 5 : index
    %c0_187 = arith.constant 0 : index
    %344 = vector.load %arg3[%c0_185, %c5_186, %c0_187] : memref<1x18x128xf32, #tpu.memory_space<vmem>>, vector<1x1x128xf32>
    %345 = vector.shape_cast %344 : vector<1x1x128xf32> to vector<1x128xf32>
    %c0_188 = arith.constant 0 : index
    %c5_189 = arith.constant 5 : index
    %c0_190 = arith.constant 0 : index
    %346 = vector.load %arg4[%c0_188, %c5_189, %c0_190] : memref<1x18x128xf32, #tpu.memory_space<vmem>>, vector<1x1x128xf32>
    %347 = vector.shape_cast %346 : vector<1x1x128xf32> to vector<1x128xf32>
    %348 = vector.broadcast %341 : vector<1x128xf32> to vector<16x128xf32>
    %349 = arith.mulf %348, %13 : vector<16x128xf32>
    %350 = arith.addf %330, %349 : vector<16x128xf32>
    %351 = vector.broadcast %343 : vector<1x128xf32> to vector<16x128xf32>
    %352 = arith.mulf %351, %15 : vector<16x128xf32>
    %353 = arith.addf %350, %352 : vector<16x128xf32>
    %354 = vector.broadcast %345 : vector<1x128xf32> to vector<16x128xf32>
    %355 = arith.mulf %354, %17 : vector<16x128xf32>
    %356 = arith.addf %353, %355 : vector<16x128xf32>
    %357 = vector.broadcast %343 : vector<1x128xf32> to vector<16x128xf32>
    %358 = arith.mulf %357, %13 : vector<16x128xf32>
    %359 = arith.addf %339, %358 : vector<16x128xf32>
    %360 = vector.broadcast %345 : vector<1x128xf32> to vector<16x128xf32>
    %361 = arith.mulf %360, %15 : vector<16x128xf32>
    %362 = arith.addf %359, %361 : vector<16x128xf32>
    %363 = vector.broadcast %347 : vector<1x128xf32> to vector<16x128xf32>
    %364 = arith.mulf %363, %17 : vector<16x128xf32>
    %365 = arith.addf %362, %364 : vector<16x128xf32>
    %366 = arith.addf %356, %18 : vector<16x128xf32>
    %cst_191 = arith.constant 0.000000e+00 : f32
    %367 = vector.broadcast %cst_191 : f32 to vector<16x128xf32>
    %368 = arith.maximumf %366, %367 : vector<16x128xf32>
    %369 = arith.addf %365, %18 : vector<16x128xf32>
    %cst_192 = arith.constant 0.000000e+00 : f32
    %370 = vector.broadcast %cst_192 : f32 to vector<16x128xf32>
    %371 = arith.maximumf %369, %370 : vector<16x128xf32>
    %372 = arith.maximumf %368, %371 : vector<16x128xf32>
    %373 = arith.maximumf %285, %372 : vector<16x128xf32>
    %cst_193 = arith.constant 0.000000e+00 : f32
    %374 = vector.broadcast %cst_193 : f32 to vector<16x128xf32>
    %cst_194 = arith.constant 0.000000e+00 : f32
    %375 = vector.broadcast %cst_194 : f32 to vector<16x128xf32>
    %c0_195 = arith.constant 0 : index
    %c4_196 = arith.constant 4 : index
    %c0_197 = arith.constant 0 : index
    %376 = vector.load %arg1[%c0_195, %c4_196, %c0_197] : memref<1x18x128xf32, #tpu.memory_space<vmem>>, vector<1x1x128xf32>
    %377 = vector.shape_cast %376 : vector<1x1x128xf32> to vector<1x128xf32>
    %c0_198 = arith.constant 0 : index
    %c4_199 = arith.constant 4 : index
    %c0_200 = arith.constant 0 : index
    %378 = vector.load %arg2[%c0_198, %c4_199, %c0_200] : memref<1x18x128xf32, #tpu.memory_space<vmem>>, vector<1x1x128xf32>
    %379 = vector.shape_cast %378 : vector<1x1x128xf32> to vector<1x128xf32>
    %c0_201 = arith.constant 0 : index
    %c4_202 = arith.constant 4 : index
    %c0_203 = arith.constant 0 : index
    %380 = vector.load %arg3[%c0_201, %c4_202, %c0_203] : memref<1x18x128xf32, #tpu.memory_space<vmem>>, vector<1x1x128xf32>
    %381 = vector.shape_cast %380 : vector<1x1x128xf32> to vector<1x128xf32>
    %c0_204 = arith.constant 0 : index
    %c4_205 = arith.constant 4 : index
    %c0_206 = arith.constant 0 : index
    %382 = vector.load %arg4[%c0_204, %c4_205, %c0_206] : memref<1x18x128xf32, #tpu.memory_space<vmem>>, vector<1x1x128xf32>
    %383 = vector.shape_cast %382 : vector<1x1x128xf32> to vector<1x128xf32>
    %384 = vector.broadcast %377 : vector<1x128xf32> to vector<16x128xf32>
    %385 = arith.mulf %384, %1 : vector<16x128xf32>
    %386 = arith.addf %374, %385 : vector<16x128xf32>
    %387 = vector.broadcast %379 : vector<1x128xf32> to vector<16x128xf32>
    %388 = arith.mulf %387, %3 : vector<16x128xf32>
    %389 = arith.addf %386, %388 : vector<16x128xf32>
    %390 = vector.broadcast %381 : vector<1x128xf32> to vector<16x128xf32>
    %391 = arith.mulf %390, %5 : vector<16x128xf32>
    %392 = arith.addf %389, %391 : vector<16x128xf32>
    %393 = vector.broadcast %379 : vector<1x128xf32> to vector<16x128xf32>
    %394 = arith.mulf %393, %1 : vector<16x128xf32>
    %395 = arith.addf %375, %394 : vector<16x128xf32>
    %396 = vector.broadcast %381 : vector<1x128xf32> to vector<16x128xf32>
    %397 = arith.mulf %396, %3 : vector<16x128xf32>
    %398 = arith.addf %395, %397 : vector<16x128xf32>
    %399 = vector.broadcast %383 : vector<1x128xf32> to vector<16x128xf32>
    %400 = arith.mulf %399, %5 : vector<16x128xf32>
    %401 = arith.addf %398, %400 : vector<16x128xf32>
    %c0_207 = arith.constant 0 : index
    %c5_208 = arith.constant 5 : index
    %c0_209 = arith.constant 0 : index
    %402 = vector.load %arg1[%c0_207, %c5_208, %c0_209] : memref<1x18x128xf32, #tpu.memory_space<vmem>>, vector<1x1x128xf32>
    %403 = vector.shape_cast %402 : vector<1x1x128xf32> to vector<1x128xf32>
    %c0_210 = arith.constant 0 : index
    %c5_211 = arith.constant 5 : index
    %c0_212 = arith.constant 0 : index
    %404 = vector.load %arg2[%c0_210, %c5_211, %c0_212] : memref<1x18x128xf32, #tpu.memory_space<vmem>>, vector<1x1x128xf32>
    %405 = vector.shape_cast %404 : vector<1x1x128xf32> to vector<1x128xf32>
    %c0_213 = arith.constant 0 : index
    %c5_214 = arith.constant 5 : index
    %c0_215 = arith.constant 0 : index
    %406 = vector.load %arg3[%c0_213, %c5_214, %c0_215] : memref<1x18x128xf32, #tpu.memory_space<vmem>>, vector<1x1x128xf32>
    %407 = vector.shape_cast %406 : vector<1x1x128xf32> to vector<1x128xf32>
    %c0_216 = arith.constant 0 : index
    %c5_217 = arith.constant 5 : index
    %c0_218 = arith.constant 0 : index
    %408 = vector.load %arg4[%c0_216, %c5_217, %c0_218] : memref<1x18x128xf32, #tpu.memory_space<vmem>>, vector<1x1x128xf32>
    %409 = vector.shape_cast %408 : vector<1x1x128xf32> to vector<1x128xf32>
    %410 = vector.broadcast %403 : vector<1x128xf32> to vector<16x128xf32>
    %411 = arith.mulf %410, %7 : vector<16x128xf32>
    %412 = arith.addf %392, %411 : vector<16x128xf32>
    %413 = vector.broadcast %405 : vector<1x128xf32> to vector<16x128xf32>
    %414 = arith.mulf %413, %9 : vector<16x128xf32>
    %415 = arith.addf %412, %414 : vector<16x128xf32>
    %416 = vector.broadcast %407 : vector<1x128xf32> to vector<16x128xf32>
    %417 = arith.mulf %416, %11 : vector<16x128xf32>
    %418 = arith.addf %415, %417 : vector<16x128xf32>
    %419 = vector.broadcast %405 : vector<1x128xf32> to vector<16x128xf32>
    %420 = arith.mulf %419, %7 : vector<16x128xf32>
    %421 = arith.addf %401, %420 : vector<16x128xf32>
    %422 = vector.broadcast %407 : vector<1x128xf32> to vector<16x128xf32>
    %423 = arith.mulf %422, %9 : vector<16x128xf32>
    %424 = arith.addf %421, %423 : vector<16x128xf32>
    %425 = vector.broadcast %409 : vector<1x128xf32> to vector<16x128xf32>
    %426 = arith.mulf %425, %11 : vector<16x128xf32>
    %427 = arith.addf %424, %426 : vector<16x128xf32>
    %c0_219 = arith.constant 0 : index
    %c6 = arith.constant 6 : index
    %c0_220 = arith.constant 0 : index
    %428 = vector.load %arg1[%c0_219, %c6, %c0_220] : memref<1x18x128xf32, #tpu.memory_space<vmem>>, vector<1x1x128xf32>
    %429 = vector.shape_cast %428 : vector<1x1x128xf32> to vector<1x128xf32>
    %c0_221 = arith.constant 0 : index
    %c6_222 = arith.constant 6 : index
    %c0_223 = arith.constant 0 : index
    %430 = vector.load %arg2[%c0_221, %c6_222, %c0_223] : memref<1x18x128xf32, #tpu.memory_space<vmem>>, vector<1x1x128xf32>
    %431 = vector.shape_cast %430 : vector<1x1x128xf32> to vector<1x128xf32>
    %c0_224 = arith.constant 0 : index
    %c6_225 = arith.constant 6 : index
    %c0_226 = arith.constant 0 : index
    %432 = vector.load %arg3[%c0_224, %c6_225, %c0_226] : memref<1x18x128xf32, #tpu.memory_space<vmem>>, vector<1x1x128xf32>
    %433 = vector.shape_cast %432 : vector<1x1x128xf32> to vector<1x128xf32>
    %c0_227 = arith.constant 0 : index
    %c6_228 = arith.constant 6 : index
    %c0_229 = arith.constant 0 : index
    %434 = vector.load %arg4[%c0_227, %c6_228, %c0_229] : memref<1x18x128xf32, #tpu.memory_space<vmem>>, vector<1x1x128xf32>
    %435 = vector.shape_cast %434 : vector<1x1x128xf32> to vector<1x128xf32>
    %436 = vector.broadcast %429 : vector<1x128xf32> to vector<16x128xf32>
    %437 = arith.mulf %436, %13 : vector<16x128xf32>
    %438 = arith.addf %418, %437 : vector<16x128xf32>
    %439 = vector.broadcast %431 : vector<1x128xf32> to vector<16x128xf32>
    %440 = arith.mulf %439, %15 : vector<16x128xf32>
    %441 = arith.addf %438, %440 : vector<16x128xf32>
    %442 = vector.broadcast %433 : vector<1x128xf32> to vector<16x128xf32>
    %443 = arith.mulf %442, %17 : vector<16x128xf32>
    %444 = arith.addf %441, %443 : vector<16x128xf32>
    %445 = vector.broadcast %431 : vector<1x128xf32> to vector<16x128xf32>
    %446 = arith.mulf %445, %13 : vector<16x128xf32>
    %447 = arith.addf %427, %446 : vector<16x128xf32>
    %448 = vector.broadcast %433 : vector<1x128xf32> to vector<16x128xf32>
    %449 = arith.mulf %448, %15 : vector<16x128xf32>
    %450 = arith.addf %447, %449 : vector<16x128xf32>
    %451 = vector.broadcast %435 : vector<1x128xf32> to vector<16x128xf32>
    %452 = arith.mulf %451, %17 : vector<16x128xf32>
    %453 = arith.addf %450, %452 : vector<16x128xf32>
    %454 = arith.addf %444, %18 : vector<16x128xf32>
    %cst_230 = arith.constant 0.000000e+00 : f32
    %455 = vector.broadcast %cst_230 : f32 to vector<16x128xf32>
    %456 = arith.maximumf %454, %455 : vector<16x128xf32>
    %457 = arith.addf %453, %18 : vector<16x128xf32>
    %cst_231 = arith.constant 0.000000e+00 : f32
    %458 = vector.broadcast %cst_231 : f32 to vector<16x128xf32>
    %459 = arith.maximumf %457, %458 : vector<16x128xf32>
    %460 = arith.maximumf %456, %459 : vector<16x128xf32>
    %cst_232 = arith.constant 0.000000e+00 : f32
    %461 = vector.broadcast %cst_232 : f32 to vector<16x128xf32>
    %cst_233 = arith.constant 0.000000e+00 : f32
    %462 = vector.broadcast %cst_233 : f32 to vector<16x128xf32>
    %c0_234 = arith.constant 0 : index
    %c5_235 = arith.constant 5 : index
    %c0_236 = arith.constant 0 : index
    %463 = vector.load %arg1[%c0_234, %c5_235, %c0_236] : memref<1x18x128xf32, #tpu.memory_space<vmem>>, vector<1x1x128xf32>
    %464 = vector.shape_cast %463 : vector<1x1x128xf32> to vector<1x128xf32>
    %c0_237 = arith.constant 0 : index
    %c5_238 = arith.constant 5 : index
    %c0_239 = arith.constant 0 : index
    %465 = vector.load %arg2[%c0_237, %c5_238, %c0_239] : memref<1x18x128xf32, #tpu.memory_space<vmem>>, vector<1x1x128xf32>
    %466 = vector.shape_cast %465 : vector<1x1x128xf32> to vector<1x128xf32>
    %c0_240 = arith.constant 0 : index
    %c5_241 = arith.constant 5 : index
    %c0_242 = arith.constant 0 : index
    %467 = vector.load %arg3[%c0_240, %c5_241, %c0_242] : memref<1x18x128xf32, #tpu.memory_space<vmem>>, vector<1x1x128xf32>
    %468 = vector.shape_cast %467 : vector<1x1x128xf32> to vector<1x128xf32>
    %c0_243 = arith.constant 0 : index
    %c5_244 = arith.constant 5 : index
    %c0_245 = arith.constant 0 : index
    %469 = vector.load %arg4[%c0_243, %c5_244, %c0_245] : memref<1x18x128xf32, #tpu.memory_space<vmem>>, vector<1x1x128xf32>
    %470 = vector.shape_cast %469 : vector<1x1x128xf32> to vector<1x128xf32>
    %471 = vector.broadcast %464 : vector<1x128xf32> to vector<16x128xf32>
    %472 = arith.mulf %471, %1 : vector<16x128xf32>
    %473 = arith.addf %461, %472 : vector<16x128xf32>
    %474 = vector.broadcast %466 : vector<1x128xf32> to vector<16x128xf32>
    %475 = arith.mulf %474, %3 : vector<16x128xf32>
    %476 = arith.addf %473, %475 : vector<16x128xf32>
    %477 = vector.broadcast %468 : vector<1x128xf32> to vector<16x128xf32>
    %478 = arith.mulf %477, %5 : vector<16x128xf32>
    %479 = arith.addf %476, %478 : vector<16x128xf32>
    %480 = vector.broadcast %466 : vector<1x128xf32> to vector<16x128xf32>
    %481 = arith.mulf %480, %1 : vector<16x128xf32>
    %482 = arith.addf %462, %481 : vector<16x128xf32>
    %483 = vector.broadcast %468 : vector<1x128xf32> to vector<16x128xf32>
    %484 = arith.mulf %483, %3 : vector<16x128xf32>
    %485 = arith.addf %482, %484 : vector<16x128xf32>
    %486 = vector.broadcast %470 : vector<1x128xf32> to vector<16x128xf32>
    %487 = arith.mulf %486, %5 : vector<16x128xf32>
    %488 = arith.addf %485, %487 : vector<16x128xf32>
    %c0_246 = arith.constant 0 : index
    %c6_247 = arith.constant 6 : index
    %c0_248 = arith.constant 0 : index
    %489 = vector.load %arg1[%c0_246, %c6_247, %c0_248] : memref<1x18x128xf32, #tpu.memory_space<vmem>>, vector<1x1x128xf32>
    %490 = vector.shape_cast %489 : vector<1x1x128xf32> to vector<1x128xf32>
    %c0_249 = arith.constant 0 : index
    %c6_250 = arith.constant 6 : index
    %c0_251 = arith.constant 0 : index
    %491 = vector.load %arg2[%c0_249, %c6_250, %c0_251] : memref<1x18x128xf32, #tpu.memory_space<vmem>>, vector<1x1x128xf32>
    %492 = vector.shape_cast %491 : vector<1x1x128xf32> to vector<1x128xf32>
    %c0_252 = arith.constant 0 : index
    %c6_253 = arith.constant 6 : index
    %c0_254 = arith.constant 0 : index
    %493 = vector.load %arg3[%c0_252, %c6_253, %c0_254] : memref<1x18x128xf32, #tpu.memory_space<vmem>>, vector<1x1x128xf32>
    %494 = vector.shape_cast %493 : vector<1x1x128xf32> to vector<1x128xf32>
    %c0_255 = arith.constant 0 : index
    %c6_256 = arith.constant 6 : index
    %c0_257 = arith.constant 0 : index
    %495 = vector.load %arg4[%c0_255, %c6_256, %c0_257] : memref<1x18x128xf32, #tpu.memory_space<vmem>>, vector<1x1x128xf32>
    %496 = vector.shape_cast %495 : vector<1x1x128xf32> to vector<1x128xf32>
    %497 = vector.broadcast %490 : vector<1x128xf32> to vector<16x128xf32>
    %498 = arith.mulf %497, %7 : vector<16x128xf32>
    %499 = arith.addf %479, %498 : vector<16x128xf32>
    %500 = vector.broadcast %492 : vector<1x128xf32> to vector<16x128xf32>
    %501 = arith.mulf %500, %9 : vector<16x128xf32>
    %502 = arith.addf %499, %501 : vector<16x128xf32>
    %503 = vector.broadcast %494 : vector<1x128xf32> to vector<16x128xf32>
    %504 = arith.mulf %503, %11 : vector<16x128xf32>
    %505 = arith.addf %502, %504 : vector<16x128xf32>
    %506 = vector.broadcast %492 : vector<1x128xf32> to vector<16x128xf32>
    %507 = arith.mulf %506, %7 : vector<16x128xf32>
    %508 = arith.addf %488, %507 : vector<16x128xf32>
    %509 = vector.broadcast %494 : vector<1x128xf32> to vector<16x128xf32>
    %510 = arith.mulf %509, %9 : vector<16x128xf32>
    %511 = arith.addf %508, %510 : vector<16x128xf32>
    %512 = vector.broadcast %496 : vector<1x128xf32> to vector<16x128xf32>
    %513 = arith.mulf %512, %11 : vector<16x128xf32>
    %514 = arith.addf %511, %513 : vector<16x128xf32>
    %c0_258 = arith.constant 0 : index
    %c7 = arith.constant 7 : index
    %c0_259 = arith.constant 0 : index
    %515 = vector.load %arg1[%c0_258, %c7, %c0_259] : memref<1x18x128xf32, #tpu.memory_space<vmem>>, vector<1x1x128xf32>
    %516 = vector.shape_cast %515 : vector<1x1x128xf32> to vector<1x128xf32>
    %c0_260 = arith.constant 0 : index
    %c7_261 = arith.constant 7 : index
    %c0_262 = arith.constant 0 : index
    %517 = vector.load %arg2[%c0_260, %c7_261, %c0_262] : memref<1x18x128xf32, #tpu.memory_space<vmem>>, vector<1x1x128xf32>
    %518 = vector.shape_cast %517 : vector<1x1x128xf32> to vector<1x128xf32>
    %c0_263 = arith.constant 0 : index
    %c7_264 = arith.constant 7 : index
    %c0_265 = arith.constant 0 : index
    %519 = vector.load %arg3[%c0_263, %c7_264, %c0_265] : memref<1x18x128xf32, #tpu.memory_space<vmem>>, vector<1x1x128xf32>
    %520 = vector.shape_cast %519 : vector<1x1x128xf32> to vector<1x128xf32>
    %c0_266 = arith.constant 0 : index
    %c7_267 = arith.constant 7 : index
    %c0_268 = arith.constant 0 : index
    %521 = vector.load %arg4[%c0_266, %c7_267, %c0_268] : memref<1x18x128xf32, #tpu.memory_space<vmem>>, vector<1x1x128xf32>
    %522 = vector.shape_cast %521 : vector<1x1x128xf32> to vector<1x128xf32>
    %523 = vector.broadcast %516 : vector<1x128xf32> to vector<16x128xf32>
    %524 = arith.mulf %523, %13 : vector<16x128xf32>
    %525 = arith.addf %505, %524 : vector<16x128xf32>
    %526 = vector.broadcast %518 : vector<1x128xf32> to vector<16x128xf32>
    %527 = arith.mulf %526, %15 : vector<16x128xf32>
    %528 = arith.addf %525, %527 : vector<16x128xf32>
    %529 = vector.broadcast %520 : vector<1x128xf32> to vector<16x128xf32>
    %530 = arith.mulf %529, %17 : vector<16x128xf32>
    %531 = arith.addf %528, %530 : vector<16x128xf32>
    %532 = vector.broadcast %518 : vector<1x128xf32> to vector<16x128xf32>
    %533 = arith.mulf %532, %13 : vector<16x128xf32>
    %534 = arith.addf %514, %533 : vector<16x128xf32>
    %535 = vector.broadcast %520 : vector<1x128xf32> to vector<16x128xf32>
    %536 = arith.mulf %535, %15 : vector<16x128xf32>
    %537 = arith.addf %534, %536 : vector<16x128xf32>
    %538 = vector.broadcast %522 : vector<1x128xf32> to vector<16x128xf32>
    %539 = arith.mulf %538, %17 : vector<16x128xf32>
    %540 = arith.addf %537, %539 : vector<16x128xf32>
    %541 = arith.addf %531, %18 : vector<16x128xf32>
    %cst_269 = arith.constant 0.000000e+00 : f32
    %542 = vector.broadcast %cst_269 : f32 to vector<16x128xf32>
    %543 = arith.maximumf %541, %542 : vector<16x128xf32>
    %544 = arith.addf %540, %18 : vector<16x128xf32>
    %cst_270 = arith.constant 0.000000e+00 : f32
    %545 = vector.broadcast %cst_270 : f32 to vector<16x128xf32>
    %546 = arith.maximumf %544, %545 : vector<16x128xf32>
    %547 = arith.maximumf %543, %546 : vector<16x128xf32>
    %548 = arith.maximumf %460, %547 : vector<16x128xf32>
    %cst_271 = arith.constant 0.000000e+00 : f32
    %549 = vector.broadcast %cst_271 : f32 to vector<16x128xf32>
    %cst_272 = arith.constant 0.000000e+00 : f32
    %550 = vector.broadcast %cst_272 : f32 to vector<16x128xf32>
    %c0_273 = arith.constant 0 : index
    %c6_274 = arith.constant 6 : index
    %c0_275 = arith.constant 0 : index
    %551 = vector.load %arg1[%c0_273, %c6_274, %c0_275] : memref<1x18x128xf32, #tpu.memory_space<vmem>>, vector<1x1x128xf32>
    %552 = vector.shape_cast %551 : vector<1x1x128xf32> to vector<1x128xf32>
    %c0_276 = arith.constant 0 : index
    %c6_277 = arith.constant 6 : index
    %c0_278 = arith.constant 0 : index
    %553 = vector.load %arg2[%c0_276, %c6_277, %c0_278] : memref<1x18x128xf32, #tpu.memory_space<vmem>>, vector<1x1x128xf32>
    %554 = vector.shape_cast %553 : vector<1x1x128xf32> to vector<1x128xf32>
    %c0_279 = arith.constant 0 : index
    %c6_280 = arith.constant 6 : index
    %c0_281 = arith.constant 0 : index
    %555 = vector.load %arg3[%c0_279, %c6_280, %c0_281] : memref<1x18x128xf32, #tpu.memory_space<vmem>>, vector<1x1x128xf32>
    %556 = vector.shape_cast %555 : vector<1x1x128xf32> to vector<1x128xf32>
    %c0_282 = arith.constant 0 : index
    %c6_283 = arith.constant 6 : index
    %c0_284 = arith.constant 0 : index
    %557 = vector.load %arg4[%c0_282, %c6_283, %c0_284] : memref<1x18x128xf32, #tpu.memory_space<vmem>>, vector<1x1x128xf32>
    %558 = vector.shape_cast %557 : vector<1x1x128xf32> to vector<1x128xf32>
    %559 = vector.broadcast %552 : vector<1x128xf32> to vector<16x128xf32>
    %560 = arith.mulf %559, %1 : vector<16x128xf32>
    %561 = arith.addf %549, %560 : vector<16x128xf32>
    %562 = vector.broadcast %554 : vector<1x128xf32> to vector<16x128xf32>
    %563 = arith.mulf %562, %3 : vector<16x128xf32>
    %564 = arith.addf %561, %563 : vector<16x128xf32>
    %565 = vector.broadcast %556 : vector<1x128xf32> to vector<16x128xf32>
    %566 = arith.mulf %565, %5 : vector<16x128xf32>
    %567 = arith.addf %564, %566 : vector<16x128xf32>
    %568 = vector.broadcast %554 : vector<1x128xf32> to vector<16x128xf32>
    %569 = arith.mulf %568, %1 : vector<16x128xf32>
    %570 = arith.addf %550, %569 : vector<16x128xf32>
    %571 = vector.broadcast %556 : vector<1x128xf32> to vector<16x128xf32>
    %572 = arith.mulf %571, %3 : vector<16x128xf32>
    %573 = arith.addf %570, %572 : vector<16x128xf32>
    %574 = vector.broadcast %558 : vector<1x128xf32> to vector<16x128xf32>
    %575 = arith.mulf %574, %5 : vector<16x128xf32>
    %576 = arith.addf %573, %575 : vector<16x128xf32>
    %c0_285 = arith.constant 0 : index
    %c7_286 = arith.constant 7 : index
    %c0_287 = arith.constant 0 : index
    %577 = vector.load %arg1[%c0_285, %c7_286, %c0_287] : memref<1x18x128xf32, #tpu.memory_space<vmem>>, vector<1x1x128xf32>
    %578 = vector.shape_cast %577 : vector<1x1x128xf32> to vector<1x128xf32>
    %c0_288 = arith.constant 0 : index
    %c7_289 = arith.constant 7 : index
    %c0_290 = arith.constant 0 : index
    %579 = vector.load %arg2[%c0_288, %c7_289, %c0_290] : memref<1x18x128xf32, #tpu.memory_space<vmem>>, vector<1x1x128xf32>
    %580 = vector.shape_cast %579 : vector<1x1x128xf32> to vector<1x128xf32>
    %c0_291 = arith.constant 0 : index
    %c7_292 = arith.constant 7 : index
    %c0_293 = arith.constant 0 : index
    %581 = vector.load %arg3[%c0_291, %c7_292, %c0_293] : memref<1x18x128xf32, #tpu.memory_space<vmem>>, vector<1x1x128xf32>
    %582 = vector.shape_cast %581 : vector<1x1x128xf32> to vector<1x128xf32>
    %c0_294 = arith.constant 0 : index
    %c7_295 = arith.constant 7 : index
    %c0_296 = arith.constant 0 : index
    %583 = vector.load %arg4[%c0_294, %c7_295, %c0_296] : memref<1x18x128xf32, #tpu.memory_space<vmem>>, vector<1x1x128xf32>
    %584 = vector.shape_cast %583 : vector<1x1x128xf32> to vector<1x128xf32>
    %585 = vector.broadcast %578 : vector<1x128xf32> to vector<16x128xf32>
    %586 = arith.mulf %585, %7 : vector<16x128xf32>
    %587 = arith.addf %567, %586 : vector<16x128xf32>
    %588 = vector.broadcast %580 : vector<1x128xf32> to vector<16x128xf32>
    %589 = arith.mulf %588, %9 : vector<16x128xf32>
    %590 = arith.addf %587, %589 : vector<16x128xf32>
    %591 = vector.broadcast %582 : vector<1x128xf32> to vector<16x128xf32>
    %592 = arith.mulf %591, %11 : vector<16x128xf32>
    %593 = arith.addf %590, %592 : vector<16x128xf32>
    %594 = vector.broadcast %580 : vector<1x128xf32> to vector<16x128xf32>
    %595 = arith.mulf %594, %7 : vector<16x128xf32>
    %596 = arith.addf %576, %595 : vector<16x128xf32>
    %597 = vector.broadcast %582 : vector<1x128xf32> to vector<16x128xf32>
    %598 = arith.mulf %597, %9 : vector<16x128xf32>
    %599 = arith.addf %596, %598 : vector<16x128xf32>
    %600 = vector.broadcast %584 : vector<1x128xf32> to vector<16x128xf32>
    %601 = arith.mulf %600, %11 : vector<16x128xf32>
    %602 = arith.addf %599, %601 : vector<16x128xf32>
    %c0_297 = arith.constant 0 : index
    %c8 = arith.constant 8 : index
    %c0_298 = arith.constant 0 : index
    %603 = vector.load %arg1[%c0_297, %c8, %c0_298] : memref<1x18x128xf32, #tpu.memory_space<vmem>>, vector<1x1x128xf32>
    %604 = vector.shape_cast %603 : vector<1x1x128xf32> to vector<1x128xf32>
    %c0_299 = arith.constant 0 : index
    %c8_300 = arith.constant 8 : index
    %c0_301 = arith.constant 0 : index
    %605 = vector.load %arg2[%c0_299, %c8_300, %c0_301] : memref<1x18x128xf32, #tpu.memory_space<vmem>>, vector<1x1x128xf32>
    %606 = vector.shape_cast %605 : vector<1x1x128xf32> to vector<1x128xf32>
    %c0_302 = arith.constant 0 : index
    %c8_303 = arith.constant 8 : index
    %c0_304 = arith.constant 0 : index
    %607 = vector.load %arg3[%c0_302, %c8_303, %c0_304] : memref<1x18x128xf32, #tpu.memory_space<vmem>>, vector<1x1x128xf32>
    %608 = vector.shape_cast %607 : vector<1x1x128xf32> to vector<1x128xf32>
    %c0_305 = arith.constant 0 : index
    %c8_306 = arith.constant 8 : index
    %c0_307 = arith.constant 0 : index
    %609 = vector.load %arg4[%c0_305, %c8_306, %c0_307] : memref<1x18x128xf32, #tpu.memory_space<vmem>>, vector<1x1x128xf32>
    %610 = vector.shape_cast %609 : vector<1x1x128xf32> to vector<1x128xf32>
    %611 = vector.broadcast %604 : vector<1x128xf32> to vector<16x128xf32>
    %612 = arith.mulf %611, %13 : vector<16x128xf32>
    %613 = arith.addf %593, %612 : vector<16x128xf32>
    %614 = vector.broadcast %606 : vector<1x128xf32> to vector<16x128xf32>
    %615 = arith.mulf %614, %15 : vector<16x128xf32>
    %616 = arith.addf %613, %615 : vector<16x128xf32>
    %617 = vector.broadcast %608 : vector<1x128xf32> to vector<16x128xf32>
    %618 = arith.mulf %617, %17 : vector<16x128xf32>
    %619 = arith.addf %616, %618 : vector<16x128xf32>
    %620 = vector.broadcast %606 : vector<1x128xf32> to vector<16x128xf32>
    %621 = arith.mulf %620, %13 : vector<16x128xf32>
    %622 = arith.addf %602, %621 : vector<16x128xf32>
    %623 = vector.broadcast %608 : vector<1x128xf32> to vector<16x128xf32>
    %624 = arith.mulf %623, %15 : vector<16x128xf32>
    %625 = arith.addf %622, %624 : vector<16x128xf32>
    %626 = vector.broadcast %610 : vector<1x128xf32> to vector<16x128xf32>
    %627 = arith.mulf %626, %17 : vector<16x128xf32>
    %628 = arith.addf %625, %627 : vector<16x128xf32>
    %629 = arith.addf %619, %18 : vector<16x128xf32>
    %cst_308 = arith.constant 0.000000e+00 : f32
    %630 = vector.broadcast %cst_308 : f32 to vector<16x128xf32>
    %631 = arith.maximumf %629, %630 : vector<16x128xf32>
    %632 = arith.addf %628, %18 : vector<16x128xf32>
    %cst_309 = arith.constant 0.000000e+00 : f32
    %633 = vector.broadcast %cst_309 : f32 to vector<16x128xf32>
    %634 = arith.maximumf %632, %633 : vector<16x128xf32>
    %635 = arith.maximumf %631, %634 : vector<16x128xf32>
    %cst_310 = arith.constant 0.000000e+00 : f32
    %636 = vector.broadcast %cst_310 : f32 to vector<16x128xf32>
    %cst_311 = arith.constant 0.000000e+00 : f32
    %637 = vector.broadcast %cst_311 : f32 to vector<16x128xf32>
    %c0_312 = arith.constant 0 : index
    %c7_313 = arith.constant 7 : index
    %c0_314 = arith.constant 0 : index
    %638 = vector.load %arg1[%c0_312, %c7_313, %c0_314] : memref<1x18x128xf32, #tpu.memory_space<vmem>>, vector<1x1x128xf32>
    %639 = vector.shape_cast %638 : vector<1x1x128xf32> to vector<1x128xf32>
    %c0_315 = arith.constant 0 : index
    %c7_316 = arith.constant 7 : index
    %c0_317 = arith.constant 0 : index
    %640 = vector.load %arg2[%c0_315, %c7_316, %c0_317] : memref<1x18x128xf32, #tpu.memory_space<vmem>>, vector<1x1x128xf32>
    %641 = vector.shape_cast %640 : vector<1x1x128xf32> to vector<1x128xf32>
    %c0_318 = arith.constant 0 : index
    %c7_319 = arith.constant 7 : index
    %c0_320 = arith.constant 0 : index
    %642 = vector.load %arg3[%c0_318, %c7_319, %c0_320] : memref<1x18x128xf32, #tpu.memory_space<vmem>>, vector<1x1x128xf32>
    %643 = vector.shape_cast %642 : vector<1x1x128xf32> to vector<1x128xf32>
    %c0_321 = arith.constant 0 : index
    %c7_322 = arith.constant 7 : index
    %c0_323 = arith.constant 0 : index
    %644 = vector.load %arg4[%c0_321, %c7_322, %c0_323] : memref<1x18x128xf32, #tpu.memory_space<vmem>>, vector<1x1x128xf32>
    %645 = vector.shape_cast %644 : vector<1x1x128xf32> to vector<1x128xf32>
    %646 = vector.broadcast %639 : vector<1x128xf32> to vector<16x128xf32>
    %647 = arith.mulf %646, %1 : vector<16x128xf32>
    %648 = arith.addf %636, %647 : vector<16x128xf32>
    %649 = vector.broadcast %641 : vector<1x128xf32> to vector<16x128xf32>
    %650 = arith.mulf %649, %3 : vector<16x128xf32>
    %651 = arith.addf %648, %650 : vector<16x128xf32>
    %652 = vector.broadcast %643 : vector<1x128xf32> to vector<16x128xf32>
    %653 = arith.mulf %652, %5 : vector<16x128xf32>
    %654 = arith.addf %651, %653 : vector<16x128xf32>
    %655 = vector.broadcast %641 : vector<1x128xf32> to vector<16x128xf32>
    %656 = arith.mulf %655, %1 : vector<16x128xf32>
    %657 = arith.addf %637, %656 : vector<16x128xf32>
    %658 = vector.broadcast %643 : vector<1x128xf32> to vector<16x128xf32>
    %659 = arith.mulf %658, %3 : vector<16x128xf32>
    %660 = arith.addf %657, %659 : vector<16x128xf32>
    %661 = vector.broadcast %645 : vector<1x128xf32> to vector<16x128xf32>
    %662 = arith.mulf %661, %5 : vector<16x128xf32>
    %663 = arith.addf %660, %662 : vector<16x128xf32>
    %c0_324 = arith.constant 0 : index
    %c8_325 = arith.constant 8 : index
    %c0_326 = arith.constant 0 : index
    %664 = vector.load %arg1[%c0_324, %c8_325, %c0_326] : memref<1x18x128xf32, #tpu.memory_space<vmem>>, vector<1x1x128xf32>
    %665 = vector.shape_cast %664 : vector<1x1x128xf32> to vector<1x128xf32>
    %c0_327 = arith.constant 0 : index
    %c8_328 = arith.constant 8 : index
    %c0_329 = arith.constant 0 : index
    %666 = vector.load %arg2[%c0_327, %c8_328, %c0_329] : memref<1x18x128xf32, #tpu.memory_space<vmem>>, vector<1x1x128xf32>
    %667 = vector.shape_cast %666 : vector<1x1x128xf32> to vector<1x128xf32>
    %c0_330 = arith.constant 0 : index
    %c8_331 = arith.constant 8 : index
    %c0_332 = arith.constant 0 : index
    %668 = vector.load %arg3[%c0_330, %c8_331, %c0_332] : memref<1x18x128xf32, #tpu.memory_space<vmem>>, vector<1x1x128xf32>
    %669 = vector.shape_cast %668 : vector<1x1x128xf32> to vector<1x128xf32>
    %c0_333 = arith.constant 0 : index
    %c8_334 = arith.constant 8 : index
    %c0_335 = arith.constant 0 : index
    %670 = vector.load %arg4[%c0_333, %c8_334, %c0_335] : memref<1x18x128xf32, #tpu.memory_space<vmem>>, vector<1x1x128xf32>
    %671 = vector.shape_cast %670 : vector<1x1x128xf32> to vector<1x128xf32>
    %672 = vector.broadcast %665 : vector<1x128xf32> to vector<16x128xf32>
    %673 = arith.mulf %672, %7 : vector<16x128xf32>
    %674 = arith.addf %654, %673 : vector<16x128xf32>
    %675 = vector.broadcast %667 : vector<1x128xf32> to vector<16x128xf32>
    %676 = arith.mulf %675, %9 : vector<16x128xf32>
    %677 = arith.addf %674, %676 : vector<16x128xf32>
    %678 = vector.broadcast %669 : vector<1x128xf32> to vector<16x128xf32>
    %679 = arith.mulf %678, %11 : vector<16x128xf32>
    %680 = arith.addf %677, %679 : vector<16x128xf32>
    %681 = vector.broadcast %667 : vector<1x128xf32> to vector<16x128xf32>
    %682 = arith.mulf %681, %7 : vector<16x128xf32>
    %683 = arith.addf %663, %682 : vector<16x128xf32>
    %684 = vector.broadcast %669 : vector<1x128xf32> to vector<16x128xf32>
    %685 = arith.mulf %684, %9 : vector<16x128xf32>
    %686 = arith.addf %683, %685 : vector<16x128xf32>
    %687 = vector.broadcast %671 : vector<1x128xf32> to vector<16x128xf32>
    %688 = arith.mulf %687, %11 : vector<16x128xf32>
    %689 = arith.addf %686, %688 : vector<16x128xf32>
    %c0_336 = arith.constant 0 : index
    %c9 = arith.constant 9 : index
    %c0_337 = arith.constant 0 : index
    %690 = vector.load %arg1[%c0_336, %c9, %c0_337] : memref<1x18x128xf32, #tpu.memory_space<vmem>>, vector<1x1x128xf32>
    %691 = vector.shape_cast %690 : vector<1x1x128xf32> to vector<1x128xf32>
    %c0_338 = arith.constant 0 : index
    %c9_339 = arith.constant 9 : index
    %c0_340 = arith.constant 0 : index
    %692 = vector.load %arg2[%c0_338, %c9_339, %c0_340] : memref<1x18x128xf32, #tpu.memory_space<vmem>>, vector<1x1x128xf32>
    %693 = vector.shape_cast %692 : vector<1x1x128xf32> to vector<1x128xf32>
    %c0_341 = arith.constant 0 : index
    %c9_342 = arith.constant 9 : index
    %c0_343 = arith.constant 0 : index
    %694 = vector.load %arg3[%c0_341, %c9_342, %c0_343] : memref<1x18x128xf32, #tpu.memory_space<vmem>>, vector<1x1x128xf32>
    %695 = vector.shape_cast %694 : vector<1x1x128xf32> to vector<1x128xf32>
    %c0_344 = arith.constant 0 : index
    %c9_345 = arith.constant 9 : index
    %c0_346 = arith.constant 0 : index
    %696 = vector.load %arg4[%c0_344, %c9_345, %c0_346] : memref<1x18x128xf32, #tpu.memory_space<vmem>>, vector<1x1x128xf32>
    %697 = vector.shape_cast %696 : vector<1x1x128xf32> to vector<1x128xf32>
    %698 = vector.broadcast %691 : vector<1x128xf32> to vector<16x128xf32>
    %699 = arith.mulf %698, %13 : vector<16x128xf32>
    %700 = arith.addf %680, %699 : vector<16x128xf32>
    %701 = vector.broadcast %693 : vector<1x128xf32> to vector<16x128xf32>
    %702 = arith.mulf %701, %15 : vector<16x128xf32>
    %703 = arith.addf %700, %702 : vector<16x128xf32>
    %704 = vector.broadcast %695 : vector<1x128xf32> to vector<16x128xf32>
    %705 = arith.mulf %704, %17 : vector<16x128xf32>
    %706 = arith.addf %703, %705 : vector<16x128xf32>
    %707 = vector.broadcast %693 : vector<1x128xf32> to vector<16x128xf32>
    %708 = arith.mulf %707, %13 : vector<16x128xf32>
    %709 = arith.addf %689, %708 : vector<16x128xf32>
    %710 = vector.broadcast %695 : vector<1x128xf32> to vector<16x128xf32>
    %711 = arith.mulf %710, %15 : vector<16x128xf32>
    %712 = arith.addf %709, %711 : vector<16x128xf32>
    %713 = vector.broadcast %697 : vector<1x128xf32> to vector<16x128xf32>
    %714 = arith.mulf %713, %17 : vector<16x128xf32>
    %715 = arith.addf %712, %714 : vector<16x128xf32>
    %716 = arith.addf %706, %18 : vector<16x128xf32>
    %cst_347 = arith.constant 0.000000e+00 : f32
    %717 = vector.broadcast %cst_347 : f32 to vector<16x128xf32>
    %718 = arith.maximumf %716, %717 : vector<16x128xf32>
    %719 = arith.addf %715, %18 : vector<16x128xf32>
    %cst_348 = arith.constant 0.000000e+00 : f32
    %720 = vector.broadcast %cst_348 : f32 to vector<16x128xf32>
    %721 = arith.maximumf %719, %720 : vector<16x128xf32>
    %722 = arith.maximumf %718, %721 : vector<16x128xf32>
    %723 = arith.maximumf %635, %722 : vector<16x128xf32>
    %cst_349 = arith.constant 0.000000e+00 : f32
    %724 = vector.broadcast %cst_349 : f32 to vector<16x128xf32>
    %cst_350 = arith.constant 0.000000e+00 : f32
    %725 = vector.broadcast %cst_350 : f32 to vector<16x128xf32>
    %c0_351 = arith.constant 0 : index
    %c8_352 = arith.constant 8 : index
    %c0_353 = arith.constant 0 : index
    %726 = vector.load %arg1[%c0_351, %c8_352, %c0_353] : memref<1x18x128xf32, #tpu.memory_space<vmem>>, vector<1x1x128xf32>
    %727 = vector.shape_cast %726 : vector<1x1x128xf32> to vector<1x128xf32>
    %c0_354 = arith.constant 0 : index
    %c8_355 = arith.constant 8 : index
    %c0_356 = arith.constant 0 : index
    %728 = vector.load %arg2[%c0_354, %c8_355, %c0_356] : memref<1x18x128xf32, #tpu.memory_space<vmem>>, vector<1x1x128xf32>
    %729 = vector.shape_cast %728 : vector<1x1x128xf32> to vector<1x128xf32>
    %c0_357 = arith.constant 0 : index
    %c8_358 = arith.constant 8 : index
    %c0_359 = arith.constant 0 : index
    %730 = vector.load %arg3[%c0_357, %c8_358, %c0_359] : memref<1x18x128xf32, #tpu.memory_space<vmem>>, vector<1x1x128xf32>
    %731 = vector.shape_cast %730 : vector<1x1x128xf32> to vector<1x128xf32>
    %c0_360 = arith.constant 0 : index
    %c8_361 = arith.constant 8 : index
    %c0_362 = arith.constant 0 : index
    %732 = vector.load %arg4[%c0_360, %c8_361, %c0_362] : memref<1x18x128xf32, #tpu.memory_space<vmem>>, vector<1x1x128xf32>
    %733 = vector.shape_cast %732 : vector<1x1x128xf32> to vector<1x128xf32>
    %734 = vector.broadcast %727 : vector<1x128xf32> to vector<16x128xf32>
    %735 = arith.mulf %734, %1 : vector<16x128xf32>
    %736 = arith.addf %724, %735 : vector<16x128xf32>
    %737 = vector.broadcast %729 : vector<1x128xf32> to vector<16x128xf32>
    %738 = arith.mulf %737, %3 : vector<16x128xf32>
    %739 = arith.addf %736, %738 : vector<16x128xf32>
    %740 = vector.broadcast %731 : vector<1x128xf32> to vector<16x128xf32>
    %741 = arith.mulf %740, %5 : vector<16x128xf32>
    %742 = arith.addf %739, %741 : vector<16x128xf32>
    %743 = vector.broadcast %729 : vector<1x128xf32> to vector<16x128xf32>
    %744 = arith.mulf %743, %1 : vector<16x128xf32>
    %745 = arith.addf %725, %744 : vector<16x128xf32>
    %746 = vector.broadcast %731 : vector<1x128xf32> to vector<16x128xf32>
    %747 = arith.mulf %746, %3 : vector<16x128xf32>
    %748 = arith.addf %745, %747 : vector<16x128xf32>
    %749 = vector.broadcast %733 : vector<1x128xf32> to vector<16x128xf32>
    %750 = arith.mulf %749, %5 : vector<16x128xf32>
    %751 = arith.addf %748, %750 : vector<16x128xf32>
    %c0_363 = arith.constant 0 : index
    %c9_364 = arith.constant 9 : index
    %c0_365 = arith.constant 0 : index
    %752 = vector.load %arg1[%c0_363, %c9_364, %c0_365] : memref<1x18x128xf32, #tpu.memory_space<vmem>>, vector<1x1x128xf32>
    %753 = vector.shape_cast %752 : vector<1x1x128xf32> to vector<1x128xf32>
    %c0_366 = arith.constant 0 : index
    %c9_367 = arith.constant 9 : index
    %c0_368 = arith.constant 0 : index
    %754 = vector.load %arg2[%c0_366, %c9_367, %c0_368] : memref<1x18x128xf32, #tpu.memory_space<vmem>>, vector<1x1x128xf32>
    %755 = vector.shape_cast %754 : vector<1x1x128xf32> to vector<1x128xf32>
    %c0_369 = arith.constant 0 : index
    %c9_370 = arith.constant 9 : index
    %c0_371 = arith.constant 0 : index
    %756 = vector.load %arg3[%c0_369, %c9_370, %c0_371] : memref<1x18x128xf32, #tpu.memory_space<vmem>>, vector<1x1x128xf32>
    %757 = vector.shape_cast %756 : vector<1x1x128xf32> to vector<1x128xf32>
    %c0_372 = arith.constant 0 : index
    %c9_373 = arith.constant 9 : index
    %c0_374 = arith.constant 0 : index
    %758 = vector.load %arg4[%c0_372, %c9_373, %c0_374] : memref<1x18x128xf32, #tpu.memory_space<vmem>>, vector<1x1x128xf32>
    %759 = vector.shape_cast %758 : vector<1x1x128xf32> to vector<1x128xf32>
    %760 = vector.broadcast %753 : vector<1x128xf32> to vector<16x128xf32>
    %761 = arith.mulf %760, %7 : vector<16x128xf32>
    %762 = arith.addf %742, %761 : vector<16x128xf32>
    %763 = vector.broadcast %755 : vector<1x128xf32> to vector<16x128xf32>
    %764 = arith.mulf %763, %9 : vector<16x128xf32>
    %765 = arith.addf %762, %764 : vector<16x128xf32>
    %766 = vector.broadcast %757 : vector<1x128xf32> to vector<16x128xf32>
    %767 = arith.mulf %766, %11 : vector<16x128xf32>
    %768 = arith.addf %765, %767 : vector<16x128xf32>
    %769 = vector.broadcast %755 : vector<1x128xf32> to vector<16x128xf32>
    %770 = arith.mulf %769, %7 : vector<16x128xf32>
    %771 = arith.addf %751, %770 : vector<16x128xf32>
    %772 = vector.broadcast %757 : vector<1x128xf32> to vector<16x128xf32>
    %773 = arith.mulf %772, %9 : vector<16x128xf32>
    %774 = arith.addf %771, %773 : vector<16x128xf32>
    %775 = vector.broadcast %759 : vector<1x128xf32> to vector<16x128xf32>
    %776 = arith.mulf %775, %11 : vector<16x128xf32>
    %777 = arith.addf %774, %776 : vector<16x128xf32>
    %c0_375 = arith.constant 0 : index
    %c10 = arith.constant 10 : index
    %c0_376 = arith.constant 0 : index
    %778 = vector.load %arg1[%c0_375, %c10, %c0_376] : memref<1x18x128xf32, #tpu.memory_space<vmem>>, vector<1x1x128xf32>
    %779 = vector.shape_cast %778 : vector<1x1x128xf32> to vector<1x128xf32>
    %c0_377 = arith.constant 0 : index
    %c10_378 = arith.constant 10 : index
    %c0_379 = arith.constant 0 : index
    %780 = vector.load %arg2[%c0_377, %c10_378, %c0_379] : memref<1x18x128xf32, #tpu.memory_space<vmem>>, vector<1x1x128xf32>
    %781 = vector.shape_cast %780 : vector<1x1x128xf32> to vector<1x128xf32>
    %c0_380 = arith.constant 0 : index
    %c10_381 = arith.constant 10 : index
    %c0_382 = arith.constant 0 : index
    %782 = vector.load %arg3[%c0_380, %c10_381, %c0_382] : memref<1x18x128xf32, #tpu.memory_space<vmem>>, vector<1x1x128xf32>
    %783 = vector.shape_cast %782 : vector<1x1x128xf32> to vector<1x128xf32>
    %c0_383 = arith.constant 0 : index
    %c10_384 = arith.constant 10 : index
    %c0_385 = arith.constant 0 : index
    %784 = vector.load %arg4[%c0_383, %c10_384, %c0_385] : memref<1x18x128xf32, #tpu.memory_space<vmem>>, vector<1x1x128xf32>
    %785 = vector.shape_cast %784 : vector<1x1x128xf32> to vector<1x128xf32>
    %786 = vector.broadcast %779 : vector<1x128xf32> to vector<16x128xf32>
    %787 = arith.mulf %786, %13 : vector<16x128xf32>
    %788 = arith.addf %768, %787 : vector<16x128xf32>
    %789 = vector.broadcast %781 : vector<1x128xf32> to vector<16x128xf32>
    %790 = arith.mulf %789, %15 : vector<16x128xf32>
    %791 = arith.addf %788, %790 : vector<16x128xf32>
    %792 = vector.broadcast %783 : vector<1x128xf32> to vector<16x128xf32>
    %793 = arith.mulf %792, %17 : vector<16x128xf32>
    %794 = arith.addf %791, %793 : vector<16x128xf32>
    %795 = vector.broadcast %781 : vector<1x128xf32> to vector<16x128xf32>
    %796 = arith.mulf %795, %13 : vector<16x128xf32>
    %797 = arith.addf %777, %796 : vector<16x128xf32>
    %798 = vector.broadcast %783 : vector<1x128xf32> to vector<16x128xf32>
    %799 = arith.mulf %798, %15 : vector<16x128xf32>
    %800 = arith.addf %797, %799 : vector<16x128xf32>
    %801 = vector.broadcast %785 : vector<1x128xf32> to vector<16x128xf32>
    %802 = arith.mulf %801, %17 : vector<16x128xf32>
    %803 = arith.addf %800, %802 : vector<16x128xf32>
    %804 = arith.addf %794, %18 : vector<16x128xf32>
    %cst_386 = arith.constant 0.000000e+00 : f32
    %805 = vector.broadcast %cst_386 : f32 to vector<16x128xf32>
    %806 = arith.maximumf %804, %805 : vector<16x128xf32>
    %807 = arith.addf %803, %18 : vector<16x128xf32>
    %cst_387 = arith.constant 0.000000e+00 : f32
    %808 = vector.broadcast %cst_387 : f32 to vector<16x128xf32>
    %809 = arith.maximumf %807, %808 : vector<16x128xf32>
    %810 = arith.maximumf %806, %809 : vector<16x128xf32>
    %cst_388 = arith.constant 0.000000e+00 : f32
    %811 = vector.broadcast %cst_388 : f32 to vector<16x128xf32>
    %cst_389 = arith.constant 0.000000e+00 : f32
    %812 = vector.broadcast %cst_389 : f32 to vector<16x128xf32>
    %c0_390 = arith.constant 0 : index
    %c9_391 = arith.constant 9 : index
    %c0_392 = arith.constant 0 : index
    %813 = vector.load %arg1[%c0_390, %c9_391, %c0_392] : memref<1x18x128xf32, #tpu.memory_space<vmem>>, vector<1x1x128xf32>
    %814 = vector.shape_cast %813 : vector<1x1x128xf32> to vector<1x128xf32>
    %c0_393 = arith.constant 0 : index
    %c9_394 = arith.constant 9 : index
    %c0_395 = arith.constant 0 : index
    %815 = vector.load %arg2[%c0_393, %c9_394, %c0_395] : memref<1x18x128xf32, #tpu.memory_space<vmem>>, vector<1x1x128xf32>
    %816 = vector.shape_cast %815 : vector<1x1x128xf32> to vector<1x128xf32>
    %c0_396 = arith.constant 0 : index
    %c9_397 = arith.constant 9 : index
    %c0_398 = arith.constant 0 : index
    %817 = vector.load %arg3[%c0_396, %c9_397, %c0_398] : memref<1x18x128xf32, #tpu.memory_space<vmem>>, vector<1x1x128xf32>
    %818 = vector.shape_cast %817 : vector<1x1x128xf32> to vector<1x128xf32>
    %c0_399 = arith.constant 0 : index
    %c9_400 = arith.constant 9 : index
    %c0_401 = arith.constant 0 : index
    %819 = vector.load %arg4[%c0_399, %c9_400, %c0_401] : memref<1x18x128xf32, #tpu.memory_space<vmem>>, vector<1x1x128xf32>
    %820 = vector.shape_cast %819 : vector<1x1x128xf32> to vector<1x128xf32>
    %821 = vector.broadcast %814 : vector<1x128xf32> to vector<16x128xf32>
    %822 = arith.mulf %821, %1 : vector<16x128xf32>
    %823 = arith.addf %811, %822 : vector<16x128xf32>
    %824 = vector.broadcast %816 : vector<1x128xf32> to vector<16x128xf32>
    %825 = arith.mulf %824, %3 : vector<16x128xf32>
    %826 = arith.addf %823, %825 : vector<16x128xf32>
    %827 = vector.broadcast %818 : vector<1x128xf32> to vector<16x128xf32>
    %828 = arith.mulf %827, %5 : vector<16x128xf32>
    %829 = arith.addf %826, %828 : vector<16x128xf32>
    %830 = vector.broadcast %816 : vector<1x128xf32> to vector<16x128xf32>
    %831 = arith.mulf %830, %1 : vector<16x128xf32>
    %832 = arith.addf %812, %831 : vector<16x128xf32>
    %833 = vector.broadcast %818 : vector<1x128xf32> to vector<16x128xf32>
    %834 = arith.mulf %833, %3 : vector<16x128xf32>
    %835 = arith.addf %832, %834 : vector<16x128xf32>
    %836 = vector.broadcast %820 : vector<1x128xf32> to vector<16x128xf32>
    %837 = arith.mulf %836, %5 : vector<16x128xf32>
    %838 = arith.addf %835, %837 : vector<16x128xf32>
    %c0_402 = arith.constant 0 : index
    %c10_403 = arith.constant 10 : index
    %c0_404 = arith.constant 0 : index
    %839 = vector.load %arg1[%c0_402, %c10_403, %c0_404] : memref<1x18x128xf32, #tpu.memory_space<vmem>>, vector<1x1x128xf32>
    %840 = vector.shape_cast %839 : vector<1x1x128xf32> to vector<1x128xf32>
    %c0_405 = arith.constant 0 : index
    %c10_406 = arith.constant 10 : index
    %c0_407 = arith.constant 0 : index
    %841 = vector.load %arg2[%c0_405, %c10_406, %c0_407] : memref<1x18x128xf32, #tpu.memory_space<vmem>>, vector<1x1x128xf32>
    %842 = vector.shape_cast %841 : vector<1x1x128xf32> to vector<1x128xf32>
    %c0_408 = arith.constant 0 : index
    %c10_409 = arith.constant 10 : index
    %c0_410 = arith.constant 0 : index
    %843 = vector.load %arg3[%c0_408, %c10_409, %c0_410] : memref<1x18x128xf32, #tpu.memory_space<vmem>>, vector<1x1x128xf32>
    %844 = vector.shape_cast %843 : vector<1x1x128xf32> to vector<1x128xf32>
    %c0_411 = arith.constant 0 : index
    %c10_412 = arith.constant 10 : index
    %c0_413 = arith.constant 0 : index
    %845 = vector.load %arg4[%c0_411, %c10_412, %c0_413] : memref<1x18x128xf32, #tpu.memory_space<vmem>>, vector<1x1x128xf32>
    %846 = vector.shape_cast %845 : vector<1x1x128xf32> to vector<1x128xf32>
    %847 = vector.broadcast %840 : vector<1x128xf32> to vector<16x128xf32>
    %848 = arith.mulf %847, %7 : vector<16x128xf32>
    %849 = arith.addf %829, %848 : vector<16x128xf32>
    %850 = vector.broadcast %842 : vector<1x128xf32> to vector<16x128xf32>
    %851 = arith.mulf %850, %9 : vector<16x128xf32>
    %852 = arith.addf %849, %851 : vector<16x128xf32>
    %853 = vector.broadcast %844 : vector<1x128xf32> to vector<16x128xf32>
    %854 = arith.mulf %853, %11 : vector<16x128xf32>
    %855 = arith.addf %852, %854 : vector<16x128xf32>
    %856 = vector.broadcast %842 : vector<1x128xf32> to vector<16x128xf32>
    %857 = arith.mulf %856, %7 : vector<16x128xf32>
    %858 = arith.addf %838, %857 : vector<16x128xf32>
    %859 = vector.broadcast %844 : vector<1x128xf32> to vector<16x128xf32>
    %860 = arith.mulf %859, %9 : vector<16x128xf32>
    %861 = arith.addf %858, %860 : vector<16x128xf32>
    %862 = vector.broadcast %846 : vector<1x128xf32> to vector<16x128xf32>
    %863 = arith.mulf %862, %11 : vector<16x128xf32>
    %864 = arith.addf %861, %863 : vector<16x128xf32>
    %c0_414 = arith.constant 0 : index
    %c11 = arith.constant 11 : index
    %c0_415 = arith.constant 0 : index
    %865 = vector.load %arg1[%c0_414, %c11, %c0_415] : memref<1x18x128xf32, #tpu.memory_space<vmem>>, vector<1x1x128xf32>
    %866 = vector.shape_cast %865 : vector<1x1x128xf32> to vector<1x128xf32>
    %c0_416 = arith.constant 0 : index
    %c11_417 = arith.constant 11 : index
    %c0_418 = arith.constant 0 : index
    %867 = vector.load %arg2[%c0_416, %c11_417, %c0_418] : memref<1x18x128xf32, #tpu.memory_space<vmem>>, vector<1x1x128xf32>
    %868 = vector.shape_cast %867 : vector<1x1x128xf32> to vector<1x128xf32>
    %c0_419 = arith.constant 0 : index
    %c11_420 = arith.constant 11 : index
    %c0_421 = arith.constant 0 : index
    %869 = vector.load %arg3[%c0_419, %c11_420, %c0_421] : memref<1x18x128xf32, #tpu.memory_space<vmem>>, vector<1x1x128xf32>
    %870 = vector.shape_cast %869 : vector<1x1x128xf32> to vector<1x128xf32>
    %c0_422 = arith.constant 0 : index
    %c11_423 = arith.constant 11 : index
    %c0_424 = arith.constant 0 : index
    %871 = vector.load %arg4[%c0_422, %c11_423, %c0_424] : memref<1x18x128xf32, #tpu.memory_space<vmem>>, vector<1x1x128xf32>
    %872 = vector.shape_cast %871 : vector<1x1x128xf32> to vector<1x128xf32>
    %873 = vector.broadcast %866 : vector<1x128xf32> to vector<16x128xf32>
    %874 = arith.mulf %873, %13 : vector<16x128xf32>
    %875 = arith.addf %855, %874 : vector<16x128xf32>
    %876 = vector.broadcast %868 : vector<1x128xf32> to vector<16x128xf32>
    %877 = arith.mulf %876, %15 : vector<16x128xf32>
    %878 = arith.addf %875, %877 : vector<16x128xf32>
    %879 = vector.broadcast %870 : vector<1x128xf32> to vector<16x128xf32>
    %880 = arith.mulf %879, %17 : vector<16x128xf32>
    %881 = arith.addf %878, %880 : vector<16x128xf32>
    %882 = vector.broadcast %868 : vector<1x128xf32> to vector<16x128xf32>
    %883 = arith.mulf %882, %13 : vector<16x128xf32>
    %884 = arith.addf %864, %883 : vector<16x128xf32>
    %885 = vector.broadcast %870 : vector<1x128xf32> to vector<16x128xf32>
    %886 = arith.mulf %885, %15 : vector<16x128xf32>
    %887 = arith.addf %884, %886 : vector<16x128xf32>
    %888 = vector.broadcast %872 : vector<1x128xf32> to vector<16x128xf32>
    %889 = arith.mulf %888, %17 : vector<16x128xf32>
    %890 = arith.addf %887, %889 : vector<16x128xf32>
    %891 = arith.addf %881, %18 : vector<16x128xf32>
    %cst_425 = arith.constant 0.000000e+00 : f32
    %892 = vector.broadcast %cst_425 : f32 to vector<16x128xf32>
    %893 = arith.maximumf %891, %892 : vector<16x128xf32>
    %894 = arith.addf %890, %18 : vector<16x128xf32>
    %cst_426 = arith.constant 0.000000e+00 : f32
    %895 = vector.broadcast %cst_426 : f32 to vector<16x128xf32>
    %896 = arith.maximumf %894, %895 : vector<16x128xf32>
    %897 = arith.maximumf %893, %896 : vector<16x128xf32>
    %898 = arith.maximumf %810, %897 : vector<16x128xf32>
    %cst_427 = arith.constant 0.000000e+00 : f32
    %899 = vector.broadcast %cst_427 : f32 to vector<16x128xf32>
    %cst_428 = arith.constant 0.000000e+00 : f32
    %900 = vector.broadcast %cst_428 : f32 to vector<16x128xf32>
    %c0_429 = arith.constant 0 : index
    %c10_430 = arith.constant 10 : index
    %c0_431 = arith.constant 0 : index
    %901 = vector.load %arg1[%c0_429, %c10_430, %c0_431] : memref<1x18x128xf32, #tpu.memory_space<vmem>>, vector<1x1x128xf32>
    %902 = vector.shape_cast %901 : vector<1x1x128xf32> to vector<1x128xf32>
    %c0_432 = arith.constant 0 : index
    %c10_433 = arith.constant 10 : index
    %c0_434 = arith.constant 0 : index
    %903 = vector.load %arg2[%c0_432, %c10_433, %c0_434] : memref<1x18x128xf32, #tpu.memory_space<vmem>>, vector<1x1x128xf32>
    %904 = vector.shape_cast %903 : vector<1x1x128xf32> to vector<1x128xf32>
    %c0_435 = arith.constant 0 : index
    %c10_436 = arith.constant 10 : index
    %c0_437 = arith.constant 0 : index
    %905 = vector.load %arg3[%c0_435, %c10_436, %c0_437] : memref<1x18x128xf32, #tpu.memory_space<vmem>>, vector<1x1x128xf32>
    %906 = vector.shape_cast %905 : vector<1x1x128xf32> to vector<1x128xf32>
    %c0_438 = arith.constant 0 : index
    %c10_439 = arith.constant 10 : index
    %c0_440 = arith.constant 0 : index
    %907 = vector.load %arg4[%c0_438, %c10_439, %c0_440] : memref<1x18x128xf32, #tpu.memory_space<vmem>>, vector<1x1x128xf32>
    %908 = vector.shape_cast %907 : vector<1x1x128xf32> to vector<1x128xf32>
    %909 = vector.broadcast %902 : vector<1x128xf32> to vector<16x128xf32>
    %910 = arith.mulf %909, %1 : vector<16x128xf32>
    %911 = arith.addf %899, %910 : vector<16x128xf32>
    %912 = vector.broadcast %904 : vector<1x128xf32> to vector<16x128xf32>
    %913 = arith.mulf %912, %3 : vector<16x128xf32>
    %914 = arith.addf %911, %913 : vector<16x128xf32>
    %915 = vector.broadcast %906 : vector<1x128xf32> to vector<16x128xf32>
    %916 = arith.mulf %915, %5 : vector<16x128xf32>
    %917 = arith.addf %914, %916 : vector<16x128xf32>
    %918 = vector.broadcast %904 : vector<1x128xf32> to vector<16x128xf32>
    %919 = arith.mulf %918, %1 : vector<16x128xf32>
    %920 = arith.addf %900, %919 : vector<16x128xf32>
    %921 = vector.broadcast %906 : vector<1x128xf32> to vector<16x128xf32>
    %922 = arith.mulf %921, %3 : vector<16x128xf32>
    %923 = arith.addf %920, %922 : vector<16x128xf32>
    %924 = vector.broadcast %908 : vector<1x128xf32> to vector<16x128xf32>
    %925 = arith.mulf %924, %5 : vector<16x128xf32>
    %926 = arith.addf %923, %925 : vector<16x128xf32>
    %c0_441 = arith.constant 0 : index
    %c11_442 = arith.constant 11 : index
    %c0_443 = arith.constant 0 : index
    %927 = vector.load %arg1[%c0_441, %c11_442, %c0_443] : memref<1x18x128xf32, #tpu.memory_space<vmem>>, vector<1x1x128xf32>
    %928 = vector.shape_cast %927 : vector<1x1x128xf32> to vector<1x128xf32>
    %c0_444 = arith.constant 0 : index
    %c11_445 = arith.constant 11 : index
    %c0_446 = arith.constant 0 : index
    %929 = vector.load %arg2[%c0_444, %c11_445, %c0_446] : memref<1x18x128xf32, #tpu.memory_space<vmem>>, vector<1x1x128xf32>
    %930 = vector.shape_cast %929 : vector<1x1x128xf32> to vector<1x128xf32>
    %c0_447 = arith.constant 0 : index
    %c11_448 = arith.constant 11 : index
    %c0_449 = arith.constant 0 : index
    %931 = vector.load %arg3[%c0_447, %c11_448, %c0_449] : memref<1x18x128xf32, #tpu.memory_space<vmem>>, vector<1x1x128xf32>
    %932 = vector.shape_cast %931 : vector<1x1x128xf32> to vector<1x128xf32>
    %c0_450 = arith.constant 0 : index
    %c11_451 = arith.constant 11 : index
    %c0_452 = arith.constant 0 : index
    %933 = vector.load %arg4[%c0_450, %c11_451, %c0_452] : memref<1x18x128xf32, #tpu.memory_space<vmem>>, vector<1x1x128xf32>
    %934 = vector.shape_cast %933 : vector<1x1x128xf32> to vector<1x128xf32>
    %935 = vector.broadcast %928 : vector<1x128xf32> to vector<16x128xf32>
    %936 = arith.mulf %935, %7 : vector<16x128xf32>
    %937 = arith.addf %917, %936 : vector<16x128xf32>
    %938 = vector.broadcast %930 : vector<1x128xf32> to vector<16x128xf32>
    %939 = arith.mulf %938, %9 : vector<16x128xf32>
    %940 = arith.addf %937, %939 : vector<16x128xf32>
    %941 = vector.broadcast %932 : vector<1x128xf32> to vector<16x128xf32>
    %942 = arith.mulf %941, %11 : vector<16x128xf32>
    %943 = arith.addf %940, %942 : vector<16x128xf32>
    %944 = vector.broadcast %930 : vector<1x128xf32> to vector<16x128xf32>
    %945 = arith.mulf %944, %7 : vector<16x128xf32>
    %946 = arith.addf %926, %945 : vector<16x128xf32>
    %947 = vector.broadcast %932 : vector<1x128xf32> to vector<16x128xf32>
    %948 = arith.mulf %947, %9 : vector<16x128xf32>
    %949 = arith.addf %946, %948 : vector<16x128xf32>
    %950 = vector.broadcast %934 : vector<1x128xf32> to vector<16x128xf32>
    %951 = arith.mulf %950, %11 : vector<16x128xf32>
    %952 = arith.addf %949, %951 : vector<16x128xf32>
    %c0_453 = arith.constant 0 : index
    %c12 = arith.constant 12 : index
    %c0_454 = arith.constant 0 : index
    %953 = vector.load %arg1[%c0_453, %c12, %c0_454] : memref<1x18x128xf32, #tpu.memory_space<vmem>>, vector<1x1x128xf32>
    %954 = vector.shape_cast %953 : vector<1x1x128xf32> to vector<1x128xf32>
    %c0_455 = arith.constant 0 : index
    %c12_456 = arith.constant 12 : index
    %c0_457 = arith.constant 0 : index
    %955 = vector.load %arg2[%c0_455, %c12_456, %c0_457] : memref<1x18x128xf32, #tpu.memory_space<vmem>>, vector<1x1x128xf32>
    %956 = vector.shape_cast %955 : vector<1x1x128xf32> to vector<1x128xf32>
    %c0_458 = arith.constant 0 : index
    %c12_459 = arith.constant 12 : index
    %c0_460 = arith.constant 0 : index
    %957 = vector.load %arg3[%c0_458, %c12_459, %c0_460] : memref<1x18x128xf32, #tpu.memory_space<vmem>>, vector<1x1x128xf32>
    %958 = vector.shape_cast %957 : vector<1x1x128xf32> to vector<1x128xf32>
    %c0_461 = arith.constant 0 : index
    %c12_462 = arith.constant 12 : index
    %c0_463 = arith.constant 0 : index
    %959 = vector.load %arg4[%c0_461, %c12_462, %c0_463] : memref<1x18x128xf32, #tpu.memory_space<vmem>>, vector<1x1x128xf32>
    %960 = vector.shape_cast %959 : vector<1x1x128xf32> to vector<1x128xf32>
    %961 = vector.broadcast %954 : vector<1x128xf32> to vector<16x128xf32>
    %962 = arith.mulf %961, %13 : vector<16x128xf32>
    %963 = arith.addf %943, %962 : vector<16x128xf32>
    %964 = vector.broadcast %956 : vector<1x128xf32> to vector<16x128xf32>
    %965 = arith.mulf %964, %15 : vector<16x128xf32>
    %966 = arith.addf %963, %965 : vector<16x128xf32>
    %967 = vector.broadcast %958 : vector<1x128xf32> to vector<16x128xf32>
    %968 = arith.mulf %967, %17 : vector<16x128xf32>
    %969 = arith.addf %966, %968 : vector<16x128xf32>
    %970 = vector.broadcast %956 : vector<1x128xf32> to vector<16x128xf32>
    %971 = arith.mulf %970, %13 : vector<16x128xf32>
    %972 = arith.addf %952, %971 : vector<16x128xf32>
    %973 = vector.broadcast %958 : vector<1x128xf32> to vector<16x128xf32>
    %974 = arith.mulf %973, %15 : vector<16x128xf32>
    %975 = arith.addf %972, %974 : vector<16x128xf32>
    %976 = vector.broadcast %960 : vector<1x128xf32> to vector<16x128xf32>
    %977 = arith.mulf %976, %17 : vector<16x128xf32>
    %978 = arith.addf %975, %977 : vector<16x128xf32>
    %979 = arith.addf %969, %18 : vector<16x128xf32>
    %cst_464 = arith.constant 0.000000e+00 : f32
    %980 = vector.broadcast %cst_464 : f32 to vector<16x128xf32>
    %981 = arith.maximumf %979, %980 : vector<16x128xf32>
    %982 = arith.addf %978, %18 : vector<16x128xf32>
    %cst_465 = arith.constant 0.000000e+00 : f32
    %983 = vector.broadcast %cst_465 : f32 to vector<16x128xf32>
    %984 = arith.maximumf %982, %983 : vector<16x128xf32>
    %985 = arith.maximumf %981, %984 : vector<16x128xf32>
    %cst_466 = arith.constant 0.000000e+00 : f32
    %986 = vector.broadcast %cst_466 : f32 to vector<16x128xf32>
    %cst_467 = arith.constant 0.000000e+00 : f32
    %987 = vector.broadcast %cst_467 : f32 to vector<16x128xf32>
    %c0_468 = arith.constant 0 : index
    %c11_469 = arith.constant 11 : index
    %c0_470 = arith.constant 0 : index
    %988 = vector.load %arg1[%c0_468, %c11_469, %c0_470] : memref<1x18x128xf32, #tpu.memory_space<vmem>>, vector<1x1x128xf32>
    %989 = vector.shape_cast %988 : vector<1x1x128xf32> to vector<1x128xf32>
    %c0_471 = arith.constant 0 : index
    %c11_472 = arith.constant 11 : index
    %c0_473 = arith.constant 0 : index
    %990 = vector.load %arg2[%c0_471, %c11_472, %c0_473] : memref<1x18x128xf32, #tpu.memory_space<vmem>>, vector<1x1x128xf32>
    %991 = vector.shape_cast %990 : vector<1x1x128xf32> to vector<1x128xf32>
    %c0_474 = arith.constant 0 : index
    %c11_475 = arith.constant 11 : index
    %c0_476 = arith.constant 0 : index
    %992 = vector.load %arg3[%c0_474, %c11_475, %c0_476] : memref<1x18x128xf32, #tpu.memory_space<vmem>>, vector<1x1x128xf32>
    %993 = vector.shape_cast %992 : vector<1x1x128xf32> to vector<1x128xf32>
    %c0_477 = arith.constant 0 : index
    %c11_478 = arith.constant 11 : index
    %c0_479 = arith.constant 0 : index
    %994 = vector.load %arg4[%c0_477, %c11_478, %c0_479] : memref<1x18x128xf32, #tpu.memory_space<vmem>>, vector<1x1x128xf32>
    %995 = vector.shape_cast %994 : vector<1x1x128xf32> to vector<1x128xf32>
    %996 = vector.broadcast %989 : vector<1x128xf32> to vector<16x128xf32>
    %997 = arith.mulf %996, %1 : vector<16x128xf32>
    %998 = arith.addf %986, %997 : vector<16x128xf32>
    %999 = vector.broadcast %991 : vector<1x128xf32> to vector<16x128xf32>
    %1000 = arith.mulf %999, %3 : vector<16x128xf32>
    %1001 = arith.addf %998, %1000 : vector<16x128xf32>
    %1002 = vector.broadcast %993 : vector<1x128xf32> to vector<16x128xf32>
    %1003 = arith.mulf %1002, %5 : vector<16x128xf32>
    %1004 = arith.addf %1001, %1003 : vector<16x128xf32>
    %1005 = vector.broadcast %991 : vector<1x128xf32> to vector<16x128xf32>
    %1006 = arith.mulf %1005, %1 : vector<16x128xf32>
    %1007 = arith.addf %987, %1006 : vector<16x128xf32>
    %1008 = vector.broadcast %993 : vector<1x128xf32> to vector<16x128xf32>
    %1009 = arith.mulf %1008, %3 : vector<16x128xf32>
    %1010 = arith.addf %1007, %1009 : vector<16x128xf32>
    %1011 = vector.broadcast %995 : vector<1x128xf32> to vector<16x128xf32>
    %1012 = arith.mulf %1011, %5 : vector<16x128xf32>
    %1013 = arith.addf %1010, %1012 : vector<16x128xf32>
    %c0_480 = arith.constant 0 : index
    %c12_481 = arith.constant 12 : index
    %c0_482 = arith.constant 0 : index
    %1014 = vector.load %arg1[%c0_480, %c12_481, %c0_482] : memref<1x18x128xf32, #tpu.memory_space<vmem>>, vector<1x1x128xf32>
    %1015 = vector.shape_cast %1014 : vector<1x1x128xf32> to vector<1x128xf32>
    %c0_483 = arith.constant 0 : index
    %c12_484 = arith.constant 12 : index
    %c0_485 = arith.constant 0 : index
    %1016 = vector.load %arg2[%c0_483, %c12_484, %c0_485] : memref<1x18x128xf32, #tpu.memory_space<vmem>>, vector<1x1x128xf32>
    %1017 = vector.shape_cast %1016 : vector<1x1x128xf32> to vector<1x128xf32>
    %c0_486 = arith.constant 0 : index
    %c12_487 = arith.constant 12 : index
    %c0_488 = arith.constant 0 : index
    %1018 = vector.load %arg3[%c0_486, %c12_487, %c0_488] : memref<1x18x128xf32, #tpu.memory_space<vmem>>, vector<1x1x128xf32>
    %1019 = vector.shape_cast %1018 : vector<1x1x128xf32> to vector<1x128xf32>
    %c0_489 = arith.constant 0 : index
    %c12_490 = arith.constant 12 : index
    %c0_491 = arith.constant 0 : index
    %1020 = vector.load %arg4[%c0_489, %c12_490, %c0_491] : memref<1x18x128xf32, #tpu.memory_space<vmem>>, vector<1x1x128xf32>
    %1021 = vector.shape_cast %1020 : vector<1x1x128xf32> to vector<1x128xf32>
    %1022 = vector.broadcast %1015 : vector<1x128xf32> to vector<16x128xf32>
    %1023 = arith.mulf %1022, %7 : vector<16x128xf32>
    %1024 = arith.addf %1004, %1023 : vector<16x128xf32>
    %1025 = vector.broadcast %1017 : vector<1x128xf32> to vector<16x128xf32>
    %1026 = arith.mulf %1025, %9 : vector<16x128xf32>
    %1027 = arith.addf %1024, %1026 : vector<16x128xf32>
    %1028 = vector.broadcast %1019 : vector<1x128xf32> to vector<16x128xf32>
    %1029 = arith.mulf %1028, %11 : vector<16x128xf32>
    %1030 = arith.addf %1027, %1029 : vector<16x128xf32>
    %1031 = vector.broadcast %1017 : vector<1x128xf32> to vector<16x128xf32>
    %1032 = arith.mulf %1031, %7 : vector<16x128xf32>
    %1033 = arith.addf %1013, %1032 : vector<16x128xf32>
    %1034 = vector.broadcast %1019 : vector<1x128xf32> to vector<16x128xf32>
    %1035 = arith.mulf %1034, %9 : vector<16x128xf32>
    %1036 = arith.addf %1033, %1035 : vector<16x128xf32>
    %1037 = vector.broadcast %1021 : vector<1x128xf32> to vector<16x128xf32>
    %1038 = arith.mulf %1037, %11 : vector<16x128xf32>
    %1039 = arith.addf %1036, %1038 : vector<16x128xf32>
    %c0_492 = arith.constant 0 : index
    %c13 = arith.constant 13 : index
    %c0_493 = arith.constant 0 : index
    %1040 = vector.load %arg1[%c0_492, %c13, %c0_493] : memref<1x18x128xf32, #tpu.memory_space<vmem>>, vector<1x1x128xf32>
    %1041 = vector.shape_cast %1040 : vector<1x1x128xf32> to vector<1x128xf32>
    %c0_494 = arith.constant 0 : index
    %c13_495 = arith.constant 13 : index
    %c0_496 = arith.constant 0 : index
    %1042 = vector.load %arg2[%c0_494, %c13_495, %c0_496] : memref<1x18x128xf32, #tpu.memory_space<vmem>>, vector<1x1x128xf32>
    %1043 = vector.shape_cast %1042 : vector<1x1x128xf32> to vector<1x128xf32>
    %c0_497 = arith.constant 0 : index
    %c13_498 = arith.constant 13 : index
    %c0_499 = arith.constant 0 : index
    %1044 = vector.load %arg3[%c0_497, %c13_498, %c0_499] : memref<1x18x128xf32, #tpu.memory_space<vmem>>, vector<1x1x128xf32>
    %1045 = vector.shape_cast %1044 : vector<1x1x128xf32> to vector<1x128xf32>
    %c0_500 = arith.constant 0 : index
    %c13_501 = arith.constant 13 : index
    %c0_502 = arith.constant 0 : index
    %1046 = vector.load %arg4[%c0_500, %c13_501, %c0_502] : memref<1x18x128xf32, #tpu.memory_space<vmem>>, vector<1x1x128xf32>
    %1047 = vector.shape_cast %1046 : vector<1x1x128xf32> to vector<1x128xf32>
    %1048 = vector.broadcast %1041 : vector<1x128xf32> to vector<16x128xf32>
    %1049 = arith.mulf %1048, %13 : vector<16x128xf32>
    %1050 = arith.addf %1030, %1049 : vector<16x128xf32>
    %1051 = vector.broadcast %1043 : vector<1x128xf32> to vector<16x128xf32>
    %1052 = arith.mulf %1051, %15 : vector<16x128xf32>
    %1053 = arith.addf %1050, %1052 : vector<16x128xf32>
    %1054 = vector.broadcast %1045 : vector<1x128xf32> to vector<16x128xf32>
    %1055 = arith.mulf %1054, %17 : vector<16x128xf32>
    %1056 = arith.addf %1053, %1055 : vector<16x128xf32>
    %1057 = vector.broadcast %1043 : vector<1x128xf32> to vector<16x128xf32>
    %1058 = arith.mulf %1057, %13 : vector<16x128xf32>
    %1059 = arith.addf %1039, %1058 : vector<16x128xf32>
    %1060 = vector.broadcast %1045 : vector<1x128xf32> to vector<16x128xf32>
    %1061 = arith.mulf %1060, %15 : vector<16x128xf32>
    %1062 = arith.addf %1059, %1061 : vector<16x128xf32>
    %1063 = vector.broadcast %1047 : vector<1x128xf32> to vector<16x128xf32>
    %1064 = arith.mulf %1063, %17 : vector<16x128xf32>
    %1065 = arith.addf %1062, %1064 : vector<16x128xf32>
    %1066 = arith.addf %1056, %18 : vector<16x128xf32>
    %cst_503 = arith.constant 0.000000e+00 : f32
    %1067 = vector.broadcast %cst_503 : f32 to vector<16x128xf32>
    %1068 = arith.maximumf %1066, %1067 : vector<16x128xf32>
    %1069 = arith.addf %1065, %18 : vector<16x128xf32>
    %cst_504 = arith.constant 0.000000e+00 : f32
    %1070 = vector.broadcast %cst_504 : f32 to vector<16x128xf32>
    %1071 = arith.maximumf %1069, %1070 : vector<16x128xf32>
    %1072 = arith.maximumf %1068, %1071 : vector<16x128xf32>
    %1073 = arith.maximumf %985, %1072 : vector<16x128xf32>
    %cst_505 = arith.constant 0.000000e+00 : f32
    %1074 = vector.broadcast %cst_505 : f32 to vector<16x128xf32>
    %cst_506 = arith.constant 0.000000e+00 : f32
    %1075 = vector.broadcast %cst_506 : f32 to vector<16x128xf32>
    %c0_507 = arith.constant 0 : index
    %c12_508 = arith.constant 12 : index
    %c0_509 = arith.constant 0 : index
    %1076 = vector.load %arg1[%c0_507, %c12_508, %c0_509] : memref<1x18x128xf32, #tpu.memory_space<vmem>>, vector<1x1x128xf32>
    %1077 = vector.shape_cast %1076 : vector<1x1x128xf32> to vector<1x128xf32>
    %c0_510 = arith.constant 0 : index
    %c12_511 = arith.constant 12 : index
    %c0_512 = arith.constant 0 : index
    %1078 = vector.load %arg2[%c0_510, %c12_511, %c0_512] : memref<1x18x128xf32, #tpu.memory_space<vmem>>, vector<1x1x128xf32>
    %1079 = vector.shape_cast %1078 : vector<1x1x128xf32> to vector<1x128xf32>
    %c0_513 = arith.constant 0 : index
    %c12_514 = arith.constant 12 : index
    %c0_515 = arith.constant 0 : index
    %1080 = vector.load %arg3[%c0_513, %c12_514, %c0_515] : memref<1x18x128xf32, #tpu.memory_space<vmem>>, vector<1x1x128xf32>
    %1081 = vector.shape_cast %1080 : vector<1x1x128xf32> to vector<1x128xf32>
    %c0_516 = arith.constant 0 : index
    %c12_517 = arith.constant 12 : index
    %c0_518 = arith.constant 0 : index
    %1082 = vector.load %arg4[%c0_516, %c12_517, %c0_518] : memref<1x18x128xf32, #tpu.memory_space<vmem>>, vector<1x1x128xf32>
    %1083 = vector.shape_cast %1082 : vector<1x1x128xf32> to vector<1x128xf32>
    %1084 = vector.broadcast %1077 : vector<1x128xf32> to vector<16x128xf32>
    %1085 = arith.mulf %1084, %1 : vector<16x128xf32>
    %1086 = arith.addf %1074, %1085 : vector<16x128xf32>
    %1087 = vector.broadcast %1079 : vector<1x128xf32> to vector<16x128xf32>
    %1088 = arith.mulf %1087, %3 : vector<16x128xf32>
    %1089 = arith.addf %1086, %1088 : vector<16x128xf32>
    %1090 = vector.broadcast %1081 : vector<1x128xf32> to vector<16x128xf32>
    %1091 = arith.mulf %1090, %5 : vector<16x128xf32>
    %1092 = arith.addf %1089, %1091 : vector<16x128xf32>
    %1093 = vector.broadcast %1079 : vector<1x128xf32> to vector<16x128xf32>
    %1094 = arith.mulf %1093, %1 : vector<16x128xf32>
    %1095 = arith.addf %1075, %1094 : vector<16x128xf32>
    %1096 = vector.broadcast %1081 : vector<1x128xf32> to vector<16x128xf32>
    %1097 = arith.mulf %1096, %3 : vector<16x128xf32>
    %1098 = arith.addf %1095, %1097 : vector<16x128xf32>
    %1099 = vector.broadcast %1083 : vector<1x128xf32> to vector<16x128xf32>
    %1100 = arith.mulf %1099, %5 : vector<16x128xf32>
    %1101 = arith.addf %1098, %1100 : vector<16x128xf32>
    %c0_519 = arith.constant 0 : index
    %c13_520 = arith.constant 13 : index
    %c0_521 = arith.constant 0 : index
    %1102 = vector.load %arg1[%c0_519, %c13_520, %c0_521] : memref<1x18x128xf32, #tpu.memory_space<vmem>>, vector<1x1x128xf32>
    %1103 = vector.shape_cast %1102 : vector<1x1x128xf32> to vector<1x128xf32>
    %c0_522 = arith.constant 0 : index
    %c13_523 = arith.constant 13 : index
    %c0_524 = arith.constant 0 : index
    %1104 = vector.load %arg2[%c0_522, %c13_523, %c0_524] : memref<1x18x128xf32, #tpu.memory_space<vmem>>, vector<1x1x128xf32>
    %1105 = vector.shape_cast %1104 : vector<1x1x128xf32> to vector<1x128xf32>
    %c0_525 = arith.constant 0 : index
    %c13_526 = arith.constant 13 : index
    %c0_527 = arith.constant 0 : index
    %1106 = vector.load %arg3[%c0_525, %c13_526, %c0_527] : memref<1x18x128xf32, #tpu.memory_space<vmem>>, vector<1x1x128xf32>
    %1107 = vector.shape_cast %1106 : vector<1x1x128xf32> to vector<1x128xf32>
    %c0_528 = arith.constant 0 : index
    %c13_529 = arith.constant 13 : index
    %c0_530 = arith.constant 0 : index
    %1108 = vector.load %arg4[%c0_528, %c13_529, %c0_530] : memref<1x18x128xf32, #tpu.memory_space<vmem>>, vector<1x1x128xf32>
    %1109 = vector.shape_cast %1108 : vector<1x1x128xf32> to vector<1x128xf32>
    %1110 = vector.broadcast %1103 : vector<1x128xf32> to vector<16x128xf32>
    %1111 = arith.mulf %1110, %7 : vector<16x128xf32>
    %1112 = arith.addf %1092, %1111 : vector<16x128xf32>
    %1113 = vector.broadcast %1105 : vector<1x128xf32> to vector<16x128xf32>
    %1114 = arith.mulf %1113, %9 : vector<16x128xf32>
    %1115 = arith.addf %1112, %1114 : vector<16x128xf32>
    %1116 = vector.broadcast %1107 : vector<1x128xf32> to vector<16x128xf32>
    %1117 = arith.mulf %1116, %11 : vector<16x128xf32>
    %1118 = arith.addf %1115, %1117 : vector<16x128xf32>
    %1119 = vector.broadcast %1105 : vector<1x128xf32> to vector<16x128xf32>
    %1120 = arith.mulf %1119, %7 : vector<16x128xf32>
    %1121 = arith.addf %1101, %1120 : vector<16x128xf32>
    %1122 = vector.broadcast %1107 : vector<1x128xf32> to vector<16x128xf32>
    %1123 = arith.mulf %1122, %9 : vector<16x128xf32>
    %1124 = arith.addf %1121, %1123 : vector<16x128xf32>
    %1125 = vector.broadcast %1109 : vector<1x128xf32> to vector<16x128xf32>
    %1126 = arith.mulf %1125, %11 : vector<16x128xf32>
    %1127 = arith.addf %1124, %1126 : vector<16x128xf32>
    %c0_531 = arith.constant 0 : index
    %c14 = arith.constant 14 : index
    %c0_532 = arith.constant 0 : index
    %1128 = vector.load %arg1[%c0_531, %c14, %c0_532] : memref<1x18x128xf32, #tpu.memory_space<vmem>>, vector<1x1x128xf32>
    %1129 = vector.shape_cast %1128 : vector<1x1x128xf32> to vector<1x128xf32>
    %c0_533 = arith.constant 0 : index
    %c14_534 = arith.constant 14 : index
    %c0_535 = arith.constant 0 : index
    %1130 = vector.load %arg2[%c0_533, %c14_534, %c0_535] : memref<1x18x128xf32, #tpu.memory_space<vmem>>, vector<1x1x128xf32>
    %1131 = vector.shape_cast %1130 : vector<1x1x128xf32> to vector<1x128xf32>
    %c0_536 = arith.constant 0 : index
    %c14_537 = arith.constant 14 : index
    %c0_538 = arith.constant 0 : index
    %1132 = vector.load %arg3[%c0_536, %c14_537, %c0_538] : memref<1x18x128xf32, #tpu.memory_space<vmem>>, vector<1x1x128xf32>
    %1133 = vector.shape_cast %1132 : vector<1x1x128xf32> to vector<1x128xf32>
    %c0_539 = arith.constant 0 : index
    %c14_540 = arith.constant 14 : index
    %c0_541 = arith.constant 0 : index
    %1134 = vector.load %arg4[%c0_539, %c14_540, %c0_541] : memref<1x18x128xf32, #tpu.memory_space<vmem>>, vector<1x1x128xf32>
    %1135 = vector.shape_cast %1134 : vector<1x1x128xf32> to vector<1x128xf32>
    %1136 = vector.broadcast %1129 : vector<1x128xf32> to vector<16x128xf32>
    %1137 = arith.mulf %1136, %13 : vector<16x128xf32>
    %1138 = arith.addf %1118, %1137 : vector<16x128xf32>
    %1139 = vector.broadcast %1131 : vector<1x128xf32> to vector<16x128xf32>
    %1140 = arith.mulf %1139, %15 : vector<16x128xf32>
    %1141 = arith.addf %1138, %1140 : vector<16x128xf32>
    %1142 = vector.broadcast %1133 : vector<1x128xf32> to vector<16x128xf32>
    %1143 = arith.mulf %1142, %17 : vector<16x128xf32>
    %1144 = arith.addf %1141, %1143 : vector<16x128xf32>
    %1145 = vector.broadcast %1131 : vector<1x128xf32> to vector<16x128xf32>
    %1146 = arith.mulf %1145, %13 : vector<16x128xf32>
    %1147 = arith.addf %1127, %1146 : vector<16x128xf32>
    %1148 = vector.broadcast %1133 : vector<1x128xf32> to vector<16x128xf32>
    %1149 = arith.mulf %1148, %15 : vector<16x128xf32>
    %1150 = arith.addf %1147, %1149 : vector<16x128xf32>
    %1151 = vector.broadcast %1135 : vector<1x128xf32> to vector<16x128xf32>
    %1152 = arith.mulf %1151, %17 : vector<16x128xf32>
    %1153 = arith.addf %1150, %1152 : vector<16x128xf32>
    %1154 = arith.addf %1144, %18 : vector<16x128xf32>
    %cst_542 = arith.constant 0.000000e+00 : f32
    %1155 = vector.broadcast %cst_542 : f32 to vector<16x128xf32>
    %1156 = arith.maximumf %1154, %1155 : vector<16x128xf32>
    %1157 = arith.addf %1153, %18 : vector<16x128xf32>
    %cst_543 = arith.constant 0.000000e+00 : f32
    %1158 = vector.broadcast %cst_543 : f32 to vector<16x128xf32>
    %1159 = arith.maximumf %1157, %1158 : vector<16x128xf32>
    %1160 = arith.maximumf %1156, %1159 : vector<16x128xf32>
    %cst_544 = arith.constant 0.000000e+00 : f32
    %1161 = vector.broadcast %cst_544 : f32 to vector<16x128xf32>
    %cst_545 = arith.constant 0.000000e+00 : f32
    %1162 = vector.broadcast %cst_545 : f32 to vector<16x128xf32>
    %c0_546 = arith.constant 0 : index
    %c13_547 = arith.constant 13 : index
    %c0_548 = arith.constant 0 : index
    %1163 = vector.load %arg1[%c0_546, %c13_547, %c0_548] : memref<1x18x128xf32, #tpu.memory_space<vmem>>, vector<1x1x128xf32>
    %1164 = vector.shape_cast %1163 : vector<1x1x128xf32> to vector<1x128xf32>
    %c0_549 = arith.constant 0 : index
    %c13_550 = arith.constant 13 : index
    %c0_551 = arith.constant 0 : index
    %1165 = vector.load %arg2[%c0_549, %c13_550, %c0_551] : memref<1x18x128xf32, #tpu.memory_space<vmem>>, vector<1x1x128xf32>
    %1166 = vector.shape_cast %1165 : vector<1x1x128xf32> to vector<1x128xf32>
    %c0_552 = arith.constant 0 : index
    %c13_553 = arith.constant 13 : index
    %c0_554 = arith.constant 0 : index
    %1167 = vector.load %arg3[%c0_552, %c13_553, %c0_554] : memref<1x18x128xf32, #tpu.memory_space<vmem>>, vector<1x1x128xf32>
    %1168 = vector.shape_cast %1167 : vector<1x1x128xf32> to vector<1x128xf32>
    %c0_555 = arith.constant 0 : index
    %c13_556 = arith.constant 13 : index
    %c0_557 = arith.constant 0 : index
    %1169 = vector.load %arg4[%c0_555, %c13_556, %c0_557] : memref<1x18x128xf32, #tpu.memory_space<vmem>>, vector<1x1x128xf32>
    %1170 = vector.shape_cast %1169 : vector<1x1x128xf32> to vector<1x128xf32>
    %1171 = vector.broadcast %1164 : vector<1x128xf32> to vector<16x128xf32>
    %1172 = arith.mulf %1171, %1 : vector<16x128xf32>
    %1173 = arith.addf %1161, %1172 : vector<16x128xf32>
    %1174 = vector.broadcast %1166 : vector<1x128xf32> to vector<16x128xf32>
    %1175 = arith.mulf %1174, %3 : vector<16x128xf32>
    %1176 = arith.addf %1173, %1175 : vector<16x128xf32>
    %1177 = vector.broadcast %1168 : vector<1x128xf32> to vector<16x128xf32>
    %1178 = arith.mulf %1177, %5 : vector<16x128xf32>
    %1179 = arith.addf %1176, %1178 : vector<16x128xf32>
    %1180 = vector.broadcast %1166 : vector<1x128xf32> to vector<16x128xf32>
    %1181 = arith.mulf %1180, %1 : vector<16x128xf32>
    %1182 = arith.addf %1162, %1181 : vector<16x128xf32>
    %1183 = vector.broadcast %1168 : vector<1x128xf32> to vector<16x128xf32>
    %1184 = arith.mulf %1183, %3 : vector<16x128xf32>
    %1185 = arith.addf %1182, %1184 : vector<16x128xf32>
    %1186 = vector.broadcast %1170 : vector<1x128xf32> to vector<16x128xf32>
    %1187 = arith.mulf %1186, %5 : vector<16x128xf32>
    %1188 = arith.addf %1185, %1187 : vector<16x128xf32>
    %c0_558 = arith.constant 0 : index
    %c14_559 = arith.constant 14 : index
    %c0_560 = arith.constant 0 : index
    %1189 = vector.load %arg1[%c0_558, %c14_559, %c0_560] : memref<1x18x128xf32, #tpu.memory_space<vmem>>, vector<1x1x128xf32>
    %1190 = vector.shape_cast %1189 : vector<1x1x128xf32> to vector<1x128xf32>
    %c0_561 = arith.constant 0 : index
    %c14_562 = arith.constant 14 : index
    %c0_563 = arith.constant 0 : index
    %1191 = vector.load %arg2[%c0_561, %c14_562, %c0_563] : memref<1x18x128xf32, #tpu.memory_space<vmem>>, vector<1x1x128xf32>
    %1192 = vector.shape_cast %1191 : vector<1x1x128xf32> to vector<1x128xf32>
    %c0_564 = arith.constant 0 : index
    %c14_565 = arith.constant 14 : index
    %c0_566 = arith.constant 0 : index
    %1193 = vector.load %arg3[%c0_564, %c14_565, %c0_566] : memref<1x18x128xf32, #tpu.memory_space<vmem>>, vector<1x1x128xf32>
    %1194 = vector.shape_cast %1193 : vector<1x1x128xf32> to vector<1x128xf32>
    %c0_567 = arith.constant 0 : index
    %c14_568 = arith.constant 14 : index
    %c0_569 = arith.constant 0 : index
    %1195 = vector.load %arg4[%c0_567, %c14_568, %c0_569] : memref<1x18x128xf32, #tpu.memory_space<vmem>>, vector<1x1x128xf32>
    %1196 = vector.shape_cast %1195 : vector<1x1x128xf32> to vector<1x128xf32>
    %1197 = vector.broadcast %1190 : vector<1x128xf32> to vector<16x128xf32>
    %1198 = arith.mulf %1197, %7 : vector<16x128xf32>
    %1199 = arith.addf %1179, %1198 : vector<16x128xf32>
    %1200 = vector.broadcast %1192 : vector<1x128xf32> to vector<16x128xf32>
    %1201 = arith.mulf %1200, %9 : vector<16x128xf32>
    %1202 = arith.addf %1199, %1201 : vector<16x128xf32>
    %1203 = vector.broadcast %1194 : vector<1x128xf32> to vector<16x128xf32>
    %1204 = arith.mulf %1203, %11 : vector<16x128xf32>
    %1205 = arith.addf %1202, %1204 : vector<16x128xf32>
    %1206 = vector.broadcast %1192 : vector<1x128xf32> to vector<16x128xf32>
    %1207 = arith.mulf %1206, %7 : vector<16x128xf32>
    %1208 = arith.addf %1188, %1207 : vector<16x128xf32>
    %1209 = vector.broadcast %1194 : vector<1x128xf32> to vector<16x128xf32>
    %1210 = arith.mulf %1209, %9 : vector<16x128xf32>
    %1211 = arith.addf %1208, %1210 : vector<16x128xf32>
    %1212 = vector.broadcast %1196 : vector<1x128xf32> to vector<16x128xf32>
    %1213 = arith.mulf %1212, %11 : vector<16x128xf32>
    %1214 = arith.addf %1211, %1213 : vector<16x128xf32>
    %c0_570 = arith.constant 0 : index
    %c15 = arith.constant 15 : index
    %c0_571 = arith.constant 0 : index
    %1215 = vector.load %arg1[%c0_570, %c15, %c0_571] : memref<1x18x128xf32, #tpu.memory_space<vmem>>, vector<1x1x128xf32>
    %1216 = vector.shape_cast %1215 : vector<1x1x128xf32> to vector<1x128xf32>
    %c0_572 = arith.constant 0 : index
    %c15_573 = arith.constant 15 : index
    %c0_574 = arith.constant 0 : index
    %1217 = vector.load %arg2[%c0_572, %c15_573, %c0_574] : memref<1x18x128xf32, #tpu.memory_space<vmem>>, vector<1x1x128xf32>
    %1218 = vector.shape_cast %1217 : vector<1x1x128xf32> to vector<1x128xf32>
    %c0_575 = arith.constant 0 : index
    %c15_576 = arith.constant 15 : index
    %c0_577 = arith.constant 0 : index
    %1219 = vector.load %arg3[%c0_575, %c15_576, %c0_577] : memref<1x18x128xf32, #tpu.memory_space<vmem>>, vector<1x1x128xf32>
    %1220 = vector.shape_cast %1219 : vector<1x1x128xf32> to vector<1x128xf32>
    %c0_578 = arith.constant 0 : index
    %c15_579 = arith.constant 15 : index
    %c0_580 = arith.constant 0 : index
    %1221 = vector.load %arg4[%c0_578, %c15_579, %c0_580] : memref<1x18x128xf32, #tpu.memory_space<vmem>>, vector<1x1x128xf32>
    %1222 = vector.shape_cast %1221 : vector<1x1x128xf32> to vector<1x128xf32>
    %1223 = vector.broadcast %1216 : vector<1x128xf32> to vector<16x128xf32>
    %1224 = arith.mulf %1223, %13 : vector<16x128xf32>
    %1225 = arith.addf %1205, %1224 : vector<16x128xf32>
    %1226 = vector.broadcast %1218 : vector<1x128xf32> to vector<16x128xf32>
    %1227 = arith.mulf %1226, %15 : vector<16x128xf32>
    %1228 = arith.addf %1225, %1227 : vector<16x128xf32>
    %1229 = vector.broadcast %1220 : vector<1x128xf32> to vector<16x128xf32>
    %1230 = arith.mulf %1229, %17 : vector<16x128xf32>
    %1231 = arith.addf %1228, %1230 : vector<16x128xf32>
    %1232 = vector.broadcast %1218 : vector<1x128xf32> to vector<16x128xf32>
    %1233 = arith.mulf %1232, %13 : vector<16x128xf32>
    %1234 = arith.addf %1214, %1233 : vector<16x128xf32>
    %1235 = vector.broadcast %1220 : vector<1x128xf32> to vector<16x128xf32>
    %1236 = arith.mulf %1235, %15 : vector<16x128xf32>
    %1237 = arith.addf %1234, %1236 : vector<16x128xf32>
    %1238 = vector.broadcast %1222 : vector<1x128xf32> to vector<16x128xf32>
    %1239 = arith.mulf %1238, %17 : vector<16x128xf32>
    %1240 = arith.addf %1237, %1239 : vector<16x128xf32>
    %1241 = arith.addf %1231, %18 : vector<16x128xf32>
    %cst_581 = arith.constant 0.000000e+00 : f32
    %1242 = vector.broadcast %cst_581 : f32 to vector<16x128xf32>
    %1243 = arith.maximumf %1241, %1242 : vector<16x128xf32>
    %1244 = arith.addf %1240, %18 : vector<16x128xf32>
    %cst_582 = arith.constant 0.000000e+00 : f32
    %1245 = vector.broadcast %cst_582 : f32 to vector<16x128xf32>
    %1246 = arith.maximumf %1244, %1245 : vector<16x128xf32>
    %1247 = arith.maximumf %1243, %1246 : vector<16x128xf32>
    %1248 = arith.maximumf %1160, %1247 : vector<16x128xf32>
    %cst_583 = arith.constant 0.000000e+00 : f32
    %1249 = vector.broadcast %cst_583 : f32 to vector<16x128xf32>
    %cst_584 = arith.constant 0.000000e+00 : f32
    %1250 = vector.broadcast %cst_584 : f32 to vector<16x128xf32>
    %c0_585 = arith.constant 0 : index
    %c14_586 = arith.constant 14 : index
    %c0_587 = arith.constant 0 : index
    %1251 = vector.load %arg1[%c0_585, %c14_586, %c0_587] : memref<1x18x128xf32, #tpu.memory_space<vmem>>, vector<1x1x128xf32>
    %1252 = vector.shape_cast %1251 : vector<1x1x128xf32> to vector<1x128xf32>
    %c0_588 = arith.constant 0 : index
    %c14_589 = arith.constant 14 : index
    %c0_590 = arith.constant 0 : index
    %1253 = vector.load %arg2[%c0_588, %c14_589, %c0_590] : memref<1x18x128xf32, #tpu.memory_space<vmem>>, vector<1x1x128xf32>
    %1254 = vector.shape_cast %1253 : vector<1x1x128xf32> to vector<1x128xf32>
    %c0_591 = arith.constant 0 : index
    %c14_592 = arith.constant 14 : index
    %c0_593 = arith.constant 0 : index
    %1255 = vector.load %arg3[%c0_591, %c14_592, %c0_593] : memref<1x18x128xf32, #tpu.memory_space<vmem>>, vector<1x1x128xf32>
    %1256 = vector.shape_cast %1255 : vector<1x1x128xf32> to vector<1x128xf32>
    %c0_594 = arith.constant 0 : index
    %c14_595 = arith.constant 14 : index
    %c0_596 = arith.constant 0 : index
    %1257 = vector.load %arg4[%c0_594, %c14_595, %c0_596] : memref<1x18x128xf32, #tpu.memory_space<vmem>>, vector<1x1x128xf32>
    %1258 = vector.shape_cast %1257 : vector<1x1x128xf32> to vector<1x128xf32>
    %1259 = vector.broadcast %1252 : vector<1x128xf32> to vector<16x128xf32>
    %1260 = arith.mulf %1259, %1 : vector<16x128xf32>
    %1261 = arith.addf %1249, %1260 : vector<16x128xf32>
    %1262 = vector.broadcast %1254 : vector<1x128xf32> to vector<16x128xf32>
    %1263 = arith.mulf %1262, %3 : vector<16x128xf32>
    %1264 = arith.addf %1261, %1263 : vector<16x128xf32>
    %1265 = vector.broadcast %1256 : vector<1x128xf32> to vector<16x128xf32>
    %1266 = arith.mulf %1265, %5 : vector<16x128xf32>
    %1267 = arith.addf %1264, %1266 : vector<16x128xf32>
    %1268 = vector.broadcast %1254 : vector<1x128xf32> to vector<16x128xf32>
    %1269 = arith.mulf %1268, %1 : vector<16x128xf32>
    %1270 = arith.addf %1250, %1269 : vector<16x128xf32>
    %1271 = vector.broadcast %1256 : vector<1x128xf32> to vector<16x128xf32>
    %1272 = arith.mulf %1271, %3 : vector<16x128xf32>
    %1273 = arith.addf %1270, %1272 : vector<16x128xf32>
    %1274 = vector.broadcast %1258 : vector<1x128xf32> to vector<16x128xf32>
    %1275 = arith.mulf %1274, %5 : vector<16x128xf32>
    %1276 = arith.addf %1273, %1275 : vector<16x128xf32>
    %c0_597 = arith.constant 0 : index
    %c15_598 = arith.constant 15 : index
    %c0_599 = arith.constant 0 : index
    %1277 = vector.load %arg1[%c0_597, %c15_598, %c0_599] : memref<1x18x128xf32, #tpu.memory_space<vmem>>, vector<1x1x128xf32>
    %1278 = vector.shape_cast %1277 : vector<1x1x128xf32> to vector<1x128xf32>
    %c0_600 = arith.constant 0 : index
    %c15_601 = arith.constant 15 : index
    %c0_602 = arith.constant 0 : index
    %1279 = vector.load %arg2[%c0_600, %c15_601, %c0_602] : memref<1x18x128xf32, #tpu.memory_space<vmem>>, vector<1x1x128xf32>
    %1280 = vector.shape_cast %1279 : vector<1x1x128xf32> to vector<1x128xf32>
    %c0_603 = arith.constant 0 : index
    %c15_604 = arith.constant 15 : index
    %c0_605 = arith.constant 0 : index
    %1281 = vector.load %arg3[%c0_603, %c15_604, %c0_605] : memref<1x18x128xf32, #tpu.memory_space<vmem>>, vector<1x1x128xf32>
    %1282 = vector.shape_cast %1281 : vector<1x1x128xf32> to vector<1x128xf32>
    %c0_606 = arith.constant 0 : index
    %c15_607 = arith.constant 15 : index
    %c0_608 = arith.constant 0 : index
    %1283 = vector.load %arg4[%c0_606, %c15_607, %c0_608] : memref<1x18x128xf32, #tpu.memory_space<vmem>>, vector<1x1x128xf32>
    %1284 = vector.shape_cast %1283 : vector<1x1x128xf32> to vector<1x128xf32>
    %1285 = vector.broadcast %1278 : vector<1x128xf32> to vector<16x128xf32>
    %1286 = arith.mulf %1285, %7 : vector<16x128xf32>
    %1287 = arith.addf %1267, %1286 : vector<16x128xf32>
    %1288 = vector.broadcast %1280 : vector<1x128xf32> to vector<16x128xf32>
    %1289 = arith.mulf %1288, %9 : vector<16x128xf32>
    %1290 = arith.addf %1287, %1289 : vector<16x128xf32>
    %1291 = vector.broadcast %1282 : vector<1x128xf32> to vector<16x128xf32>
    %1292 = arith.mulf %1291, %11 : vector<16x128xf32>
    %1293 = arith.addf %1290, %1292 : vector<16x128xf32>
    %1294 = vector.broadcast %1280 : vector<1x128xf32> to vector<16x128xf32>
    %1295 = arith.mulf %1294, %7 : vector<16x128xf32>
    %1296 = arith.addf %1276, %1295 : vector<16x128xf32>
    %1297 = vector.broadcast %1282 : vector<1x128xf32> to vector<16x128xf32>
    %1298 = arith.mulf %1297, %9 : vector<16x128xf32>
    %1299 = arith.addf %1296, %1298 : vector<16x128xf32>
    %1300 = vector.broadcast %1284 : vector<1x128xf32> to vector<16x128xf32>
    %1301 = arith.mulf %1300, %11 : vector<16x128xf32>
    %1302 = arith.addf %1299, %1301 : vector<16x128xf32>
    %c0_609 = arith.constant 0 : index
    %c16 = arith.constant 16 : index
    %c0_610 = arith.constant 0 : index
    %1303 = vector.load %arg1[%c0_609, %c16, %c0_610] : memref<1x18x128xf32, #tpu.memory_space<vmem>>, vector<1x1x128xf32>
    %1304 = vector.shape_cast %1303 : vector<1x1x128xf32> to vector<1x128xf32>
    %c0_611 = arith.constant 0 : index
    %c16_612 = arith.constant 16 : index
    %c0_613 = arith.constant 0 : index
    %1305 = vector.load %arg2[%c0_611, %c16_612, %c0_613] : memref<1x18x128xf32, #tpu.memory_space<vmem>>, vector<1x1x128xf32>
    %1306 = vector.shape_cast %1305 : vector<1x1x128xf32> to vector<1x128xf32>
    %c0_614 = arith.constant 0 : index
    %c16_615 = arith.constant 16 : index
    %c0_616 = arith.constant 0 : index
    %1307 = vector.load %arg3[%c0_614, %c16_615, %c0_616] : memref<1x18x128xf32, #tpu.memory_space<vmem>>, vector<1x1x128xf32>
    %1308 = vector.shape_cast %1307 : vector<1x1x128xf32> to vector<1x128xf32>
    %c0_617 = arith.constant 0 : index
    %c16_618 = arith.constant 16 : index
    %c0_619 = arith.constant 0 : index
    %1309 = vector.load %arg4[%c0_617, %c16_618, %c0_619] : memref<1x18x128xf32, #tpu.memory_space<vmem>>, vector<1x1x128xf32>
    %1310 = vector.shape_cast %1309 : vector<1x1x128xf32> to vector<1x128xf32>
    %1311 = vector.broadcast %1304 : vector<1x128xf32> to vector<16x128xf32>
    %1312 = arith.mulf %1311, %13 : vector<16x128xf32>
    %1313 = arith.addf %1293, %1312 : vector<16x128xf32>
    %1314 = vector.broadcast %1306 : vector<1x128xf32> to vector<16x128xf32>
    %1315 = arith.mulf %1314, %15 : vector<16x128xf32>
    %1316 = arith.addf %1313, %1315 : vector<16x128xf32>
    %1317 = vector.broadcast %1308 : vector<1x128xf32> to vector<16x128xf32>
    %1318 = arith.mulf %1317, %17 : vector<16x128xf32>
    %1319 = arith.addf %1316, %1318 : vector<16x128xf32>
    %1320 = vector.broadcast %1306 : vector<1x128xf32> to vector<16x128xf32>
    %1321 = arith.mulf %1320, %13 : vector<16x128xf32>
    %1322 = arith.addf %1302, %1321 : vector<16x128xf32>
    %1323 = vector.broadcast %1308 : vector<1x128xf32> to vector<16x128xf32>
    %1324 = arith.mulf %1323, %15 : vector<16x128xf32>
    %1325 = arith.addf %1322, %1324 : vector<16x128xf32>
    %1326 = vector.broadcast %1310 : vector<1x128xf32> to vector<16x128xf32>
    %1327 = arith.mulf %1326, %17 : vector<16x128xf32>
    %1328 = arith.addf %1325, %1327 : vector<16x128xf32>
    %1329 = arith.addf %1319, %18 : vector<16x128xf32>
    %cst_620 = arith.constant 0.000000e+00 : f32
    %1330 = vector.broadcast %cst_620 : f32 to vector<16x128xf32>
    %1331 = arith.maximumf %1329, %1330 : vector<16x128xf32>
    %1332 = arith.addf %1328, %18 : vector<16x128xf32>
    %cst_621 = arith.constant 0.000000e+00 : f32
    %1333 = vector.broadcast %cst_621 : f32 to vector<16x128xf32>
    %1334 = arith.maximumf %1332, %1333 : vector<16x128xf32>
    %1335 = arith.maximumf %1331, %1334 : vector<16x128xf32>
    %cst_622 = arith.constant 0.000000e+00 : f32
    %1336 = vector.broadcast %cst_622 : f32 to vector<16x128xf32>
    %cst_623 = arith.constant 0.000000e+00 : f32
    %1337 = vector.broadcast %cst_623 : f32 to vector<16x128xf32>
    %c0_624 = arith.constant 0 : index
    %c15_625 = arith.constant 15 : index
    %c0_626 = arith.constant 0 : index
    %1338 = vector.load %arg1[%c0_624, %c15_625, %c0_626] : memref<1x18x128xf32, #tpu.memory_space<vmem>>, vector<1x1x128xf32>
    %1339 = vector.shape_cast %1338 : vector<1x1x128xf32> to vector<1x128xf32>
    %c0_627 = arith.constant 0 : index
    %c15_628 = arith.constant 15 : index
    %c0_629 = arith.constant 0 : index
    %1340 = vector.load %arg2[%c0_627, %c15_628, %c0_629] : memref<1x18x128xf32, #tpu.memory_space<vmem>>, vector<1x1x128xf32>
    %1341 = vector.shape_cast %1340 : vector<1x1x128xf32> to vector<1x128xf32>
    %c0_630 = arith.constant 0 : index
    %c15_631 = arith.constant 15 : index
    %c0_632 = arith.constant 0 : index
    %1342 = vector.load %arg3[%c0_630, %c15_631, %c0_632] : memref<1x18x128xf32, #tpu.memory_space<vmem>>, vector<1x1x128xf32>
    %1343 = vector.shape_cast %1342 : vector<1x1x128xf32> to vector<1x128xf32>
    %c0_633 = arith.constant 0 : index
    %c15_634 = arith.constant 15 : index
    %c0_635 = arith.constant 0 : index
    %1344 = vector.load %arg4[%c0_633, %c15_634, %c0_635] : memref<1x18x128xf32, #tpu.memory_space<vmem>>, vector<1x1x128xf32>
    %1345 = vector.shape_cast %1344 : vector<1x1x128xf32> to vector<1x128xf32>
    %1346 = vector.broadcast %1339 : vector<1x128xf32> to vector<16x128xf32>
    %1347 = arith.mulf %1346, %1 : vector<16x128xf32>
    %1348 = arith.addf %1336, %1347 : vector<16x128xf32>
    %1349 = vector.broadcast %1341 : vector<1x128xf32> to vector<16x128xf32>
    %1350 = arith.mulf %1349, %3 : vector<16x128xf32>
    %1351 = arith.addf %1348, %1350 : vector<16x128xf32>
    %1352 = vector.broadcast %1343 : vector<1x128xf32> to vector<16x128xf32>
    %1353 = arith.mulf %1352, %5 : vector<16x128xf32>
    %1354 = arith.addf %1351, %1353 : vector<16x128xf32>
    %1355 = vector.broadcast %1341 : vector<1x128xf32> to vector<16x128xf32>
    %1356 = arith.mulf %1355, %1 : vector<16x128xf32>
    %1357 = arith.addf %1337, %1356 : vector<16x128xf32>
    %1358 = vector.broadcast %1343 : vector<1x128xf32> to vector<16x128xf32>
    %1359 = arith.mulf %1358, %3 : vector<16x128xf32>
    %1360 = arith.addf %1357, %1359 : vector<16x128xf32>
    %1361 = vector.broadcast %1345 : vector<1x128xf32> to vector<16x128xf32>
    %1362 = arith.mulf %1361, %5 : vector<16x128xf32>
    %1363 = arith.addf %1360, %1362 : vector<16x128xf32>
    %c0_636 = arith.constant 0 : index
    %c16_637 = arith.constant 16 : index
    %c0_638 = arith.constant 0 : index
    %1364 = vector.load %arg1[%c0_636, %c16_637, %c0_638] : memref<1x18x128xf32, #tpu.memory_space<vmem>>, vector<1x1x128xf32>
    %1365 = vector.shape_cast %1364 : vector<1x1x128xf32> to vector<1x128xf32>
    %c0_639 = arith.constant 0 : index
    %c16_640 = arith.constant 16 : index
    %c0_641 = arith.constant 0 : index
    %1366 = vector.load %arg2[%c0_639, %c16_640, %c0_641] : memref<1x18x128xf32, #tpu.memory_space<vmem>>, vector<1x1x128xf32>
    %1367 = vector.shape_cast %1366 : vector<1x1x128xf32> to vector<1x128xf32>
    %c0_642 = arith.constant 0 : index
    %c16_643 = arith.constant 16 : index
    %c0_644 = arith.constant 0 : index
    %1368 = vector.load %arg3[%c0_642, %c16_643, %c0_644] : memref<1x18x128xf32, #tpu.memory_space<vmem>>, vector<1x1x128xf32>
    %1369 = vector.shape_cast %1368 : vector<1x1x128xf32> to vector<1x128xf32>
    %c0_645 = arith.constant 0 : index
    %c16_646 = arith.constant 16 : index
    %c0_647 = arith.constant 0 : index
    %1370 = vector.load %arg4[%c0_645, %c16_646, %c0_647] : memref<1x18x128xf32, #tpu.memory_space<vmem>>, vector<1x1x128xf32>
    %1371 = vector.shape_cast %1370 : vector<1x1x128xf32> to vector<1x128xf32>
    %1372 = vector.broadcast %1365 : vector<1x128xf32> to vector<16x128xf32>
    %1373 = arith.mulf %1372, %7 : vector<16x128xf32>
    %1374 = arith.addf %1354, %1373 : vector<16x128xf32>
    %1375 = vector.broadcast %1367 : vector<1x128xf32> to vector<16x128xf32>
    %1376 = arith.mulf %1375, %9 : vector<16x128xf32>
    %1377 = arith.addf %1374, %1376 : vector<16x128xf32>
    %1378 = vector.broadcast %1369 : vector<1x128xf32> to vector<16x128xf32>
    %1379 = arith.mulf %1378, %11 : vector<16x128xf32>
    %1380 = arith.addf %1377, %1379 : vector<16x128xf32>
    %1381 = vector.broadcast %1367 : vector<1x128xf32> to vector<16x128xf32>
    %1382 = arith.mulf %1381, %7 : vector<16x128xf32>
    %1383 = arith.addf %1363, %1382 : vector<16x128xf32>
    %1384 = vector.broadcast %1369 : vector<1x128xf32> to vector<16x128xf32>
    %1385 = arith.mulf %1384, %9 : vector<16x128xf32>
    %1386 = arith.addf %1383, %1385 : vector<16x128xf32>
    %1387 = vector.broadcast %1371 : vector<1x128xf32> to vector<16x128xf32>
    %1388 = arith.mulf %1387, %11 : vector<16x128xf32>
    %1389 = arith.addf %1386, %1388 : vector<16x128xf32>
    %c0_648 = arith.constant 0 : index
    %c17 = arith.constant 17 : index
    %c0_649 = arith.constant 0 : index
    %1390 = vector.load %arg1[%c0_648, %c17, %c0_649] : memref<1x18x128xf32, #tpu.memory_space<vmem>>, vector<1x1x128xf32>
    %1391 = vector.shape_cast %1390 : vector<1x1x128xf32> to vector<1x128xf32>
    %c0_650 = arith.constant 0 : index
    %c17_651 = arith.constant 17 : index
    %c0_652 = arith.constant 0 : index
    %1392 = vector.load %arg2[%c0_650, %c17_651, %c0_652] : memref<1x18x128xf32, #tpu.memory_space<vmem>>, vector<1x1x128xf32>
    %1393 = vector.shape_cast %1392 : vector<1x1x128xf32> to vector<1x128xf32>
    %c0_653 = arith.constant 0 : index
    %c17_654 = arith.constant 17 : index
    %c0_655 = arith.constant 0 : index
    %1394 = vector.load %arg3[%c0_653, %c17_654, %c0_655] : memref<1x18x128xf32, #tpu.memory_space<vmem>>, vector<1x1x128xf32>
    %1395 = vector.shape_cast %1394 : vector<1x1x128xf32> to vector<1x128xf32>
    %c0_656 = arith.constant 0 : index
    %c17_657 = arith.constant 17 : index
    %c0_658 = arith.constant 0 : index
    %1396 = vector.load %arg4[%c0_656, %c17_657, %c0_658] : memref<1x18x128xf32, #tpu.memory_space<vmem>>, vector<1x1x128xf32>
    %1397 = vector.shape_cast %1396 : vector<1x1x128xf32> to vector<1x128xf32>
    %1398 = vector.broadcast %1391 : vector<1x128xf32> to vector<16x128xf32>
    %1399 = arith.mulf %1398, %13 : vector<16x128xf32>
    %1400 = arith.addf %1380, %1399 : vector<16x128xf32>
    %1401 = vector.broadcast %1393 : vector<1x128xf32> to vector<16x128xf32>
    %1402 = arith.mulf %1401, %15 : vector<16x128xf32>
    %1403 = arith.addf %1400, %1402 : vector<16x128xf32>
    %1404 = vector.broadcast %1395 : vector<1x128xf32> to vector<16x128xf32>
    %1405 = arith.mulf %1404, %17 : vector<16x128xf32>
    %1406 = arith.addf %1403, %1405 : vector<16x128xf32>
    %1407 = vector.broadcast %1393 : vector<1x128xf32> to vector<16x128xf32>
    %1408 = arith.mulf %1407, %13 : vector<16x128xf32>
    %1409 = arith.addf %1389, %1408 : vector<16x128xf32>
    %1410 = vector.broadcast %1395 : vector<1x128xf32> to vector<16x128xf32>
    %1411 = arith.mulf %1410, %15 : vector<16x128xf32>
    %1412 = arith.addf %1409, %1411 : vector<16x128xf32>
    %1413 = vector.broadcast %1397 : vector<1x128xf32> to vector<16x128xf32>
    %1414 = arith.mulf %1413, %17 : vector<16x128xf32>
    %1415 = arith.addf %1412, %1414 : vector<16x128xf32>
    %1416 = arith.addf %1406, %18 : vector<16x128xf32>
    %cst_659 = arith.constant 0.000000e+00 : f32
    %1417 = vector.broadcast %cst_659 : f32 to vector<16x128xf32>
    %1418 = arith.maximumf %1416, %1417 : vector<16x128xf32>
    %1419 = arith.addf %1415, %18 : vector<16x128xf32>
    %cst_660 = arith.constant 0.000000e+00 : f32
    %1420 = vector.broadcast %cst_660 : f32 to vector<16x128xf32>
    %1421 = arith.maximumf %1419, %1420 : vector<16x128xf32>
    %1422 = arith.maximumf %1418, %1421 : vector<16x128xf32>
    %1423 = arith.maximumf %1335, %1422 : vector<16x128xf32>
    %1424 = vector.extract_strided_slice %198 {offsets = [0, 0], sizes = [16, 127], strides = [1, 1]} : vector<16x128xf32> to vector<16x127xf32>
    %1425 = tpu.concatenate %22, %1424 in 1 : vector<16x1xf32>, vector<16x127xf32> -> vector<16x128xf32>
    %1426 = vector.extract_strided_slice %198 {offsets = [0, 1], sizes = [16, 127], strides = [1, 1]} : vector<16x128xf32> to vector<16x127xf32>
    %1427 = tpu.concatenate %1426, %22 in 1 : vector<16x127xf32>, vector<16x1xf32> -> vector<16x128xf32>
    %c0_i32 = arith.constant 0 : i32
    %1428 = vector.broadcast %c0_i32 : i32 to vector<16x128xi32>
    %1429 = arith.cmpi ne, %21, %1428 : vector<16x128xi32>
    %cst_661 = arith.constant 0.000000e+00 : f32
    %1430 = vector.broadcast %cst_661 : f32 to vector<16x128xf32>
    %1431 = arith.select %1429, %1425, %1430 : vector<16x128xi1>, vector<16x128xf32>
    %c7_i32_662 = arith.constant 7 : i32
    %1432 = vector.broadcast %c7_i32_662 : i32 to vector<16x128xi32>
    %1433 = arith.cmpi ne, %21, %1432 : vector<16x128xi32>
    %cst_663 = arith.constant 0.000000e+00 : f32
    %1434 = vector.broadcast %cst_663 : f32 to vector<16x128xf32>
    %1435 = arith.select %1433, %1427, %1434 : vector<16x128xi1>, vector<16x128xf32>
    %1436 = vector.extract_strided_slice %373 {offsets = [0, 0], sizes = [16, 127], strides = [1, 1]} : vector<16x128xf32> to vector<16x127xf32>
    %1437 = tpu.concatenate %22, %1436 in 1 : vector<16x1xf32>, vector<16x127xf32> -> vector<16x128xf32>
    %1438 = vector.extract_strided_slice %373 {offsets = [0, 1], sizes = [16, 127], strides = [1, 1]} : vector<16x128xf32> to vector<16x127xf32>
    %1439 = tpu.concatenate %1438, %22 in 1 : vector<16x127xf32>, vector<16x1xf32> -> vector<16x128xf32>
    %c0_i32_664 = arith.constant 0 : i32
    %1440 = vector.broadcast %c0_i32_664 : i32 to vector<16x128xi32>
    %1441 = arith.cmpi ne, %21, %1440 : vector<16x128xi32>
    %cst_665 = arith.constant 0.000000e+00 : f32
    %1442 = vector.broadcast %cst_665 : f32 to vector<16x128xf32>
    %1443 = arith.select %1441, %1437, %1442 : vector<16x128xi1>, vector<16x128xf32>
    %c7_i32_666 = arith.constant 7 : i32
    %1444 = vector.broadcast %c7_i32_666 : i32 to vector<16x128xi32>
    %1445 = arith.cmpi ne, %21, %1444 : vector<16x128xi32>
    %cst_667 = arith.constant 0.000000e+00 : f32
    %1446 = vector.broadcast %cst_667 : f32 to vector<16x128xf32>
    %1447 = arith.select %1445, %1439, %1446 : vector<16x128xi1>, vector<16x128xf32>
    %1448 = vector.extract_strided_slice %548 {offsets = [0, 0], sizes = [16, 127], strides = [1, 1]} : vector<16x128xf32> to vector<16x127xf32>
    %1449 = tpu.concatenate %22, %1448 in 1 : vector<16x1xf32>, vector<16x127xf32> -> vector<16x128xf32>
    %1450 = vector.extract_strided_slice %548 {offsets = [0, 1], sizes = [16, 127], strides = [1, 1]} : vector<16x128xf32> to vector<16x127xf32>
    %1451 = tpu.concatenate %1450, %22 in 1 : vector<16x127xf32>, vector<16x1xf32> -> vector<16x128xf32>
    %c0_i32_668 = arith.constant 0 : i32
    %1452 = vector.broadcast %c0_i32_668 : i32 to vector<16x128xi32>
    %1453 = arith.cmpi ne, %21, %1452 : vector<16x128xi32>
    %cst_669 = arith.constant 0.000000e+00 : f32
    %1454 = vector.broadcast %cst_669 : f32 to vector<16x128xf32>
    %1455 = arith.select %1453, %1449, %1454 : vector<16x128xi1>, vector<16x128xf32>
    %c7_i32_670 = arith.constant 7 : i32
    %1456 = vector.broadcast %c7_i32_670 : i32 to vector<16x128xi32>
    %1457 = arith.cmpi ne, %21, %1456 : vector<16x128xi32>
    %cst_671 = arith.constant 0.000000e+00 : f32
    %1458 = vector.broadcast %cst_671 : f32 to vector<16x128xf32>
    %1459 = arith.select %1457, %1451, %1458 : vector<16x128xi1>, vector<16x128xf32>
    %1460 = vector.extract_strided_slice %723 {offsets = [0, 0], sizes = [16, 127], strides = [1, 1]} : vector<16x128xf32> to vector<16x127xf32>
    %1461 = tpu.concatenate %22, %1460 in 1 : vector<16x1xf32>, vector<16x127xf32> -> vector<16x128xf32>
    %1462 = vector.extract_strided_slice %723 {offsets = [0, 1], sizes = [16, 127], strides = [1, 1]} : vector<16x128xf32> to vector<16x127xf32>
    %1463 = tpu.concatenate %1462, %22 in 1 : vector<16x127xf32>, vector<16x1xf32> -> vector<16x128xf32>
    %c0_i32_672 = arith.constant 0 : i32
    %1464 = vector.broadcast %c0_i32_672 : i32 to vector<16x128xi32>
    %1465 = arith.cmpi ne, %21, %1464 : vector<16x128xi32>
    %cst_673 = arith.constant 0.000000e+00 : f32
    %1466 = vector.broadcast %cst_673 : f32 to vector<16x128xf32>
    %1467 = arith.select %1465, %1461, %1466 : vector<16x128xi1>, vector<16x128xf32>
    %c7_i32_674 = arith.constant 7 : i32
    %1468 = vector.broadcast %c7_i32_674 : i32 to vector<16x128xi32>
    %1469 = arith.cmpi ne, %21, %1468 : vector<16x128xi32>
    %cst_675 = arith.constant 0.000000e+00 : f32
    %1470 = vector.broadcast %cst_675 : f32 to vector<16x128xf32>
    %1471 = arith.select %1469, %1463, %1470 : vector<16x128xi1>, vector<16x128xf32>
    %1472 = vector.extract_strided_slice %898 {offsets = [0, 0], sizes = [16, 127], strides = [1, 1]} : vector<16x128xf32> to vector<16x127xf32>
    %1473 = tpu.concatenate %22, %1472 in 1 : vector<16x1xf32>, vector<16x127xf32> -> vector<16x128xf32>
    %1474 = vector.extract_strided_slice %898 {offsets = [0, 1], sizes = [16, 127], strides = [1, 1]} : vector<16x128xf32> to vector<16x127xf32>
    %1475 = tpu.concatenate %1474, %22 in 1 : vector<16x127xf32>, vector<16x1xf32> -> vector<16x128xf32>
    %c0_i32_676 = arith.constant 0 : i32
    %1476 = vector.broadcast %c0_i32_676 : i32 to vector<16x128xi32>
    %1477 = arith.cmpi ne, %21, %1476 : vector<16x128xi32>
    %cst_677 = arith.constant 0.000000e+00 : f32
    %1478 = vector.broadcast %cst_677 : f32 to vector<16x128xf32>
    %1479 = arith.select %1477, %1473, %1478 : vector<16x128xi1>, vector<16x128xf32>
    %c7_i32_678 = arith.constant 7 : i32
    %1480 = vector.broadcast %c7_i32_678 : i32 to vector<16x128xi32>
    %1481 = arith.cmpi ne, %21, %1480 : vector<16x128xi32>
    %cst_679 = arith.constant 0.000000e+00 : f32
    %1482 = vector.broadcast %cst_679 : f32 to vector<16x128xf32>
    %1483 = arith.select %1481, %1475, %1482 : vector<16x128xi1>, vector<16x128xf32>
    %1484 = vector.extract_strided_slice %1073 {offsets = [0, 0], sizes = [16, 127], strides = [1, 1]} : vector<16x128xf32> to vector<16x127xf32>
    %1485 = tpu.concatenate %22, %1484 in 1 : vector<16x1xf32>, vector<16x127xf32> -> vector<16x128xf32>
    %1486 = vector.extract_strided_slice %1073 {offsets = [0, 1], sizes = [16, 127], strides = [1, 1]} : vector<16x128xf32> to vector<16x127xf32>
    %1487 = tpu.concatenate %1486, %22 in 1 : vector<16x127xf32>, vector<16x1xf32> -> vector<16x128xf32>
    %c0_i32_680 = arith.constant 0 : i32
    %1488 = vector.broadcast %c0_i32_680 : i32 to vector<16x128xi32>
    %1489 = arith.cmpi ne, %21, %1488 : vector<16x128xi32>
    %cst_681 = arith.constant 0.000000e+00 : f32
    %1490 = vector.broadcast %cst_681 : f32 to vector<16x128xf32>
    %1491 = arith.select %1489, %1485, %1490 : vector<16x128xi1>, vector<16x128xf32>
    %c7_i32_682 = arith.constant 7 : i32
    %1492 = vector.broadcast %c7_i32_682 : i32 to vector<16x128xi32>
    %1493 = arith.cmpi ne, %21, %1492 : vector<16x128xi32>
    %cst_683 = arith.constant 0.000000e+00 : f32
    %1494 = vector.broadcast %cst_683 : f32 to vector<16x128xf32>
    %1495 = arith.select %1493, %1487, %1494 : vector<16x128xi1>, vector<16x128xf32>
    %1496 = vector.extract_strided_slice %1248 {offsets = [0, 0], sizes = [16, 127], strides = [1, 1]} : vector<16x128xf32> to vector<16x127xf32>
    %1497 = tpu.concatenate %22, %1496 in 1 : vector<16x1xf32>, vector<16x127xf32> -> vector<16x128xf32>
    %1498 = vector.extract_strided_slice %1248 {offsets = [0, 1], sizes = [16, 127], strides = [1, 1]} : vector<16x128xf32> to vector<16x127xf32>
    %1499 = tpu.concatenate %1498, %22 in 1 : vector<16x127xf32>, vector<16x1xf32> -> vector<16x128xf32>
    %c0_i32_684 = arith.constant 0 : i32
    %1500 = vector.broadcast %c0_i32_684 : i32 to vector<16x128xi32>
    %1501 = arith.cmpi ne, %21, %1500 : vector<16x128xi32>
    %cst_685 = arith.constant 0.000000e+00 : f32
    %1502 = vector.broadcast %cst_685 : f32 to vector<16x128xf32>
    %1503 = arith.select %1501, %1497, %1502 : vector<16x128xi1>, vector<16x128xf32>
    %c7_i32_686 = arith.constant 7 : i32
    %1504 = vector.broadcast %c7_i32_686 : i32 to vector<16x128xi32>
    %1505 = arith.cmpi ne, %21, %1504 : vector<16x128xi32>
    %cst_687 = arith.constant 0.000000e+00 : f32
    %1506 = vector.broadcast %cst_687 : f32 to vector<16x128xf32>
    %1507 = arith.select %1505, %1499, %1506 : vector<16x128xi1>, vector<16x128xf32>
    %1508 = vector.extract_strided_slice %1423 {offsets = [0, 0], sizes = [16, 127], strides = [1, 1]} : vector<16x128xf32> to vector<16x127xf32>
    %1509 = tpu.concatenate %22, %1508 in 1 : vector<16x1xf32>, vector<16x127xf32> -> vector<16x128xf32>
    %1510 = vector.extract_strided_slice %1423 {offsets = [0, 1], sizes = [16, 127], strides = [1, 1]} : vector<16x128xf32> to vector<16x127xf32>
    %1511 = tpu.concatenate %1510, %22 in 1 : vector<16x127xf32>, vector<16x1xf32> -> vector<16x128xf32>
    %c0_i32_688 = arith.constant 0 : i32
    %1512 = vector.broadcast %c0_i32_688 : i32 to vector<16x128xi32>
    %1513 = arith.cmpi ne, %21, %1512 : vector<16x128xi32>
    %cst_689 = arith.constant 0.000000e+00 : f32
    %1514 = vector.broadcast %cst_689 : f32 to vector<16x128xf32>
    %1515 = arith.select %1513, %1509, %1514 : vector<16x128xi1>, vector<16x128xf32>
    %c7_i32_690 = arith.constant 7 : i32
    %1516 = vector.broadcast %c7_i32_690 : i32 to vector<16x128xi32>
    %1517 = arith.cmpi ne, %21, %1516 : vector<16x128xi32>
    %cst_691 = arith.constant 0.000000e+00 : f32
    %1518 = vector.broadcast %cst_691 : f32 to vector<16x128xf32>
    %1519 = arith.select %1517, %1511, %1518 : vector<16x128xi1>, vector<16x128xf32>
    %1520 = tpu.concatenate %23, %23, %23, %1431, %198, %1435, %1443, %373, %1447 in 0 : vector<16x128xf32>, vector<16x128xf32>, vector<16x128xf32>, vector<16x128xf32>, vector<16x128xf32>, vector<16x128xf32>, vector<16x128xf32>, vector<16x128xf32>, vector<16x128xf32> -> vector<144x128xf32>
    %1521 = tpu.concatenate %1431, %198, %1435, %1443, %373, %1447, %1455, %548, %1459 in 0 : vector<16x128xf32>, vector<16x128xf32>, vector<16x128xf32>, vector<16x128xf32>, vector<16x128xf32>, vector<16x128xf32>, vector<16x128xf32>, vector<16x128xf32>, vector<16x128xf32> -> vector<144x128xf32>
    %1522 = tpu.concatenate %1443, %373, %1447, %1455, %548, %1459, %1467, %723, %1471 in 0 : vector<16x128xf32>, vector<16x128xf32>, vector<16x128xf32>, vector<16x128xf32>, vector<16x128xf32>, vector<16x128xf32>, vector<16x128xf32>, vector<16x128xf32>, vector<16x128xf32> -> vector<144x128xf32>
    %1523 = tpu.concatenate %1455, %548, %1459, %1467, %723, %1471, %1479, %898, %1483 in 0 : vector<16x128xf32>, vector<16x128xf32>, vector<16x128xf32>, vector<16x128xf32>, vector<16x128xf32>, vector<16x128xf32>, vector<16x128xf32>, vector<16x128xf32>, vector<16x128xf32> -> vector<144x128xf32>
    %1524 = tpu.concatenate %1467, %723, %1471, %1479, %898, %1483, %1491, %1073, %1495 in 0 : vector<16x128xf32>, vector<16x128xf32>, vector<16x128xf32>, vector<16x128xf32>, vector<16x128xf32>, vector<16x128xf32>, vector<16x128xf32>, vector<16x128xf32>, vector<16x128xf32> -> vector<144x128xf32>
    %1525 = tpu.concatenate %1479, %898, %1483, %1491, %1073, %1495, %1503, %1248, %1507 in 0 : vector<16x128xf32>, vector<16x128xf32>, vector<16x128xf32>, vector<16x128xf32>, vector<16x128xf32>, vector<16x128xf32>, vector<16x128xf32>, vector<16x128xf32>, vector<16x128xf32> -> vector<144x128xf32>
    %1526 = tpu.concatenate %1491, %1073, %1495, %1503, %1248, %1507, %1515, %1423, %1519 in 0 : vector<16x128xf32>, vector<16x128xf32>, vector<16x128xf32>, vector<16x128xf32>, vector<16x128xf32>, vector<16x128xf32>, vector<16x128xf32>, vector<16x128xf32>, vector<16x128xf32> -> vector<144x128xf32>
    %1527 = tpu.concatenate %1503, %1248, %1507, %1515, %1423, %1519, %23, %23, %23 in 0 : vector<16x128xf32>, vector<16x128xf32>, vector<16x128xf32>, vector<16x128xf32>, vector<16x128xf32>, vector<16x128xf32>, vector<16x128xf32>, vector<16x128xf32>, vector<16x128xf32> -> vector<144x128xf32>
    %1528 = tpu.concatenate %1520, %1521, %1522, %1523, %1524, %1525, %1526, %1527 in 1 : vector<144x128xf32>, vector<144x128xf32>, vector<144x128xf32>, vector<144x128xf32>, vector<144x128xf32>, vector<144x128xf32>, vector<144x128xf32>, vector<144x128xf32> -> vector<144x1024xf32>
    %c0_692 = arith.constant 0 : index
    %c0_693 = arith.constant 0 : index
    %1529 = vector.load %arg7[%c0_692, %c0_693] : memref<32x144xf32, #tpu.memory_space<vmem>>, vector<32x144xf32>
    %cst_694 = arith.constant dense<0.000000e+00> : vector<32x1024xf32>
    %1530 = tpu.matmul %1529, %1528, %cst_694 {dimension_numbers = #tpu.dot_dimension_numbers<[1], [0], [0], [1], [0, 0, 1, 1], [], []>} : vector<32x144xf32>, vector<144x1024xf32>, vector<32x1024xf32> -> vector<32x1024xf32>
    %c0_695 = arith.constant 0 : index
    %c0_696 = arith.constant 0 : index
    %1531 = vector.load %arg8[%c0_695, %c0_696] : memref<32x1xf32, #tpu.memory_space<vmem>>, vector<32x1xf32>
    %1532 = vector.broadcast %1531 : vector<32x1xf32> to vector<32x1024xf32>
    %1533 = arith.addf %1530, %1532 : vector<32x1024xf32>
    %cst_697 = arith.constant 0.000000e+00 : f32
    %1534 = vector.broadcast %cst_697 : f32 to vector<32x1024xf32>
    %1535 = arith.maximumf %1533, %1534 : vector<32x1024xf32>
    %c0_698 = arith.constant 0 : index
    %c0_699 = arith.constant 0 : index
    %1536 = vector.load %arg9[%c0_698, %c0_699] : memref<1024x16xf32, #tpu.memory_space<vmem>>, vector<1024x16xf32>
    %cst_700 = arith.constant dense<0.000000e+00> : vector<32x16xf32>
    %1537 = tpu.matmul %1535, %1536, %cst_700 {dimension_numbers = #tpu.dot_dimension_numbers<[1], [0], [0], [1], [0, 0, 1, 1], [], []>} : vector<32x1024xf32>, vector<1024x16xf32>, vector<32x16xf32> -> vector<32x16xf32>
    %c0_701 = arith.constant 0 : index
    %c0_702 = arith.constant 0 : index
    %1538 = vector.load %arg10[%c0_701, %c0_702] : memref<2x32xf32, #tpu.memory_space<vmem>>, vector<2x32xf32>
    %cst_703 = arith.constant dense<0.000000e+00> : vector<2x16xf32>
    %1539 = tpu.matmul %1538, %1537, %cst_703 {dimension_numbers = #tpu.dot_dimension_numbers<[1], [0], [0], [1], [0, 0, 1, 1], [], []>} : vector<2x32xf32>, vector<32x16xf32>, vector<2x16xf32> -> vector<2x16xf32>
    %c0_704 = arith.constant 0 : index
    %c0_705 = arith.constant 0 : index
    %1540 = vector.load %arg11[%c0_704, %c0_705] : memref<2x16xf32, #tpu.memory_space<vmem>>, vector<2x16xf32>
    %1541 = arith.addf %1539, %1540 : vector<2x16xf32>
    %c0_706 = arith.constant 0 : index
    %c0_707 = arith.constant 0 : index
    %c0_708 = arith.constant 0 : index
    %1542 = vector.load %arg12[%c0_706, %c0_707, %c0_708] : memref<1x2x16xf32, #tpu.memory_space<vmem>>, vector<1x2x16xf32>
    %1543 = vector.shape_cast %1542 : vector<1x2x16xf32> to vector<2x16xf32>
    %1544 = vector.shape_cast %1541 : vector<2x16xf32> to vector<1x2x16xf32>
    tpu.vector_store %arg12[%c0_706, %c0_707, %c0_708], %1544 {strides = array<i32>} : memref<1x2x16xf32, #tpu.memory_space<vmem>>, vector<1x2x16xf32>,
    return
  }
  func.func @transform_0(%arg0: i32) -> (i32, i32, i32) {
    %c0_i32 = arith.constant 0 : i32
    %c0_i32_0 = arith.constant 0 : i32
    %c0_i32_1 = arith.constant 0 : i32
    return %arg0, %c0_i32, %c0_i32_0 : i32, i32, i32
  }
  func.func @transform_1(%arg0: i32) -> (i32, i32, i32) {
    %c0_i32 = arith.constant 0 : i32
    %c0_i32_0 = arith.constant 0 : i32
    %c0_i32_1 = arith.constant 0 : i32
    return %arg0, %c0_i32, %c0_i32_0 : i32, i32, i32
  }
  func.func @transform_2(%arg0: i32) -> (i32, i32, i32) {
    %c0_i32 = arith.constant 0 : i32
    %c0_i32_0 = arith.constant 0 : i32
    %c0_i32_1 = arith.constant 0 : i32
    return %arg0, %c0_i32, %c0_i32_0 : i32, i32, i32
  }
  func.func @transform_3(%arg0: i32) -> (i32, i32, i32) {
    %c0_i32 = arith.constant 0 : i32
    %c0_i32_0 = arith.constant 0 : i32
    %c0_i32_1 = arith.constant 0 : i32
    return %arg0, %c0_i32, %c0_i32_0 : i32, i32, i32
  }
  func.func @transform_4(%arg0: i32) -> (i32, i32, i32, i32) {
    %c0_i32 = arith.constant 0 : i32
    %c0_i32_0 = arith.constant 0 : i32
    %c0_i32_1 = arith.constant 0 : i32
    %c0_i32_2 = arith.constant 0 : i32
    %c0_i32_3 = arith.constant 0 : i32
    return %c0_i32, %c0_i32_0, %c0_i32_1, %c0_i32_2 : i32, i32, i32, i32
  }
  func.func @transform_5(%arg0: i32) -> (i32, i32) {
    %c0_i32 = arith.constant 0 : i32
    %c0_i32_0 = arith.constant 0 : i32
    %c0_i32_1 = arith.constant 0 : i32
    return %c0_i32, %c0_i32_0 : i32, i32
  }
  func.func @transform_6(%arg0: i32) -> (i32, i32) {
    %c0_i32 = arith.constant 0 : i32
    %c0_i32_0 = arith.constant 0 : i32
    %c0_i32_1 = arith.constant 0 : i32
    return %c0_i32, %c0_i32_0 : i32, i32
  }
  func.func @transform_7(%arg0: i32) -> (i32, i32) {
    %c0_i32 = arith.constant 0 : i32
    %c0_i32_0 = arith.constant 0 : i32
    %c0_i32_1 = arith.constant 0 : i32
    return %c0_i32, %c0_i32_0 : i32, i32
  }
  func.func @transform_8(%arg0: i32) -> (i32, i32) {
    %c0_i32 = arith.constant 0 : i32
    %c0_i32_0 = arith.constant 0 : i32
    %c0_i32_1 = arith.constant 0 : i32
    return %c0_i32, %c0_i32_0 : i32, i32
  }
  func.func @transform_9(%arg0: i32) -> (i32, i32) {
    %c0_i32 = arith.constant 0 : i32
    %c0_i32_0 = arith.constant 0 : i32
    %c0_i32_1 = arith.constant 0 : i32
    return %c0_i32, %c0_i32_0 : i32, i32
  }
  func.func @transform_10(%arg0: i32) -> (i32, i32) {
    %c0_i32 = arith.constant 0 : i32
    %c0_i32_0 = arith.constant 0 : i32
    %c0_i32_1 = arith.constant 0 : i32
    return %c0_i32, %c0_i32_0 : i32, i32
  }
  func.func @transform_11(%arg0: i32) -> (i32, i32, i32) {
    %c0_i32 = arith.constant 0 : i32
    %c0_i32_0 = arith.constant 0 : i32
    %c0_i32_1 = arith.constant 0 : i32
    return %arg0, %c0_i32, %c0_i32_0 : i32, i32, i32
  }
}

</mosaic_0001>

<llo_original>
// kernel: forward.1
$region0: #{forward.1}
  #allocation0 [shape = 'u32[]', space=smem, size = 0x4, offset = 0x4, fixed_abs, tag = 'smem constant byte address 0x4 - core index']
  #allocation1 [shape = 'u32[144,128]{1,0:T(1,128)}', space=vmem, size = 0x12000, scoped, tag = 'internal scratch']
  %s0 = inlined_call_operand.vmem [shape: f32[1,18,128], index: 0, kind: input, shape index: {}]
  %s1 = inlined_call_operand.vmem [shape: f32[1,18,128], index: 1, kind: input, shape index: {}]
  %s2 = inlined_call_operand.vmem [shape: f32[1,18,128], index: 2, kind: input, shape index: {}]
  %s3 = inlined_call_operand.vmem [shape: f32[1,18,128], index: 3, kind: input, shape index: {}]
  %s4 = inlined_call_operand.vmem [shape: f32[3,3,16,128], index: 4, kind: input, shape index: {}]
  %s5 = inlined_call_operand.vmem [shape: f32[16,128], index: 5, kind: input, shape index: {}]
  %s6 = inlined_call_operand.vmem [shape: f32[32,144], index: 6, kind: input, shape index: {}]
  %s7 = inlined_call_operand.vmem [shape: f32[32,1], index: 7, kind: input, shape index: {}]
  %s8 = inlined_call_operand.vmem [shape: f32[1024,16], index: 8, kind: input, shape index: {}]
  %s9 = inlined_call_operand.vmem [shape: f32[2,32], index: 9, kind: input, shape index: {}]
  %s10 = inlined_call_operand.vmem [shape: f32[2,16], index: 10, kind: input, shape index: {}]
  %s11 = inlined_call_operand.vmem [shape: f32[1,2,16], index: 11, kind: output, shape index: {}]
  %s12 = sld [smem:[#allocation0]]
  $region54: #{forward.1} parent=0
    _
  %s14 = ssub.s32 1, %s12
  %s15 = scalar_select 0, %s14, %s12
  // Predicated region
  $region2: #{forward.1} parent=0 // pred_check
    _
  $region3: #{forward.1} parent=0 // pred_check_branch
    %17 = sbr.rel (0) target = $region5
  $region4: #{forward.1} parent=0 // pred_region
    _
  $region5: #{forward.1} parent=0 // pred_fallthru
    _
  // Predicated region
  $region6: #{forward.1} parent=0 // pred_check
    _
  $region7: #{forward.1} parent=0 // pred_check_branch
    %19 = sbr.rel (0) target = $region9
  $region8: #{forward.1} parent=0 // pred_region
    _
  $region9: #{forward.1} parent=0 // pred_fallthru
    _
  // Predicated region
  $region10: #{forward.1} parent=0 // pred_check
    _
  $region11: #{forward.1} parent=0 // pred_check_branch
    %21 = sbr.rel (0) target = $region13
  $region12: #{forward.1} parent=0 // pred_region
    _
  $region13: #{forward.1} parent=0 // pred_fallthru
    _
  // Predicated region
  $region14: #{forward.1} parent=0 // pred_check
    _
  $region15: #{forward.1} parent=0 // pred_check_branch
    %23 = sbr.rel (0) target = $region17
  $region16: #{forward.1} parent=0 // pred_region
    _
  $region17: #{forward.1} parent=0 // pred_fallthru
    _
  // Predicated region
  $region18: #{forward.1} parent=0 // pred_check
    _
  $region19: #{forward.1} parent=0 // pred_check_branch
    %25 = sbr.rel (0) target = $region21
  $region20: #{forward.1} parent=0 // pred_region
    _
  $region21: #{forward.1} parent=0 // pred_fallthru
    _
  // Predicated region
  $region22: #{forward.1} parent=0 // pred_check
    _
  $region23: #{forward.1} parent=0 // pred_check_branch
    %27 = sbr.rel (0) target = $region25
  $region24: #{forward.1} parent=0 // pred_region
    _
  $region25: #{forward.1} parent=0 // pred_fallthru
    _
  // Predicated region
  $region26: #{forward.1} parent=0 // pred_check
    _
  $region27: #{forward.1} parent=0 // pred_check_branch
    %29 = sbr.rel (0) target = $region29
  $region28: #{forward.1} parent=0 // pred_region
    _
  $region29: #{forward.1} parent=0 // pred_fallthru
    _
  // Predicated region
  $region30: #{forward.1} parent=0 // pred_check
    _
  $region31: #{forward.1} parent=0 // pred_check_branch
    %31 = sbr.rel (0) target = $region33
  $region32: #{forward.1} parent=0 // pred_region
    _
  $region33: #{forward.1} parent=0 // pred_fallthru
    _
  // Predicated region
  $region34: #{forward.1} parent=0 // pred_check
    _
  $region35: #{forward.1} parent=0 // pred_check_branch
    %33 = sbr.rel (0) target = $region37
  $region36: #{forward.1} parent=0 // pred_region
    _
  $region37: #{forward.1} parent=0 // pred_fallthru
    _
  // Predicated region
  $region38: #{forward.1} parent=0 // pred_check
    _
  $region39: #{forward.1} parent=0 // pred_check_branch
    %35 = sbr.rel (0) target = $region41
  $region40: #{forward.1} parent=0 // pred_region
    _
  $region41: #{forward.1} parent=0 // pred_fallthru
    _
  // Predicated region
  $region42: #{forward.1} parent=0 // pred_check
    _
  $region43: #{forward.1} parent=0 // pred_check_branch
    %37 = sbr.rel (0) target = $region45
  $region44: #{forward.1} parent=0 // pred_region
    _
  $region45: #{forward.1} parent=0 // pred_fallthru
    _
  %v38 = vld [vmem:[%s4] sm:$0xff]
  %v39 = vld [vmem:[%s4 + $0x8] sm:$0xff]
  %s40 = scalar_lea.vmem %s4, 16
  %v41 = vld [vmem:[%s40] sm:$0xff]
  %v42 = vld [vmem:[%s40 + $0x8] sm:$0xff]
  %s43 = scalar_lea.vmem %s4, 32
  %v44 = vld [vmem:[%s43] sm:$0xff]
  %v45 = vld [vmem:[%s43 + $0x8] sm:$0xff]
  %s46 = scalar_lea.vmem %s4, 48
  %v47 = vld [vmem:[%s46] sm:$0xff]
  %v48 = vld [vmem:[%s46 + $0x8] sm:$0xff]
  %s49 = scalar_lea.vmem %s4, 64
  %v50 = vld [vmem:[%s49] sm:$0xff]
  %v51 = vld [vmem:[%s49 + $0x8] sm:$0xff]
  %s52 = scalar_lea.vmem %s4, 80
  %v53 = vld [vmem:[%s52] sm:$0xff]
  %v54 = vld [vmem:[%s52 + $0x8] sm:$0xff]
  %s55 = scalar_lea.vmem %s4, 96
  %v56 = vld [vmem:[%s55] sm:$0xff]
  %v57 = vld [vmem:[%s55 + $0x8] sm:$0xff]
  %s58 = scalar_lea.vmem %s4, 112
  %v59 = vld [vmem:[%s58] sm:$0xff]
  %v60 = vld [vmem:[%s58 + $0x8] sm:$0xff]
  %s61 = scalar_lea.vmem %s4, 128
  %v62 = vld [vmem:[%s61] sm:$0xff]
  %v63 = vld [vmem:[%s61 + $0x8] sm:$0xff]
  %v64 = vld [vmem:[%s5] sm:$0xff]
  %v65 = vld [vmem:[%s5 + $0x8] sm:$0xff]
  %v66 = vlaneseq
  %v67 = vand.u32 %v66, 127
  %v68 = vand.u32 %v67, 7
  %v69 = vld [vmem:[%s0] sm:$0x1]
  %v70 = vld [vmem:[%s1] sm:$0x1]
  %v71 = vld [vmem:[%s2] sm:$0x1]
  %v72 = vld [vmem:[%s3] sm:$0x1]
  %v73 = vlaneseq
  %v74 = vshrl.u32 %v73, 7
  %v75 = vsub.s32 0, %v74
  %v76 = vrot.slane %v69, %v75
  %v77 = vmul.f32 %v76, %v38
  %v78 = vmul.f32 %v76, %v39
  %v79 = vadd.f32 %v77, 0.0
  %v80 = vadd.f32 %v78, 0.0
  %v81 = vlaneseq
  %v82 = vshrl.u32 %v81, 7
  %v83 = vsub.s32 0, %v82
  %v84 = vrot.slane %v70, %v83
  %v85 = vmul.f32 %v84, %v41
  %v86 = vmul.f32 %v84, %v42
  %v87 = vadd.f32 %v79, %v85
  %v88 = vadd.f32 %v80, %v86
  %v89 = vlaneseq
  %v90 = vshrl.u32 %v89, 7
  %v91 = vsub.s32 0, %v90
  %v92 = vrot.slane %v71, %v91
  %v93 = vmul.f32 %v92, %v44
  %v94 = vmul.f32 %v92, %v45
  %v95 = vadd.f32 %v87, %v93
  %v96 = vadd.f32 %v88, %v94
  %v97 = vmul.f32 %v84, %v38
  %v98 = vmul.f32 %v84, %v39
  %v99 = vadd.f32 %v97, 0.0
  %v100 = vadd.f32 %v98, 0.0
  %v101 = vmul.f32 %v92, %v41
  %v102 = vmul.f32 %v92, %v42
  %v103 = vadd.f32 %v99, %v101
  %v104 = vadd.f32 %v100, %v102
  %v105 = vlaneseq
  %v106 = vshrl.u32 %v105, 7
  %v107 = vsub.s32 0, %v106
  %v108 = vrot.slane %v72, %v107
  %v109 = vmul.f32 %v108, %v44
  %v110 = vmul.f32 %v108, %v45
  %v111 = vadd.f32 %v103, %v109
  %v112 = vadd.f32 %v104, %v110
  %v113 = vld [vmem:[%s0 + $0x1] sm:$0x1]
  %v114 = vld [vmem:[%s1 + $0x1] sm:$0x1]
  %v115 = vld [vmem:[%s2 + $0x1] sm:$0x1]
  %v116 = vld [vmem:[%s3 + $0x1] sm:$0x1]
  %v117 = vlaneseq
  %v118 = vshrl.u32 %v117, 7
  %v119 = vsub.s32 0, %v118
  %v120 = vrot.slane %v113, %v119
  %v121 = vmul.f32 %v120, %v47
  %v122 = vmul.f32 %v120, %v48
  %v123 = vadd.f32 %v95, %v121
  %v124 = vadd.f32 %v96, %v122
  %v125 = vlaneseq
  %v126 = vshrl.u32 %v125, 7
  %v127 = vsub.s32 0, %v126
  %v128 = vrot.slane %v114, %v127
  %v129 = vmul.f32 %v128, %v50
  %v130 = vmul.f32 %v128, %v51
  %v131 = vadd.f32 %v123, %v129
  %v132 = vadd.f32 %v124, %v130
  %v133 = vlaneseq
  %v134 = vshrl.u32 %v133, 7
  %v135 = vsub.s32 0, %v134
  %v136 = vrot.slane %v115, %v135
  %v137 = vmul.f32 %v136, %v53
  %v138 = vmul.f32 %v136, %v54
  %v139 = vadd.f32 %v131, %v137
  %v140 = vadd.f32 %v132, %v138
  %v141 = vmul.f32 %v128, %v47
  %v142 = vmul.f32 %v128, %v48
  %v143 = vadd.f32 %v111, %v141
  %v144 = vadd.f32 %v112, %v142
  %v145 = vmul.f32 %v136, %v50
  %v146 = vmul.f32 %v136, %v51
  %v147 = vadd.f32 %v143, %v145
  %v148 = vadd.f32 %v144, %v146
  %v149 = vlaneseq
  %v150 = vshrl.u32 %v149, 7
  %v151 = vsub.s32 0, %v150
  %v152 = vrot.slane %v116, %v151
  %v153 = vmul.f32 %v152, %v53
  %v154 = vmul.f32 %v152, %v54
  %v155 = vadd.f32 %v147, %v153
  %v156 = vadd.f32 %v148, %v154
  %v157 = vld [vmem:[%s0 + $0x2] sm:$0x1]
  %v158 = vld [vmem:[%s1 + $0x2] sm:$0x1]
  %v159 = vld [vmem:[%s2 + $0x2] sm:$0x1]
  %v160 = vld [vmem:[%s3 + $0x2] sm:$0x1]
  %v161 = vlaneseq
  %v162 = vshrl.u32 %v161, 7
  %v163 = vsub.s32 0, %v162
  %v164 = vrot.slane %v157, %v163
  %v165 = vmul.f32 %v164, %v56
  %v166 = vmul.f32 %v164, %v57
  %v167 = vadd.f32 %v139, %v165
  %v168 = vadd.f32 %v140, %v166
  %v169 = vlaneseq
  %v170 = vshrl.u32 %v169, 7
  %v171 = vsub.s32 0, %v170
  %v172 = vrot.slane %v158, %v171
  %v173 = vmul.f32 %v172, %v59
  %v174 = vmul.f32 %v172, %v60
  %v175 = vadd.f32 %v167, %v173
  %v176 = vadd.f32 %v168, %v174
  %v177 = vlaneseq
  %v178 = vshrl.u32 %v177, 7
  %v179 = vsub.s32 0, %v178
  %v180 = vrot.slane %v159, %v179
  %v181 = vmul.f32 %v180, %v62
  %v182 = vmul.f32 %v180, %v63
  %v183 = vadd.f32 %v175, %v181
  %v184 = vadd.f32 %v176, %v182
  %v185 = vmul.f32 %v172, %v56
  %v186 = vmul.f32 %v172, %v57
  %v187 = vadd.f32 %v155, %v185
  %v188 = vadd.f32 %v156, %v186
  %v189 = vmul.f32 %v180, %v59
  %v190 = vmul.f32 %v180, %v60
  %v191 = vadd.f32 %v187, %v189
  %v192 = vadd.f32 %v188, %v190
  %v193 = vlaneseq
  %v194 = vshrl.u32 %v193, 7
  %v195 = vsub.s32 0, %v194
  %v196 = vrot.slane %v160, %v195
  %v197 = vmul.f32 %v196, %v62
  %v198 = vmul.f32 %v196, %v63
  %v199 = vadd.f32 %v191, %v197
  %v200 = vadd.f32 %v192, %v198
  %v201 = vadd.f32 %v183, %v64
  %v202 = vadd.f32 %v184, %v65
  %v203 = vmax.f32 %v201, 0.0
  %v204 = vmax.f32 %v202, 0.0
  %v205 = vadd.f32 %v199, %v64
  %v206 = vadd.f32 %v200, %v65
  %v207 = vmax.f32 %v205, 0.0
  %v208 = vmax.f32 %v206, 0.0
  %v209 = vmax.f32 %v203, %v207
  %v210 = vmax.f32 %v204, %v208
  %v211 = vmul.f32 %v120, %v38
  %v212 = vmul.f32 %v120, %v39
  %v213 = vadd.f32 %v211, 0.0
  %v214 = vadd.f32 %v212, 0.0
  %v215 = vmul.f32 %v128, %v41
  %v216 = vmul.f32 %v128, %v42
  %v217 = vadd.f32 %v213, %v215
  %v218 = vadd.f32 %v214, %v216
  %v219 = vmul.f32 %v136, %v44
  %v220 = vmul.f32 %v136, %v45
  %v221 = vadd.f32 %v217, %v219
  %v222 = vadd.f32 %v218, %v220
  %v223 = vmul.f32 %v128, %v38
  %v224 = vmul.f32 %v128, %v39
  %v225 = vadd.f32 %v223, 0.0
  %v226 = vadd.f32 %v224, 0.0
  %v227 = vmul.f32 %v136, %v41
  %v228 = vmul.f32 %v136, %v42
  %v229 = vadd.f32 %v225, %v227
  %v230 = vadd.f32 %v226, %v228
  %v231 = vmul.f32 %v152, %v44
  %v232 = vmul.f32 %v152, %v45
  %v233 = vadd.f32 %v229, %v231
  %v234 = vadd.f32 %v230, %v232
  %v235 = vmul.f32 %v164, %v47
  %v236 = vmul.f32 %v164, %v48
  %v237 = vadd.f32 %v221, %v235
  %v238 = vadd.f32 %v222, %v236
  %v239 = vmul.f32 %v172, %v50
  %v240 = vmul.f32 %v172, %v51
  %v241 = vadd.f32 %v237, %v239
  %v242 = vadd.f32 %v238, %v240
  %v243 = vmul.f32 %v180, %v53
  %v244 = vmul.f32 %v180, %v54
  %v245 = vadd.f32 %v241, %v243
  %v246 = vadd.f32 %v242, %v244
  %v247 = vmul.f32 %v172, %v47
  %v248 = vmul.f32 %v172, %v48
  %v249 = vadd.f32 %v233, %v247
  %v250 = vadd.f32 %v234, %v248
  %v251 = vmul.f32 %v180, %v50
  %v252 = vmul.f32 %v180, %v51
  %v253 = vadd.f32 %v249, %v251
  %v254 = vadd.f32 %v250, %v252
  %v255 = vmul.f32 %v196, %v53
  %v256 = vmul.f32 %v196, %v54
  %v257 = vadd.f32 %v253, %v255
  %v258 = vadd.f32 %v254, %v256
  %v259 = vld [vmem:[%s0 + $0x3] sm:$0x1]
  %v260 = vld [vmem:[%s1 + $0x3] sm:$0x1]
  %v261 = vld [vmem:[%s2 + $0x3] sm:$0x1]
  %v262 = vld [vmem:[%s3 + $0x3] sm:$0x1]
  %v263 = vlaneseq
  %v264 = vshrl.u32 %v263, 7
  %v265 = vsub.s32 0, %v264
  %v266 = vrot.slane %v259, %v265
  %v267 = vmul.f32 %v266, %v56
  %v268 = vmul.f32 %v266, %v57
  %v269 = vadd.f32 %v245, %v267
  %v270 = vadd.f32 %v246, %v268
  %v271 = vlaneseq
  %v272 = vshrl.u32 %v271, 7
  %v273 = vsub.s32 0, %v272
  %v274 = vrot.slane %v260, %v273
  %v275 = vmul.f32 %v274, %v59
  %v276 = vmul.f32 %v274, %v60
  %v277 = vadd.f32 %v269, %v275
  %v278 = vadd.f32 %v270, %v276
  %v279 = vlaneseq
  %v280 = vshrl.u32 %v279, 7
  %v281 = vsub.s32 0, %v280
  %v282 = vrot.slane %v261, %v281
  %v283 = vmul.f32 %v282, %v62
  %v284 = vmul.f32 %v282, %v63
  %v285 = vadd.f32 %v277, %v283
  %v286 = vadd.f32 %v278, %v284
  %v287 = vmul.f32 %v274, %v56
  %v288 = vmul.f32 %v274, %v57
  %v289 = vadd.f32 %v257, %v287
  %v290 = vadd.f32 %v258, %v288
  %v291 = vmul.f32 %v282, %v59
  %v292 = vmul.f32 %v282, %v60
  %v293 = vadd.f32 %v289, %v291
  %v294 = vadd.f32 %v290, %v292
  %v295 = vlaneseq
  %v296 = vshrl.u32 %v295, 7
  %v297 = vsub.s32 0, %v296
  %v298 = vrot.slane %v262, %v297
  %v299 = vmul.f32 %v298, %v62
  %v300 = vmul.f32 %v298, %v63
  %v301 = vadd.f32 %v293, %v299
  %v302 = vadd.f32 %v294, %v300
  %v303 = vadd.f32 %v285, %v64
  %v304 = vadd.f32 %v286, %v65
  %v305 = vmax.f32 %v303, 0.0
  %v306 = vmax.f32 %v304, 0.0
  %v307 = vadd.f32 %v301, %v64
  %v308 = vadd.f32 %v302, %v65
  %v309 = vmax.f32 %v307, 0.0
  %v310 = vmax.f32 %v308, 0.0
  %v311 = vmax.f32 %v305, %v309
  %v312 = vmax.f32 %v306, %v310
  %v313 = vmax.f32 %v209, %v311
  %v314 = vmax.f32 %v210, %v312
  %v315 = vmul.f32 %v164, %v38
  %v316 = vmul.f32 %v164, %v39
  %v317 = vadd.f32 %v315, 0.0
  %v318 = vadd.f32 %v316, 0.0
  %v319 = vmul.f32 %v172, %v41
  %v320 = vmul.f32 %v172, %v42
  %v321 = vadd.f32 %v317, %v319
  %v322 = vadd.f32 %v318, %v320
  %v323 = vmul.f32 %v180, %v44
  %v324 = vmul.f32 %v180, %v45
  %v325 = vadd.f32 %v321, %v323
  %v326 = vadd.f32 %v322, %v324
  %v327 = vmul.f32 %v172, %v38
  %v328 = vmul.f32 %v172, %v39
  %v329 = vadd.f32 %v327, 0.0
  %v330 = vadd.f32 %v328, 0.0
  %v331 = vmul.f32 %v180, %v41
  %v332 = vmul.f32 %v180, %v42
  %v333 = vadd.f32 %v329, %v331
  %v334 = vadd.f32 %v330, %v332
  %v335 = vmul.f32 %v196, %v44
  %v336 = vmul.f32 %v196, %v45
  %v337 = vadd.f32 %v333, %v335
  %v338 = vadd.f32 %v334, %v336
  %v339 = vmul.f32 %v266, %v47
  %v340 = vmul.f32 %v266, %v48
  %v341 = vadd.f32 %v325, %v339
  %v342 = vadd.f32 %v326, %v340
  %v343 = vmul.f32 %v274, %v50
  %v344 = vmul.f32 %v274, %v51
  %v345 = vadd.f32 %v341, %v343
  %v346 = vadd.f32 %v342, %v344
  %v347 = vmul.f32 %v282, %v53
  %v348 = vmul.f32 %v282, %v54
  %v349 = vadd.f32 %v345, %v347
  %v350 = vadd.f32 %v346, %v348
  %v351 = vmul.f32 %v274, %v47
  %v352 = vmul.f32 %v274, %v48
  %v353 = vadd.f32 %v337, %v351
  %v354 = vadd.f32 %v338, %v352
  %v355 = vmul.f32 %v282, %v50
  %v356 = vmul.f32 %v282, %v51
  %v357 = vadd.f32 %v353, %v355
  %v358 = vadd.f32 %v354, %v356
  %v359 = vmul.f32 %v298, %v53
  %v360 = vmul.f32 %v298, %v54
  %v361 = vadd.f32 %v357, %v359
  %v362 = vadd.f32 %v358, %v360
  %v363 = vld [vmem:[%s0 + $0x4] sm:$0x1]
  %v364 = vld [vmem:[%s1 + $0x4] sm:$0x1]
  %v365 = vld [vmem:[%s2 + $0x4] sm:$0x1]
  %v366 = vld [vmem:[%s3 + $0x4] sm:$0x1]
  %v367 = vlaneseq
  %v368 = vshrl.u32 %v367, 7
  %v369 = vsub.s32 0, %v368
  %v370 = vrot.slane %v363, %v369
  %v371 = vmul.f32 %v370, %v56
  %v372 = vmul.f32 %v370, %v57
  %v373 = vadd.f32 %v349, %v371
  %v374 = vadd.f32 %v350, %v372
  %v375 = vlaneseq
  %v376 = vshrl.u32 %v375, 7
  %v377 = vsub.s32 0, %v376
  %v378 = vrot.slane %v364, %v377
  %v379 = vmul.f32 %v378, %v59
  %v380 = vmul.f32 %v378, %v60
  %v381 = vadd.f32 %v373, %v379
  %v382 = vadd.f32 %v374, %v380
  %v383 = vlaneseq
  %v384 = vshrl.u32 %v383, 7
  %v385 = vsub.s32 0, %v384
  %v386 = vrot.slane %v365, %v385
  %v387 = vmul.f32 %v386, %v62
  %v388 = vmul.f32 %v386, %v63
  %v389 = vadd.f32 %v381, %v387
  %v390 = vadd.f32 %v382, %v388
  %v391 = vmul.f32 %v378, %v56
  %v392 = vmul.f32 %v378, %v57
  %v393 = vadd.f32 %v361, %v391
  %v394 = vadd.f32 %v362, %v392
  %v395 = vmul.f32 %v386, %v59
  %v396 = vmul.f32 %v386, %v60
  %v397 = vadd.f32 %v393, %v395
  %v398 = vadd.f32 %v394, %v396
  %v399 = vlaneseq
  %v400 = vshrl.u32 %v399, 7
  %v401 = vsub.s32 0, %v400
  %v402 = vrot.slane %v366, %v401
  %v403 = vmul.f32 %v402, %v62
  %v404 = vmul.f32 %v402, %v63
  %v405 = vadd.f32 %v397, %v403
  %v406 = vadd.f32 %v398, %v404
  %v407 = vadd.f32 %v389, %v64
  %v408 = vadd.f32 %v390, %v65
  %v409 = vmax.f32 %v407, 0.0
  %v410 = vmax.f32 %v408, 0.0
  %v411 = vadd.f32 %v405, %v64
  %v412 = vadd.f32 %v406, %v65
  %v413 = vmax.f32 %v411, 0.0
  %v414 = vmax.f32 %v412, 0.0
  %v415 = vmax.f32 %v409, %v413
  %v416 = vmax.f32 %v410, %v414
  %v417 = vmul.f32 %v266, %v38
  %v418 = vmul.f32 %v266, %v39
  %v419 = vadd.f32 %v417, 0.0
  %v420 = vadd.f32 %v418, 0.0
  %v421 = vmul.f32 %v274, %v41
  %v422 = vmul.f32 %v274, %v42
  %v423 = vadd.f32 %v419, %v421
  %v424 = vadd.f32 %v420, %v422
  %v425 = vmul.f32 %v282, %v44
  %v426 = vmul.f32 %v282, %v45
  %v427 = vadd.f32 %v423, %v425
  %v428 = vadd.f32 %v424, %v426
  %v429 = vmul.f32 %v274, %v38
  %v430 = vmul.f32 %v274, %v39
  %v431 = vadd.f32 %v429, 0.0
  %v432 = vadd.f32 %v430, 0.0
  %v433 = vmul.f32 %v282, %v41
  %v434 = vmul.f32 %v282, %v42
  %v435 = vadd.f32 %v431, %v433
  %v436 = vadd.f32 %v432, %v434
  %v437 = vmul.f32 %v298, %v44
  %v438 = vmul.f32 %v298, %v45
  %v439 = vadd.f32 %v435, %v437
  %v440 = vadd.f32 %v436, %v438
  %v441 = vmul.f32 %v370, %v47
  %v442 = vmul.f32 %v370, %v48
  %v443 = vadd.f32 %v427, %v441
  %v444 = vadd.f32 %v428, %v442
  %v445 = vmul.f32 %v378, %v50
  %v446 = vmul.f32 %v378, %v51
  %v447 = vadd.f32 %v443, %v445
  %v448 = vadd.f32 %v444, %v446
  %v449 = vmul.f32 %v386, %v53
  %v450 = vmul.f32 %v386, %v54
  %v451 = vadd.f32 %v447, %v449
  %v452 = vadd.f32 %v448, %v450
  %v453 = vmul.f32 %v378, %v47
  %v454 = vmul.f32 %v378, %v48
  %v455 = vadd.f32 %v439, %v453
  %v456 = vadd.f32 %v440, %v454
  %v457 = vmul.f32 %v386, %v50
  %v458 = vmul.f32 %v386, %v51
  %v459 = vadd.f32 %v455, %v457
  %v460 = vadd.f32 %v456, %v458
  %v461 = vmul.f32 %v402, %v53
  %v462 = vmul.f32 %v402, %v54
  %v463 = vadd.f32 %v459, %v461
  %v464 = vadd.f32 %v460, %v462
  %v465 = vld [vmem:[%s0 + $0x5] sm:$0x1]
  %v466 = vld [vmem:[%s1 + $0x5] sm:$0x1]
  %v467 = vld [vmem:[%s2 + $0x5] sm:$0x1]
  %v468 = vld [vmem:[%s3 + $0x5] sm:$0x1]
  %v469 = vlaneseq
  %v470 = vshrl.u32 %v469, 7
  %v471 = vsub.s32 0, %v470
  %v472 = vrot.slane %v465, %v471
  %v473 = vmul.f32 %v472, %v56
  %v474 = vmul.f32 %v472, %v57
  %v475 = vadd.f32 %v451, %v473
  %v476 = vadd.f32 %v452, %v474
  %v477 = vlaneseq
  %v478 = vshrl.u32 %v477, 7
  %v479 = vsub.s32 0, %v478
  %v480 = vrot.slane %v466, %v479
  %v481 = vmul.f32 %v480, %v59
  %v482 = vmul.f32 %v480, %v60
  %v483 = vadd.f32 %v475, %v481
  %v484 = vadd.f32 %v476, %v482
  %v485 = vlaneseq
  %v486 = vshrl.u32 %v485, 7
  %v487 = vsub.s32 0, %v486
  %v488 = vrot.slane %v467, %v487
  %v489 = vmul.f32 %v488, %v62
  %v490 = vmul.f32 %v488, %v63
  %v491 = vadd.f32 %v483, %v489
  %v492 = vadd.f32 %v484, %v490
  %v493 = vmul.f32 %v480, %v56
  %v494 = vmul.f32 %v480, %v57
  %v495 = vadd.f32 %v463, %v493
  %v496 = vadd.f32 %v464, %v494
  %v497 = vmul.f32 %v488, %v59
  %v498 = vmul.f32 %v488, %v60
  %v499 = vadd.f32 %v495, %v497
  %v500 = vadd.f32 %v496, %v498
  %v501 = vlaneseq
  %v502 = vshrl.u32 %v501, 7
  %v503 = vsub.s32 0, %v502
  %v504 = vrot.slane %v468, %v503
  %v505 = vmul.f32 %v504, %v62
  %v506 = vmul.f32 %v504, %v63
  %v507 = vadd.f32 %v499, %v505
  %v508 = vadd.f32 %v500, %v506
  %v509 = vadd.f32 %v491, %v64
  %v510 = vadd.f32 %v492, %v65
  %v511 = vmax.f32 %v509, 0.0
  %v512 = vmax.f32 %v510, 0.0
  %v513 = vadd.f32 %v507, %v64
  %v514 = vadd.f32 %v508, %v65
  %v515 = vmax.f32 %v513, 0.0
  %v516 = vmax.f32 %v514, 0.0
  %v517 = vmax.f32 %v511, %v515
  %v518 = vmax.f32 %v512, %v516
  %v519 = vmax.f32 %v415, %v517
  %v520 = vmax.f32 %v416, %v518
  %v521 = vmul.f32 %v370, %v38
  %v522 = vmul.f32 %v370, %v39
  %v523 = vadd.f32 %v521, 0.0
  %v524 = vadd.f32 %v522, 0.0
  %v525 = vmul.f32 %v378, %v41
  %v526 = vmul.f32 %v378, %v42
  %v527 = vadd.f32 %v523, %v525
  %v528 = vadd.f32 %v524, %v526
  %v529 = vmul.f32 %v386, %v44
  %v530 = vmul.f32 %v386, %v45
  %v531 = vadd.f32 %v527, %v529
  %v532 = vadd.f32 %v528, %v530
  %v533 = vmul.f32 %v378, %v38
  %v534 = vmul.f32 %v378, %v39
  %v535 = vadd.f32 %v533, 0.0
  %v536 = vadd.f32 %v534, 0.0
  %v537 = vmul.f32 %v386, %v41
  %v538 = vmul.f32 %v386, %v42
  %v539 = vadd.f32 %v535, %v537
  %v540 = vadd.f32 %v536, %v538
  %v541 = vmul.f32 %v402, %v44
  %v542 = vmul.f32 %v402, %v45
  %v543 = vadd.f32 %v539, %v541
  %v544 = vadd.f32 %v540, %v542
  %v545 = vmul.f32 %v472, %v47
  %v546 = vmul.f32 %v472, %v48
  %v547 = vadd.f32 %v531, %v545
  %v548 = vadd.f32 %v532, %v546
  %v549 = vmul.f32 %v480, %v50
  %v550 = vmul.f32 %v480, %v51
  %v551 = vadd.f32 %v547, %v549
  %v552 = vadd.f32 %v548, %v550
  %v553 = vmul.f32 %v488, %v53
  %v554 = vmul.f32 %v488, %v54
  %v555 = vadd.f32 %v551, %v553
  %v556 = vadd.f32 %v552, %v554
  %v557 = vmul.f32 %v480, %v47
  %v558 = vmul.f32 %v480, %v48
  %v559 = vadd.f32 %v543, %v557
  %v560 = vadd.f32 %v544, %v558
  %v561 = vmul.f32 %v488, %v50
  %v562 = vmul.f32 %v488, %v51
  %v563 = vadd.f32 %v559, %v561
  %v564 = vadd.f32 %v560, %v562
  %v565 = vmul.f32 %v504, %v53
  %v566 = vmul.f32 %v504, %v54
  %v567 = vadd.f32 %v563, %v565
  %v568 = vadd.f32 %v564, %v566
  %v569 = vld [vmem:[%s0 + $0x6] sm:$0x1]
  %v570 = vld [vmem:[%s1 + $0x6] sm:$0x1]
  %v571 = vld [vmem:[%s2 + $0x6] sm:$0x1]
  %v572 = vld [vmem:[%s3 + $0x6] sm:$0x1]
  %v573 = vlaneseq
  %v574 = vshrl.u32 %v573, 7
  %v575 = vsub.s32 0, %v574
  %v576 = vrot.slane %v569, %v575
  %v577 = vmul.f32 %v576, %v56
  %v578 = vmul.f32 %v576, %v57
  %v579 = vadd.f32 %v555, %v577
  %v580 = vadd.f32 %v556, %v578
  %v581 = vlaneseq
  %v582 = vshrl.u32 %v581, 7
  %v583 = vsub.s32 0, %v582
  %v584 = vrot.slane %v570, %v583
  %v585 = vmul.f32 %v584, %v59
  %v586 = vmul.f32 %v584, %v60
  %v587 = vadd.f32 %v579, %v585
  %v588 = vadd.f32 %v580, %v586
  %v589 = vlaneseq
  %v590 = vshrl.u32 %v589, 7
  %v591 = vsub.s32 0, %v590
  %v592 = vrot.slane %v571, %v591
  %v593 = vmul.f32 %v592, %v62
  %v594 = vmul.f32 %v592, %v63
  %v595 = vadd.f32 %v587, %v593
  %v596 = vadd.f32 %v588, %v594
  %v597 = vmul.f32 %v584, %v56
  %v598 = vmul.f32 %v584, %v57
  %v599 = vadd.f32 %v567, %v597
  %v600 = vadd.f32 %v568, %v598
  %v601 = vmul.f32 %v592, %v59
  %v602 = vmul.f32 %v592, %v60
  %v603 = vadd.f32 %v599, %v601
  %v604 = vadd.f32 %v600, %v602
  %v605 = vlaneseq
  %v606 = vshrl.u32 %v605, 7
  %v607 = vsub.s32 0, %v606
  %v608 = vrot.slane %v572, %v607
  %v609 = vmul.f32 %v608, %v62
  %v610 = vmul.f32 %v608, %v63
  %v611 = vadd.f32 %v603, %v609
  %v612 = vadd.f32 %v604, %v610
  %v613 = vadd.f32 %v595, %v64
  %v614 = vadd.f32 %v596, %v65
  %v615 = vmax.f32 %v613, 0.0
  %v616 = vmax.f32 %v614, 0.0
  %v617 = vadd.f32 %v611, %v64
  %v618 = vadd.f32 %v612, %v65
  %v619 = vmax.f32 %v617, 0.0
  %v620 = vmax.f32 %v618, 0.0
  %v621 = vmax.f32 %v615, %v619
  %v622 = vmax.f32 %v616, %v620
  %v623 = vmul.f32 %v472, %v38
  %v624 = vmul.f32 %v472, %v39
  %v625 = vadd.f32 %v623, 0.0
  %v626 = vadd.f32 %v624, 0.0
  %v627 = vmul.f32 %v480, %v41
  %v628 = vmul.f32 %v480, %v42
  %v629 = vadd.f32 %v625, %v627
  %v630 = vadd.f32 %v626, %v628
  %v631 = vmul.f32 %v488, %v44
  %v632 = vmul.f32 %v488, %v45
  %v633 = vadd.f32 %v629, %v631
  %v634 = vadd.f32 %v630, %v632
  %v635 = vmul.f32 %v480, %v38
  %v636 = vmul.f32 %v480, %v39
  %v637 = vadd.f32 %v635, 0.0
  %v638 = vadd.f32 %v636, 0.0
  %v639 = vmul.f32 %v488, %v41
  %v640 = vmul.f32 %v488, %v42
  %v641 = vadd.f32 %v637, %v639
  %v642 = vadd.f32 %v638, %v640
  %v643 = vmul.f32 %v504, %v44
  %v644 = vmul.f32 %v504, %v45
  %v645 = vadd.f32 %v641, %v643
  %v646 = vadd.f32 %v642, %v644
  %v647 = vmul.f32 %v576, %v47
  %v648 = vmul.f32 %v576, %v48
  %v649 = vadd.f32 %v633, %v647
  %v650 = vadd.f32 %v634, %v648
  %v651 = vmul.f32 %v584, %v50
  %v652 = vmul.f32 %v584, %v51
  %v653 = vadd.f32 %v649, %v651
  %v654 = vadd.f32 %v650, %v652
  %v655 = vmul.f32 %v592, %v53
  %v656 = vmul.f32 %v592, %v54
  %v657 = vadd.f32 %v653, %v655
  %v658 = vadd.f32 %v654, %v656
  %v659 = vmul.f32 %v584, %v47
  %v660 = vmul.f32 %v584, %v48
  %v661 = vadd.f32 %v645, %v659
  %v662 = vadd.f32 %v646, %v660
  %v663 = vmul.f32 %v592, %v50
  %v664 = vmul.f32 %v592, %v51
  %v665 = vadd.f32 %v661, %v663
  %v666 = vadd.f32 %v662, %v664
  %v667 = vmul.f32 %v608, %v53
  %v668 = vmul.f32 %v608, %v54
  %v669 = vadd.f32 %v665, %v667
  %v670 = vadd.f32 %v666, %v668
  %v671 = vld [vmem:[%s0 + $0x7] sm:$0x1]
  %v672 = vld [vmem:[%s1 + $0x7] sm:$0x1]
  %v673 = vld [vmem:[%s2 + $0x7] sm:$0x1]
  %v674 = vld [vmem:[%s3 + $0x7] sm:$0x1]
  %v675 = vlaneseq
  %v676 = vshrl.u32 %v675, 7
  %v677 = vsub.s32 0, %v676
  %v678 = vrot.slane %v671, %v677
  %v679 = vmul.f32 %v678, %v56
  %v680 = vmul.f32 %v678, %v57
  %v681 = vadd.f32 %v657, %v679
  %v682 = vadd.f32 %v658, %v680
  %v683 = vlaneseq
  %v684 = vshrl.u32 %v683, 7
  %v685 = vsub.s32 0, %v684
  %v686 = vrot.slane %v672, %v685
  %v687 = vmul.f32 %v686, %v59
  %v688 = vmul.f32 %v686, %v60
  %v689 = vadd.f32 %v681, %v687
  %v690 = vadd.f32 %v682, %v688
  %v691 = vlaneseq
  %v692 = vshrl.u32 %v691, 7
  %v693 = vsub.s32 0, %v692
  %v694 = vrot.slane %v673, %v693
  %v695 = vmul.f32 %v694, %v62
  %v696 = vmul.f32 %v694, %v63
  %v697 = vadd.f32 %v689, %v695
  %v698 = vadd.f32 %v690, %v696
  %v699 = vmul.f32 %v686, %v56
  %v700 = vmul.f32 %v686, %v57
  %v701 = vadd.f32 %v669, %v699
  %v702 = vadd.f32 %v670, %v700
  %v703 = vmul.f32 %v694, %v59
  %v704 = vmul.f32 %v694, %v60
  %v705 = vadd.f32 %v701, %v703
  %v706 = vadd.f32 %v702, %v704
  %v707 = vlaneseq
  %v708 = vshrl.u32 %v707, 7
  %v709 = vsub.s32 0, %v708
  %v710 = vrot.slane %v674, %v709
  %v711 = vmul.f32 %v710, %v62
  %v712 = vmul.f32 %v710, %v63
  %v713 = vadd.f32 %v705, %v711
  %v714 = vadd.f32 %v706, %v712
  %v715 = vadd.f32 %v697, %v64
  %v716 = vadd.f32 %v698, %v65
  %v717 = vmax.f32 %v715, 0.0
  %v718 = vmax.f32 %v716, 0.0
  %v719 = vadd.f32 %v713, %v64
  %v720 = vadd.f32 %v714, %v65
  %v721 = vmax.f32 %v719, 0.0
  %v722 = vmax.f32 %v720, 0.0
  %v723 = vmax.f32 %v717, %v721
  %v724 = vmax.f32 %v718, %v722
  %v725 = vmax.f32 %v621, %v723
  %v726 = vmax.f32 %v622, %v724
  %v727 = vmul.f32 %v576, %v38
  %v728 = vmul.f32 %v576, %v39
  %v729 = vadd.f32 %v727, 0.0
  %v730 = vadd.f32 %v728, 0.0
  %v731 = vmul.f32 %v584, %v41
  %v732 = vmul.f32 %v584, %v42
  %v733 = vadd.f32 %v729, %v731
  %v734 = vadd.f32 %v730, %v732
  %v735 = vmul.f32 %v592, %v44
  %v736 = vmul.f32 %v592, %v45
  %v737 = vadd.f32 %v733, %v735
  %v738 = vadd.f32 %v734, %v736
  %v739 = vmul.f32 %v584, %v38
  %v740 = vmul.f32 %v584, %v39
  %v741 = vadd.f32 %v739, 0.0
  %v742 = vadd.f32 %v740, 0.0
  %v743 = vmul.f32 %v592, %v41
  %v744 = vmul.f32 %v592, %v42
  %v745 = vadd.f32 %v741, %v743
  %v746 = vadd.f32 %v742, %v744
  %v747 = vmul.f32 %v608, %v44
  %v748 = vmul.f32 %v608, %v45
  %v749 = vadd.f32 %v745, %v747
  %v750 = vadd.f32 %v746, %v748
  %v751 = vmul.f32 %v678, %v47
  %v752 = vmul.f32 %v678, %v48
  %v753 = vadd.f32 %v737, %v751
  %v754 = vadd.f32 %v738, %v752
  %v755 = vmul.f32 %v686, %v50
  %v756 = vmul.f32 %v686, %v51
  %v757 = vadd.f32 %v753, %v755
  %v758 = vadd.f32 %v754, %v756
  %v759 = vmul.f32 %v694, %v53
  %v760 = vmul.f32 %v694, %v54
  %v761 = vadd.f32 %v757, %v759
  %v762 = vadd.f32 %v758, %v760
  %v763 = vmul.f32 %v686, %v47
  %v764 = vmul.f32 %v686, %v48
  %v765 = vadd.f32 %v749, %v763
  %v766 = vadd.f32 %v750, %v764
  %v767 = vmul.f32 %v694, %v50
  %v768 = vmul.f32 %v694, %v51
  %v769 = vadd.f32 %v765, %v767
  %v770 = vadd.f32 %v766, %v768
  %v771 = vmul.f32 %v710, %v53
  %v772 = vmul.f32 %v710, %v54
  %v773 = vadd.f32 %v769, %v771
  %v774 = vadd.f32 %v770, %v772
  %v775 = vld [vmem:[%s0 + $0x8] sm:$0x1]
  %v776 = vld [vmem:[%s1 + $0x8] sm:$0x1]
  %v777 = vld [vmem:[%s2 + $0x8] sm:$0x1]
  %v778 = vld [vmem:[%s3 + $0x8] sm:$0x1]
  %v779 = vlaneseq
  %v780 = vshrl.u32 %v779, 7
  %v781 = vsub.s32 0, %v780
  %v782 = vrot.slane %v775, %v781
  %v783 = vmul.f32 %v782, %v56
  %v784 = vmul.f32 %v782, %v57
  %v785 = vadd.f32 %v761, %v783
  %v786 = vadd.f32 %v762, %v784
  %v787 = vlaneseq
  %v788 = vshrl.u32 %v787, 7
  %v789 = vsub.s32 0, %v788
  %v790 = vrot.slane %v776, %v789
  %v791 = vmul.f32 %v790, %v59
  %v792 = vmul.f32 %v790, %v60
  %v793 = vadd.f32 %v785, %v791
  %v794 = vadd.f32 %v786, %v792
  %v795 = vlaneseq
  %v796 = vshrl.u32 %v795, 7
  %v797 = vsub.s32 0, %v796
  %v798 = vrot.slane %v777, %v797
  %v799 = vmul.f32 %v798, %v62
  %v800 = vmul.f32 %v798, %v63
  %v801 = vadd.f32 %v793, %v799
  %v802 = vadd.f32 %v794, %v800
  %v803 = vmul.f32 %v790, %v56
  %v804 = vmul.f32 %v790, %v57
  %v805 = vadd.f32 %v773, %v803
  %v806 = vadd.f32 %v774, %v804
  %v807 = vmul.f32 %v798, %v59
  %v808 = vmul.f32 %v798, %v60
  %v809 = vadd.f32 %v805, %v807
  %v810 = vadd.f32 %v806, %v808
  %v811 = vlaneseq
  %v812 = vshrl.u32 %v811, 7
  %v813 = vsub.s32 0, %v812
  %v814 = vrot.slane %v778, %v813
  %v815 = vmul.f32 %v814, %v62
  %v816 = vmul.f32 %v814, %v63
  %v817 = vadd.f32 %v809, %v815
  %v818 = vadd.f32 %v810, %v816
  %v819 = vadd.f32 %v801, %v64
  %v820 = vadd.f32 %v802, %v65
  %v821 = vmax.f32 %v819, 0.0
  %v822 = vmax.f32 %v820, 0.0
  %v823 = vadd.f32 %v817, %v64
  %v824 = vadd.f32 %v818, %v65
  %v825 = vmax.f32 %v823, 0.0
  %v826 = vmax.f32 %v824, 0.0
  %v827 = vmax.f32 %v821, %v825
  %v828 = vmax.f32 %v822, %v826
  %v829 = vmul.f32 %v678, %v38
  %v830 = vmul.f32 %v678, %v39
  %v831 = vadd.f32 %v829, 0.0
  %v832 = vadd.f32 %v830, 0.0
  %v833 = vmul.f32 %v686, %v41
  %v834 = vmul.f32 %v686, %v42
  %v835 = vadd.f32 %v831, %v833
  %v836 = vadd.f32 %v832, %v834
  %v837 = vmul.f32 %v694, %v44
  %v838 = vmul.f32 %v694, %v45
  %v839 = vadd.f32 %v835, %v837
  %v840 = vadd.f32 %v836, %v838
  %v841 = vmul.f32 %v686, %v38
  %v842 = vmul.f32 %v686, %v39
  %v843 = vadd.f32 %v841, 0.0
  %v844 = vadd.f32 %v842, 0.0
  %v845 = vmul.f32 %v694, %v41
  %v846 = vmul.f32 %v694, %v42
  %v847 = vadd.f32 %v843, %v845
  %v848 = vadd.f32 %v844, %v846
  %v849 = vmul.f32 %v710, %v44
  %v850 = vmul.f32 %v710, %v45
  %v851 = vadd.f32 %v847, %v849
  %v852 = vadd.f32 %v848, %v850
  %v853 = vmul.f32 %v782, %v47
  %v854 = vmul.f32 %v782, %v48
  %v855 = vadd.f32 %v839, %v853
  %v856 = vadd.f32 %v840, %v854
  %v857 = vmul.f32 %v790, %v50
  %v858 = vmul.f32 %v790, %v51
  %v859 = vadd.f32 %v855, %v857
  %v860 = vadd.f32 %v856, %v858
  %v861 = vmul.f32 %v798, %v53
  %v862 = vmul.f32 %v798, %v54
  %v863 = vadd.f32 %v859, %v861
  %v864 = vadd.f32 %v860, %v862
  %v865 = vmul.f32 %v790, %v47
  %v866 = vmul.f32 %v790, %v48
  %v867 = vadd.f32 %v851, %v865
  %v868 = vadd.f32 %v852, %v866
  %v869 = vmul.f32 %v798, %v50
  %v870 = vmul.f32 %v798, %v51
  %v871 = vadd.f32 %v867, %v869
  %v872 = vadd.f32 %v868, %v870
  %v873 = vmul.f32 %v814, %v53
  %v874 = vmul.f32 %v814, %v54
  %v875 = vadd.f32 %v871, %v873
  %v876 = vadd.f32 %v872, %v874
  %v877 = vld [vmem:[%s0 + $0x9] sm:$0x1]
  %v878 = vld [vmem:[%s1 + $0x9] sm:$0x1]
  %v879 = vld [vmem:[%s2 + $0x9] sm:$0x1]
  %v880 = vld [vmem:[%s3 + $0x9] sm:$0x1]
  %v881 = vlaneseq
  %v882 = vshrl.u32 %v881, 7
  %v883 = vsub.s32 0, %v882
  %v884 = vrot.slane %v877, %v883
  %v885 = vmul.f32 %v884, %v56
  %v886 = vmul.f32 %v884, %v57
  %v887 = vadd.f32 %v863, %v885
  %v888 = vadd.f32 %v864, %v886
  %v889 = vlaneseq
  %v890 = vshrl.u32 %v889, 7
  %v891 = vsub.s32 0, %v890
  %v892 = vrot.slane %v878, %v891
  %v893 = vmul.f32 %v892, %v59
  %v894 = vmul.f32 %v892, %v60
  %v895 = vadd.f32 %v887, %v893
  %v896 = vadd.f32 %v888, %v894
  %v897 = vlaneseq
  %v898 = vshrl.u32 %v897, 7
  %v899 = vsub.s32 0, %v898
  %v900 = vrot.slane %v879, %v899
  %v901 = vmul.f32 %v900, %v62
  %v902 = vmul.f32 %v900, %v63
  %v903 = vadd.f32 %v895, %v901
  %v904 = vadd.f32 %v896, %v902
  %v905 = vmul.f32 %v892, %v56
  %v906 = vmul.f32 %v892, %v57
  %v907 = vadd.f32 %v875, %v905
  %v908 = vadd.f32 %v876, %v906
  %v909 = vmul.f32 %v900, %v59
  %v910 = vmul.f32 %v900, %v60
  %v911 = vadd.f32 %v907, %v909
  %v912 = vadd.f32 %v908, %v910
  %v913 = vlaneseq
  %v914 = vshrl.u32 %v913, 7
  %v915 = vsub.s32 0, %v914
  %v916 = vrot.slane %v880, %v915
  %v917 = vmul.f32 %v916, %v62
  %v918 = vmul.f32 %v916, %v63
  %v919 = vadd.f32 %v911, %v917
  %v920 = vadd.f32 %v912, %v918
  %v921 = vadd.f32 %v903, %v64
  %v922 = vadd.f32 %v904, %v65
  %v923 = vmax.f32 %v921, 0.0
  %v924 = vmax.f32 %v922, 0.0
  %v925 = vadd.f32 %v919, %v64
  %v926 = vadd.f32 %v920, %v65
  %v927 = vmax.f32 %v925, 0.0
  %v928 = vmax.f32 %v926, 0.0
  %v929 = vmax.f32 %v923, %v927
  %v930 = vmax.f32 %v924, %v928
  %v931 = vmax.f32 %v827, %v929
  %v932 = vmax.f32 %v828, %v930
  %v933 = vmul.f32 %v782, %v38
  %v934 = vmul.f32 %v782, %v39
  %v935 = vadd.f32 %v933, 0.0
  %v936 = vadd.f32 %v934, 0.0
  %v937 = vmul.f32 %v790, %v41
  %v938 = vmul.f32 %v790, %v42
  %v939 = vadd.f32 %v935, %v937
  %v940 = vadd.f32 %v936, %v938
  %v941 = vmul.f32 %v798, %v44
  %v942 = vmul.f32 %v798, %v45
  %v943 = vadd.f32 %v939, %v941
  %v944 = vadd.f32 %v940, %v942
  %v945 = vmul.f32 %v790, %v38
  %v946 = vmul.f32 %v790, %v39
  %v947 = vadd.f32 %v945, 0.0
  %v948 = vadd.f32 %v946, 0.0
  %v949 = vmul.f32 %v798, %v41
  %v950 = vmul.f32 %v798, %v42
  %v951 = vadd.f32 %v947, %v949
  %v952 = vadd.f32 %v948, %v950
  %v953 = vmul.f32 %v814, %v44
  %v954 = vmul.f32 %v814, %v45
  %v955 = vadd.f32 %v951, %v953
  %v956 = vadd.f32 %v952, %v954
  %v957 = vmul.f32 %v884, %v47
  %v958 = vmul.f32 %v884, %v48
  %v959 = vadd.f32 %v943, %v957
  %v960 = vadd.f32 %v944, %v958
  %v961 = vmul.f32 %v892, %v50
  %v962 = vmul.f32 %v892, %v51
  %v963 = vadd.f32 %v959, %v961
  %v964 = vadd.f32 %v960, %v962
  %v965 = vmul.f32 %v900, %v53
  %v966 = vmul.f32 %v900, %v54
  %v967 = vadd.f32 %v963, %v965
  %v968 = vadd.f32 %v964, %v966
  %v969 = vmul.f32 %v892, %v47
  %v970 = vmul.f32 %v892, %v48
  %v971 = vadd.f32 %v955, %v969
  %v972 = vadd.f32 %v956, %v970
  %v973 = vmul.f32 %v900, %v50
  %v974 = vmul.f32 %v900, %v51
  %v975 = vadd.f32 %v971, %v973
  %v976 = vadd.f32 %v972, %v974
  %v977 = vmul.f32 %v916, %v53
  %v978 = vmul.f32 %v916, %v54
  %v979 = vadd.f32 %v975, %v977
  %v980 = vadd.f32 %v976, %v978
  %v981 = vld [vmem:[%s0 + $0xa] sm:$0x1]
  %v982 = vld [vmem:[%s1 + $0xa] sm:$0x1]
  %v983 = vld [vmem:[%s2 + $0xa] sm:$0x1]
  %v984 = vld [vmem:[%s3 + $0xa] sm:$0x1]
  %v985 = vlaneseq
  %v986 = vshrl.u32 %v985, 7
  %v987 = vsub.s32 0, %v986
  %v988 = vrot.slane %v981, %v987
  %v989 = vmul.f32 %v988, %v56
  %v990 = vmul.f32 %v988, %v57
  %v991 = vadd.f32 %v967, %v989
  %v992 = vadd.f32 %v968, %v990
  %v993 = vlaneseq
  %v994 = vshrl.u32 %v993, 7
  %v995 = vsub.s32 0, %v994
  %v996 = vrot.slane %v982, %v995
  %v997 = vmul.f32 %v996, %v59
  %v998 = vmul.f32 %v996, %v60
  %v999 = vadd.f32 %v991, %v997
  %v1000 = vadd.f32 %v992, %v998
  %v1001 = vlaneseq
  %v1002 = vshrl.u32 %v1001, 7
  %v1003 = vsub.s32 0, %v1002
  %v1004 = vrot.slane %v983, %v1003
  %v1005 = vmul.f32 %v1004, %v62
  %v1006 = vmul.f32 %v1004, %v63
  %v1007 = vadd.f32 %v999, %v1005
  %v1008 = vadd.f32 %v1000, %v1006
  %v1009 = vmul.f32 %v996, %v56
  %v1010 = vmul.f32 %v996, %v57
  %v1011 = vadd.f32 %v979, %v1009
  %v1012 = vadd.f32 %v980, %v1010
  %v1013 = vmul.f32 %v1004, %v59
  %v1014 = vmul.f32 %v1004, %v60
  %v1015 = vadd.f32 %v1011, %v1013
  %v1016 = vadd.f32 %v1012, %v1014
  %v1017 = vlaneseq
  %v1018 = vshrl.u32 %v1017, 7
  %v1019 = vsub.s32 0, %v1018
  %v1020 = vrot.slane %v984, %v1019
  %v1021 = vmul.f32 %v1020, %v62
  %v1022 = vmul.f32 %v1020, %v63
  %v1023 = vadd.f32 %v1015, %v1021
  %v1024 = vadd.f32 %v1016, %v1022
  %v1025 = vadd.f32 %v1007, %v64
  %v1026 = vadd.f32 %v1008, %v65
  %v1027 = vmax.f32 %v1025, 0.0
  %v1028 = vmax.f32 %v1026, 0.0
  %v1029 = vadd.f32 %v1023, %v64
  %v1030 = vadd.f32 %v1024, %v65
  %v1031 = vmax.f32 %v1029, 0.0
  %v1032 = vmax.f32 %v1030, 0.0
  %v1033 = vmax.f32 %v1027, %v1031
  %v1034 = vmax.f32 %v1028, %v1032
  %v1035 = vmul.f32 %v884, %v38
  %v1036 = vmul.f32 %v884, %v39
  %v1037 = vadd.f32 %v1035, 0.0
  %v1038 = vadd.f32 %v1036, 0.0
  %v1039 = vmul.f32 %v892, %v41
  %v1040 = vmul.f32 %v892, %v42
  %v1041 = vadd.f32 %v1037, %v1039
  %v1042 = vadd.f32 %v1038, %v1040
  %v1043 = vmul.f32 %v900, %v44
  %v1044 = vmul.f32 %v900, %v45
  %v1045 = vadd.f32 %v1041, %v1043
  %v1046 = vadd.f32 %v1042, %v1044
  %v1047 = vmul.f32 %v892, %v38
  %v1048 = vmul.f32 %v892, %v39
  %v1049 = vadd.f32 %v1047, 0.0
  %v1050 = vadd.f32 %v1048, 0.0
  %v1051 = vmul.f32 %v900, %v41
  %v1052 = vmul.f32 %v900, %v42
  %v1053 = vadd.f32 %v1049, %v1051
  %v1054 = vadd.f32 %v1050, %v1052
  %v1055 = vmul.f32 %v916, %v44
  %v1056 = vmul.f32 %v916, %v45
  %v1057 = vadd.f32 %v1053, %v1055
  %v1058 = vadd.f32 %v1054, %v1056
  %v1059 = vmul.f32 %v988, %v47
  %v1060 = vmul.f32 %v988, %v48
  %v1061 = vadd.f32 %v1045, %v1059
  %v1062 = vadd.f32 %v1046, %v1060
  %v1063 = vmul.f32 %v996, %v50
  %v1064 = vmul.f32 %v996, %v51
  %v1065 = vadd.f32 %v1061, %v1063
  %v1066 = vadd.f32 %v1062, %v1064
  %v1067 = vmul.f32 %v1004, %v53
  %v1068 = vmul.f32 %v1004, %v54
  %v1069 = vadd.f32 %v1065, %v1067
  %v1070 = vadd.f32 %v1066, %v1068
  %v1071 = vmul.f32 %v996, %v47
  %v1072 = vmul.f32 %v996, %v48
  %v1073 = vadd.f32 %v1057, %v1071
  %v1074 = vadd.f32 %v1058, %v1072
  %v1075 = vmul.f32 %v1004, %v50
  %v1076 = vmul.f32 %v1004, %v51
  %v1077 = vadd.f32 %v1073, %v1075
  %v1078 = vadd.f32 %v1074, %v1076
  %v1079 = vmul.f32 %v1020, %v53
  %v1080 = vmul.f32 %v1020, %v54
  %v1081 = vadd.f32 %v1077, %v1079
  %v1082 = vadd.f32 %v1078, %v1080
  %v1083 = vld [vmem:[%s0 + $0xb] sm:$0x1]
  %v1084 = vld [vmem:[%s1 + $0xb] sm:$0x1]
  %v1085 = vld [vmem:[%s2 + $0xb] sm:$0x1]
  %v1086 = vld [vmem:[%s3 + $0xb] sm:$0x1]
  %v1087 = vlaneseq
  %v1088 = vshrl.u32 %v1087, 7
  %v1089 = vsub.s32 0, %v1088
  %v1090 = vrot.slane %v1083, %v1089
  %v1091 = vmul.f32 %v1090, %v56
  %v1092 = vmul.f32 %v1090, %v57
  %v1093 = vadd.f32 %v1069, %v1091
  %v1094 = vadd.f32 %v1070, %v1092
  %v1095 = vlaneseq
  %v1096 = vshrl.u32 %v1095, 7
  %v1097 = vsub.s32 0, %v1096
  %v1098 = vrot.slane %v1084, %v1097
  %v1099 = vmul.f32 %v1098, %v59
  %v1100 = vmul.f32 %v1098, %v60
  %v1101 = vadd.f32 %v1093, %v1099
  %v1102 = vadd.f32 %v1094, %v1100
  %v1103 = vlaneseq
  %v1104 = vshrl.u32 %v1103, 7
  %v1105 = vsub.s32 0, %v1104
  %v1106 = vrot.slane %v1085, %v1105
  %v1107 = vmul.f32 %v1106, %v62
  %v1108 = vmul.f32 %v1106, %v63
  %v1109 = vadd.f32 %v1101, %v1107
  %v1110 = vadd.f32 %v1102, %v1108
  %v1111 = vmul.f32 %v1098, %v56
  %v1112 = vmul.f32 %v1098, %v57
  %v1113 = vadd.f32 %v1081, %v1111
  %v1114 = vadd.f32 %v1082, %v1112
  %v1115 = vmul.f32 %v1106, %v59
  %v1116 = vmul.f32 %v1106, %v60
  %v1117 = vadd.f32 %v1113, %v1115
  %v1118 = vadd.f32 %v1114, %v1116
  %v1119 = vlaneseq
  %v1120 = vshrl.u32 %v1119, 7
  %v1121 = vsub.s32 0, %v1120
  %v1122 = vrot.slane %v1086, %v1121
  %v1123 = vmul.f32 %v1122, %v62
  %v1124 = vmul.f32 %v1122, %v63
  %v1125 = vadd.f32 %v1117, %v1123
  %v1126 = vadd.f32 %v1118, %v1124
  %v1127 = vadd.f32 %v1109, %v64
  %v1128 = vadd.f32 %v1110, %v65
  %v1129 = vmax.f32 %v1127, 0.0
  %v1130 = vmax.f32 %v1128, 0.0
  %v1131 = vadd.f32 %v1125, %v64
  %v1132 = vadd.f32 %v1126, %v65
  %v1133 = vmax.f32 %v1131, 0.0
  %v1134 = vmax.f32 %v1132, 0.0
  %v1135 = vmax.f32 %v1129, %v1133
  %v1136 = vmax.f32 %v1130, %v1134
  %v1137 = vmax.f32 %v1033, %v1135
  %v1138 = vmax.f32 %v1034, %v1136
  %v1139 = vmul.f32 %v988, %v38
  %v1140 = vmul.f32 %v988, %v39
  %v1141 = vadd.f32 %v1139, 0.0
  %v1142 = vadd.f32 %v1140, 0.0
  %v1143 = vmul.f32 %v996, %v41
  %v1144 = vmul.f32 %v996, %v42
  %v1145 = vadd.f32 %v1141, %v1143
  %v1146 = vadd.f32 %v1142, %v1144
  %v1147 = vmul.f32 %v1004, %v44
  %v1148 = vmul.f32 %v1004, %v45
  %v1149 = vadd.f32 %v1145, %v1147
  %v1150 = vadd.f32 %v1146, %v1148
  %v1151 = vmul.f32 %v996, %v38
  %v1152 = vmul.f32 %v996, %v39
  %v1153 = vadd.f32 %v1151, 0.0
  %v1154 = vadd.f32 %v1152, 0.0
  %v1155 = vmul.f32 %v1004, %v41
  %v1156 = vmul.f32 %v1004, %v42
  %v1157 = vadd.f32 %v1153, %v1155
  %v1158 = vadd.f32 %v1154, %v1156
  %v1159 = vmul.f32 %v1020, %v44
  %v1160 = vmul.f32 %v1020, %v45
  %v1161 = vadd.f32 %v1157, %v1159
  %v1162 = vadd.f32 %v1158, %v1160
  %v1163 = vmul.f32 %v1090, %v47
  %v1164 = vmul.f32 %v1090, %v48
  %v1165 = vadd.f32 %v1149, %v1163
  %v1166 = vadd.f32 %v1150, %v1164
  %v1167 = vmul.f32 %v1098, %v50
  %v1168 = vmul.f32 %v1098, %v51
  %v1169 = vadd.f32 %v1165, %v1167
  %v1170 = vadd.f32 %v1166, %v1168
  %v1171 = vmul.f32 %v1106, %v53
  %v1172 = vmul.f32 %v1106, %v54
  %v1173 = vadd.f32 %v1169, %v1171
  %v1174 = vadd.f32 %v1170, %v1172
  %v1175 = vmul.f32 %v1098, %v47
  %v1176 = vmul.f32 %v1098, %v48
  %v1177 = vadd.f32 %v1161, %v1175
  %v1178 = vadd.f32 %v1162, %v1176
  %v1179 = vmul.f32 %v1106, %v50
  %v1180 = vmul.f32 %v1106, %v51
  %v1181 = vadd.f32 %v1177, %v1179
  %v1182 = vadd.f32 %v1178, %v1180
  %v1183 = vmul.f32 %v1122, %v53
  %v1184 = vmul.f32 %v1122, %v54
  %v1185 = vadd.f32 %v1181, %v1183
  %v1186 = vadd.f32 %v1182, %v1184
  %v1187 = vld [vmem:[%s0 + $0xc] sm:$0x1]
  %v1188 = vld [vmem:[%s1 + $0xc] sm:$0x1]
  %v1189 = vld [vmem:[%s2 + $0xc] sm:$0x1]
  %v1190 = vld [vmem:[%s3 + $0xc] sm:$0x1]
  %v1191 = vlaneseq
  %v1192 = vshrl.u32 %v1191, 7
  %v1193 = vsub.s32 0, %v1192
  %v1194 = vrot.slane %v1187, %v1193
  %v1195 = vmul.f32 %v1194, %v56
  %v1196 = vmul.f32 %v1194, %v57
  %v1197 = vadd.f32 %v1173, %v1195
  %v1198 = vadd.f32 %v1174, %v1196
  %v1199 = vlaneseq
  %v1200 = vshrl.u32 %v1199, 7
  %v1201 = vsub.s32 0, %v1200
  %v1202 = vrot.slane %v1188, %v1201
  %v1203 = vmul.f32 %v1202, %v59
  %v1204 = vmul.f32 %v1202, %v60
  %v1205 = vadd.f32 %v1197, %v1203
  %v1206 = vadd.f32 %v1198, %v1204
  %v1207 = vlaneseq
  %v1208 = vshrl.u32 %v1207, 7
  %v1209 = vsub.s32 0, %v1208
  %v1210 = vrot.slane %v1189, %v1209
  %v1211 = vmul.f32 %v1210, %v62
  %v1212 = vmul.f32 %v1210, %v63
  %v1213 = vadd.f32 %v1205, %v1211
  %v1214 = vadd.f32 %v1206, %v1212
  %v1215 = vmul.f32 %v1202, %v56
  %v1216 = vmul.f32 %v1202, %v57
  %v1217 = vadd.f32 %v1185, %v1215
  %v1218 = vadd.f32 %v1186, %v1216
  %v1219 = vmul.f32 %v1210, %v59
  %v1220 = vmul.f32 %v1210, %v60
  %v1221 = vadd.f32 %v1217, %v1219
  %v1222 = vadd.f32 %v1218, %v1220
  %v1223 = vlaneseq
  %v1224 = vshrl.u32 %v1223, 7
  %v1225 = vsub.s32 0, %v1224
  %v1226 = vrot.slane %v1190, %v1225
  %v1227 = vmul.f32 %v1226, %v62
  %v1228 = vmul.f32 %v1226, %v63
  %v1229 = vadd.f32 %v1221, %v1227
  %v1230 = vadd.f32 %v1222, %v1228
  %v1231 = vadd.f32 %v1213, %v64
  %v1232 = vadd.f32 %v1214, %v65
  %v1233 = vmax.f32 %v1231, 0.0
  %v1234 = vmax.f32 %v1232, 0.0
  %v1235 = vadd.f32 %v1229, %v64
  %v1236 = vadd.f32 %v1230, %v65
  %v1237 = vmax.f32 %v1235, 0.0
  %v1238 = vmax.f32 %v1236, 0.0
  %v1239 = vmax.f32 %v1233, %v1237
  %v1240 = vmax.f32 %v1234, %v1238
  %v1241 = vmul.f32 %v1090, %v38
  %v1242 = vmul.f32 %v1090, %v39
  %v1243 = vadd.f32 %v1241, 0.0
  %v1244 = vadd.f32 %v1242, 0.0
  %v1245 = vmul.f32 %v1098, %v41
  %v1246 = vmul.f32 %v1098, %v42
  %v1247 = vadd.f32 %v1243, %v1245
  %v1248 = vadd.f32 %v1244, %v1246
  %v1249 = vmul.f32 %v1106, %v44
  %v1250 = vmul.f32 %v1106, %v45
  %v1251 = vadd.f32 %v1247, %v1249
  %v1252 = vadd.f32 %v1248, %v1250
  %v1253 = vmul.f32 %v1098, %v38
  %v1254 = vmul.f32 %v1098, %v39
  %v1255 = vadd.f32 %v1253, 0.0
  %v1256 = vadd.f32 %v1254, 0.0
  %v1257 = vmul.f32 %v1106, %v41
  %v1258 = vmul.f32 %v1106, %v42
  %v1259 = vadd.f32 %v1255, %v1257
  %v1260 = vadd.f32 %v1256, %v1258
  %v1261 = vmul.f32 %v1122, %v44
  %v1262 = vmul.f32 %v1122, %v45
  %v1263 = vadd.f32 %v1259, %v1261
  %v1264 = vadd.f32 %v1260, %v1262
  %v1265 = vmul.f32 %v1194, %v47
  %v1266 = vmul.f32 %v1194, %v48
  %v1267 = vadd.f32 %v1251, %v1265
  %v1268 = vadd.f32 %v1252, %v1266
  %v1269 = vmul.f32 %v1202, %v50
  %v1270 = vmul.f32 %v1202, %v51
  %v1271 = vadd.f32 %v1267, %v1269
  %v1272 = vadd.f32 %v1268, %v1270
  %v1273 = vmul.f32 %v1210, %v53
  %v1274 = vmul.f32 %v1210, %v54
  %v1275 = vadd.f32 %v1271, %v1273
  %v1276 = vadd.f32 %v1272, %v1274
  %v1277 = vmul.f32 %v1202, %v47
  %v1278 = vmul.f32 %v1202, %v48
  %v1279 = vadd.f32 %v1263, %v1277
  %v1280 = vadd.f32 %v1264, %v1278
  %v1281 = vmul.f32 %v1210, %v50
  %v1282 = vmul.f32 %v1210, %v51
  %v1283 = vadd.f32 %v1279, %v1281
  %v1284 = vadd.f32 %v1280, %v1282
  %v1285 = vmul.f32 %v1226, %v53
  %v1286 = vmul.f32 %v1226, %v54
  %v1287 = vadd.f32 %v1283, %v1285
  %v1288 = vadd.f32 %v1284, %v1286
  %v1289 = vld [vmem:[%s0 + $0xd] sm:$0x1]
  %v1290 = vld [vmem:[%s1 + $0xd] sm:$0x1]
  %v1291 = vld [vmem:[%s2 + $0xd] sm:$0x1]
  %v1292 = vld [vmem:[%s3 + $0xd] sm:$0x1]
  %v1293 = vlaneseq
  %v1294 = vshrl.u32 %v1293, 7
  %v1295 = vsub.s32 0, %v1294
  %v1296 = vrot.slane %v1289, %v1295
  %v1297 = vmul.f32 %v1296, %v56
  %v1298 = vmul.f32 %v1296, %v57
  %v1299 = vadd.f32 %v1275, %v1297
  %v1300 = vadd.f32 %v1276, %v1298
  %v1301 = vlaneseq
  %v1302 = vshrl.u32 %v1301, 7
  %v1303 = vsub.s32 0, %v1302
  %v1304 = vrot.slane %v1290, %v1303
  %v1305 = vmul.f32 %v1304, %v59
  %v1306 = vmul.f32 %v1304, %v60
  %v1307 = vadd.f32 %v1299, %v1305
  %v1308 = vadd.f32 %v1300, %v1306
  %v1309 = vlaneseq
  %v1310 = vshrl.u32 %v1309, 7
  %v1311 = vsub.s32 0, %v1310
  %v1312 = vrot.slane %v1291, %v1311
  %v1313 = vmul.f32 %v1312, %v62
  %v1314 = vmul.f32 %v1312, %v63
  %v1315 = vadd.f32 %v1307, %v1313
  %v1316 = vadd.f32 %v1308, %v1314
  %v1317 = vmul.f32 %v1304, %v56
  %v1318 = vmul.f32 %v1304, %v57
  %v1319 = vadd.f32 %v1287, %v1317
  %v1320 = vadd.f32 %v1288, %v1318
  %v1321 = vmul.f32 %v1312, %v59
  %v1322 = vmul.f32 %v1312, %v60
  %v1323 = vadd.f32 %v1319, %v1321
  %v1324 = vadd.f32 %v1320, %v1322
  %v1325 = vlaneseq
  %v1326 = vshrl.u32 %v1325, 7
  %v1327 = vsub.s32 0, %v1326
  %v1328 = vrot.slane %v1292, %v1327
  %v1329 = vmul.f32 %v1328, %v62
  %v1330 = vmul.f32 %v1328, %v63
  %v1331 = vadd.f32 %v1323, %v1329
  %v1332 = vadd.f32 %v1324, %v1330
  %v1333 = vadd.f32 %v1315, %v64
  %v1334 = vadd.f32 %v1316, %v65
  %v1335 = vmax.f32 %v1333, 0.0
  %v1336 = vmax.f32 %v1334, 0.0
  %v1337 = vadd.f32 %v1331, %v64
  %v1338 = vadd.f32 %v1332, %v65
  %v1339 = vmax.f32 %v1337, 0.0
  %v1340 = vmax.f32 %v1338, 0.0
  %v1341 = vmax.f32 %v1335, %v1339
  %v1342 = vmax.f32 %v1336, %v1340
  %v1343 = vmax.f32 %v1239, %v1341
  %v1344 = vmax.f32 %v1240, %v1342
  %v1345 = vmul.f32 %v1194, %v38
  %v1346 = vmul.f32 %v1194, %v39
  %v1347 = vadd.f32 %v1345, 0.0
  %v1348 = vadd.f32 %v1346, 0.0
  %v1349 = vmul.f32 %v1202, %v41
  %v1350 = vmul.f32 %v1202, %v42
  %v1351 = vadd.f32 %v1347, %v1349
  %v1352 = vadd.f32 %v1348, %v1350
  %v1353 = vmul.f32 %v1210, %v44
  %v1354 = vmul.f32 %v1210, %v45
  %v1355 = vadd.f32 %v1351, %v1353
  %v1356 = vadd.f32 %v1352, %v1354
  %v1357 = vmul.f32 %v1202, %v38
  %v1358 = vmul.f32 %v1202, %v39
  %v1359 = vadd.f32 %v1357, 0.0
  %v1360 = vadd.f32 %v1358, 0.0
  %v1361 = vmul.f32 %v1210, %v41
  %v1362 = vmul.f32 %v1210, %v42
  %v1363 = vadd.f32 %v1359, %v1361
  %v1364 = vadd.f32 %v1360, %v1362
  %v1365 = vmul.f32 %v1226, %v44
  %v1366 = vmul.f32 %v1226, %v45
  %v1367 = vadd.f32 %v1363, %v1365
  %v1368 = vadd.f32 %v1364, %v1366
  %v1369 = vmul.f32 %v1296, %v47
  %v1370 = vmul.f32 %v1296, %v48
  %v1371 = vadd.f32 %v1355, %v1369
  %v1372 = vadd.f32 %v1356, %v1370
  %v1373 = vmul.f32 %v1304, %v50
  %v1374 = vmul.f32 %v1304, %v51
  %v1375 = vadd.f32 %v1371, %v1373
  %v1376 = vadd.f32 %v1372, %v1374
  %v1377 = vmul.f32 %v1312, %v53
  %v1378 = vmul.f32 %v1312, %v54
  %v1379 = vadd.f32 %v1375, %v1377
  %v1380 = vadd.f32 %v1376, %v1378
  %v1381 = vmul.f32 %v1304, %v47
  %v1382 = vmul.f32 %v1304, %v48
  %v1383 = vadd.f32 %v1367, %v1381
  %v1384 = vadd.f32 %v1368, %v1382
  %v1385 = vmul.f32 %v1312, %v50
  %v1386 = vmul.f32 %v1312, %v51
  %v1387 = vadd.f32 %v1383, %v1385
  %v1388 = vadd.f32 %v1384, %v1386
  %v1389 = vmul.f32 %v1328, %v53
  %v1390 = vmul.f32 %v1328, %v54
  %v1391 = vadd.f32 %v1387, %v1389
  %v1392 = vadd.f32 %v1388, %v1390
  %v1393 = vld [vmem:[%s0 + $0xe] sm:$0x1]
  %v1394 = vld [vmem:[%s1 + $0xe] sm:$0x1]
  %v1395 = vld [vmem:[%s2 + $0xe] sm:$0x1]
  %v1396 = vld [vmem:[%s3 + $0xe] sm:$0x1]
  %v1397 = vlaneseq
  %v1398 = vshrl.u32 %v1397, 7
  %v1399 = vsub.s32 0, %v1398
  %v1400 = vrot.slane %v1393, %v1399
  %v1401 = vmul.f32 %v1400, %v56
  %v1402 = vmul.f32 %v1400, %v57
  %v1403 = vadd.f32 %v1379, %v1401
  %v1404 = vadd.f32 %v1380, %v1402
  %v1405 = vlaneseq
  %v1406 = vshrl.u32 %v1405, 7
  %v1407 = vsub.s32 0, %v1406
  %v1408 = vrot.slane %v1394, %v1407
  %v1409 = vmul.f32 %v1408, %v59
  %v1410 = vmul.f32 %v1408, %v60
  %v1411 = vadd.f32 %v1403, %v1409
  %v1412 = vadd.f32 %v1404, %v1410
  %v1413 = vlaneseq
  %v1414 = vshrl.u32 %v1413, 7
  %v1415 = vsub.s32 0, %v1414
  %v1416 = vrot.slane %v1395, %v1415
  %v1417 = vmul.f32 %v1416, %v62
  %v1418 = vmul.f32 %v1416, %v63
  %v1419 = vadd.f32 %v1411, %v1417
  %v1420 = vadd.f32 %v1412, %v1418
  %v1421 = vmul.f32 %v1408, %v56
  %v1422 = vmul.f32 %v1408, %v57
  %v1423 = vadd.f32 %v1391, %v1421
  %v1424 = vadd.f32 %v1392, %v1422
  %v1425 = vmul.f32 %v1416, %v59
  %v1426 = vmul.f32 %v1416, %v60
  %v1427 = vadd.f32 %v1423, %v1425
  %v1428 = vadd.f32 %v1424, %v1426
  %v1429 = vlaneseq
  %v1430 = vshrl.u32 %v1429, 7
  %v1431 = vsub.s32 0, %v1430
  %v1432 = vrot.slane %v1396, %v1431
  %v1433 = vmul.f32 %v1432, %v62
  %v1434 = vmul.f32 %v1432, %v63
  %v1435 = vadd.f32 %v1427, %v1433
  %v1436 = vadd.f32 %v1428, %v1434
  %v1437 = vadd.f32 %v1419, %v64
  %v1438 = vadd.f32 %v1420, %v65
  %v1439 = vmax.f32 %v1437, 0.0
  %v1440 = vmax.f32 %v1438, 0.0
  %v1441 = vadd.f32 %v1435, %v64
  %v1442 = vadd.f32 %v1436, %v65
  %v1443 = vmax.f32 %v1441, 0.0
  %v1444 = vmax.f32 %v1442, 0.0
  %v1445 = vmax.f32 %v1439, %v1443
  %v1446 = vmax.f32 %v1440, %v1444
  %v1447 = vmul.f32 %v1296, %v38
  %v1448 = vmul.f32 %v1296, %v39
  %v1449 = vadd.f32 %v1447, 0.0
  %v1450 = vadd.f32 %v1448, 0.0
  %v1451 = vmul.f32 %v1304, %v41
  %v1452 = vmul.f32 %v1304, %v42
  %v1453 = vadd.f32 %v1449, %v1451
  %v1454 = vadd.f32 %v1450, %v1452
  %v1455 = vmul.f32 %v1312, %v44
  %v1456 = vmul.f32 %v1312, %v45
  %v1457 = vadd.f32 %v1453, %v1455
  %v1458 = vadd.f32 %v1454, %v1456
  %v1459 = vmul.f32 %v1304, %v38
  %v1460 = vmul.f32 %v1304, %v39
  %v1461 = vadd.f32 %v1459, 0.0
  %v1462 = vadd.f32 %v1460, 0.0
  %v1463 = vmul.f32 %v1312, %v41
  %v1464 = vmul.f32 %v1312, %v42
  %v1465 = vadd.f32 %v1461, %v1463
  %v1466 = vadd.f32 %v1462, %v1464
  %v1467 = vmul.f32 %v1328, %v44
  %v1468 = vmul.f32 %v1328, %v45
  %v1469 = vadd.f32 %v1465, %v1467
  %v1470 = vadd.f32 %v1466, %v1468
  %v1471 = vmul.f32 %v1400, %v47
  %v1472 = vmul.f32 %v1400, %v48
  %v1473 = vadd.f32 %v1457, %v1471
  %v1474 = vadd.f32 %v1458, %v1472
  %v1475 = vmul.f32 %v1408, %v50
  %v1476 = vmul.f32 %v1408, %v51
  %v1477 = vadd.f32 %v1473, %v1475
  %v1478 = vadd.f32 %v1474, %v1476
  %v1479 = vmul.f32 %v1416, %v53
  %v1480 = vmul.f32 %v1416, %v54
  %v1481 = vadd.f32 %v1477, %v1479
  %v1482 = vadd.f32 %v1478, %v1480
  %v1483 = vmul.f32 %v1408, %v47
  %v1484 = vmul.f32 %v1408, %v48
  %v1485 = vadd.f32 %v1469, %v1483
  %v1486 = vadd.f32 %v1470, %v1484
  %v1487 = vmul.f32 %v1416, %v50
  %v1488 = vmul.f32 %v1416, %v51
  %v1489 = vadd.f32 %v1485, %v1487
  %v1490 = vadd.f32 %v1486, %v1488
  %v1491 = vmul.f32 %v1432, %v53
  %v1492 = vmul.f32 %v1432, %v54
  %v1493 = vadd.f32 %v1489, %v1491
  %v1494 = vadd.f32 %v1490, %v1492
  %v1495 = vld [vmem:[%s0 + $0xf] sm:$0x1]
  %v1496 = vld [vmem:[%s1 + $0xf] sm:$0x1]
  %v1497 = vld [vmem:[%s2 + $0xf] sm:$0x1]
  %v1498 = vld [vmem:[%s3 + $0xf] sm:$0x1]
  %v1499 = vlaneseq
  %v1500 = vshrl.u32 %v1499, 7
  %v1501 = vsub.s32 0, %v1500
  %v1502 = vrot.slane %v1495, %v1501
  %v1503 = vmul.f32 %v1502, %v56
  %v1504 = vmul.f32 %v1502, %v57
  %v1505 = vadd.f32 %v1481, %v1503
  %v1506 = vadd.f32 %v1482, %v1504
  %v1507 = vlaneseq
  %v1508 = vshrl.u32 %v1507, 7
  %v1509 = vsub.s32 0, %v1508
  %v1510 = vrot.slane %v1496, %v1509
  %v1511 = vmul.f32 %v1510, %v59
  %v1512 = vmul.f32 %v1510, %v60
  %v1513 = vadd.f32 %v1505, %v1511
  %v1514 = vadd.f32 %v1506, %v1512
  %v1515 = vlaneseq
  %v1516 = vshrl.u32 %v1515, 7
  %v1517 = vsub.s32 0, %v1516
  %v1518 = vrot.slane %v1497, %v1517
  %v1519 = vmul.f32 %v1518, %v62
  %v1520 = vmul.f32 %v1518, %v63
  %v1521 = vadd.f32 %v1513, %v1519
  %v1522 = vadd.f32 %v1514, %v1520
  %v1523 = vmul.f32 %v1510, %v56
  %v1524 = vmul.f32 %v1510, %v57
  %v1525 = vadd.f32 %v1493, %v1523
  %v1526 = vadd.f32 %v1494, %v1524
  %v1527 = vmul.f32 %v1518, %v59
  %v1528 = vmul.f32 %v1518, %v60
  %v1529 = vadd.f32 %v1525, %v1527
  %v1530 = vadd.f32 %v1526, %v1528
  %v1531 = vlaneseq
  %v1532 = vshrl.u32 %v1531, 7
  %v1533 = vsub.s32 0, %v1532
  %v1534 = vrot.slane %v1498, %v1533
  %v1535 = vmul.f32 %v1534, %v62
  %v1536 = vmul.f32 %v1534, %v63
  %v1537 = vadd.f32 %v1529, %v1535
  %v1538 = vadd.f32 %v1530, %v1536
  %v1539 = vadd.f32 %v1521, %v64
  %v1540 = vadd.f32 %v1522, %v65
  %v1541 = vmax.f32 %v1539, 0.0
  %v1542 = vmax.f32 %v1540, 0.0
  %v1543 = vadd.f32 %v1537, %v64
  %v1544 = vadd.f32 %v1538, %v65
  %v1545 = vmax.f32 %v1543, 0.0
  %v1546 = vmax.f32 %v1544, 0.0
  %v1547 = vmax.f32 %v1541, %v1545
  %v1548 = vmax.f32 %v1542, %v1546
  %v1549 = vmax.f32 %v1445, %v1547
  %v1550 = vmax.f32 %v1446, %v1548
  %v1551 = vmul.f32 %v1400, %v38
  %v1552 = vmul.f32 %v1400, %v39
  %v1553 = vadd.f32 %v1551, 0.0
  %v1554 = vadd.f32 %v1552, 0.0
  %v1555 = vmul.f32 %v1408, %v41
  %v1556 = vmul.f32 %v1408, %v42
  %v1557 = vadd.f32 %v1553, %v1555
  %v1558 = vadd.f32 %v1554, %v1556
  %v1559 = vmul.f32 %v1416, %v44
  %v1560 = vmul.f32 %v1416, %v45
  %v1561 = vadd.f32 %v1557, %v1559
  %v1562 = vadd.f32 %v1558, %v1560
  %v1563 = vmul.f32 %v1408, %v38
  %v1564 = vmul.f32 %v1408, %v39
  %v1565 = vadd.f32 %v1563, 0.0
  %v1566 = vadd.f32 %v1564, 0.0
  %v1567 = vmul.f32 %v1416, %v41
  %v1568 = vmul.f32 %v1416, %v42
  %v1569 = vadd.f32 %v1565, %v1567
  %v1570 = vadd.f32 %v1566, %v1568
  %v1571 = vmul.f32 %v1432, %v44
  %v1572 = vmul.f32 %v1432, %v45
  %v1573 = vadd.f32 %v1569, %v1571
  %v1574 = vadd.f32 %v1570, %v1572
  %v1575 = vmul.f32 %v1502, %v47
  %v1576 = vmul.f32 %v1502, %v48
  %v1577 = vadd.f32 %v1561, %v1575
  %v1578 = vadd.f32 %v1562, %v1576
  %v1579 = vmul.f32 %v1510, %v50
  %v1580 = vmul.f32 %v1510, %v51
  %v1581 = vadd.f32 %v1577, %v1579
  %v1582 = vadd.f32 %v1578, %v1580
  %v1583 = vmul.f32 %v1518, %v53
  %v1584 = vmul.f32 %v1518, %v54
  %v1585 = vadd.f32 %v1581, %v1583
  %v1586 = vadd.f32 %v1582, %v1584
  %v1587 = vmul.f32 %v1510, %v47
  %v1588 = vmul.f32 %v1510, %v48
  %v1589 = vadd.f32 %v1573, %v1587
  %v1590 = vadd.f32 %v1574, %v1588
  %v1591 = vmul.f32 %v1518, %v50
  %v1592 = vmul.f32 %v1518, %v51
  %v1593 = vadd.f32 %v1589, %v1591
  %v1594 = vadd.f32 %v1590, %v1592
  %v1595 = vmul.f32 %v1534, %v53
  %v1596 = vmul.f32 %v1534, %v54
  %v1597 = vadd.f32 %v1593, %v1595
  %v1598 = vadd.f32 %v1594, %v1596
  %v1599 = vld [vmem:[%s0 + $0x10] sm:$0x1]
  %v1600 = vld [vmem:[%s1 + $0x10] sm:$0x1]
  %v1601 = vld [vmem:[%s2 + $0x10] sm:$0x1]
  %v1602 = vld [vmem:[%s3 + $0x10] sm:$0x1]
  %v1603 = vlaneseq
  %v1604 = vshrl.u32 %v1603, 7
  %v1605 = vsub.s32 0, %v1604
  %v1606 = vrot.slane %v1599, %v1605
  %v1607 = vmul.f32 %v1606, %v56
  %v1608 = vmul.f32 %v1606, %v57
  %v1609 = vadd.f32 %v1585, %v1607
  %v1610 = vadd.f32 %v1586, %v1608
  %v1611 = vlaneseq
  %v1612 = vshrl.u32 %v1611, 7
  %v1613 = vsub.s32 0, %v1612
  %v1614 = vrot.slane %v1600, %v1613
  %v1615 = vmul.f32 %v1614, %v59
  %v1616 = vmul.f32 %v1614, %v60
  %v1617 = vadd.f32 %v1609, %v1615
  %v1618 = vadd.f32 %v1610, %v1616
  %v1619 = vlaneseq
  %v1620 = vshrl.u32 %v1619, 7
  %v1621 = vsub.s32 0, %v1620
  %v1622 = vrot.slane %v1601, %v1621
  %v1623 = vmul.f32 %v1622, %v62
  %v1624 = vmul.f32 %v1622, %v63
  %v1625 = vadd.f32 %v1617, %v1623
  %v1626 = vadd.f32 %v1618, %v1624
  %v1627 = vmul.f32 %v1614, %v56
  %v1628 = vmul.f32 %v1614, %v57
  %v1629 = vadd.f32 %v1597, %v1627
  %v1630 = vadd.f32 %v1598, %v1628
  %v1631 = vmul.f32 %v1622, %v59
  %v1632 = vmul.f32 %v1622, %v60
  %v1633 = vadd.f32 %v1629, %v1631
  %v1634 = vadd.f32 %v1630, %v1632
  %v1635 = vlaneseq
  %v1636 = vshrl.u32 %v1635, 7
  %v1637 = vsub.s32 0, %v1636
  %v1638 = vrot.slane %v1602, %v1637
  %v1639 = vmul.f32 %v1638, %v62
  %v1640 = vmul.f32 %v1638, %v63
  %v1641 = vadd.f32 %v1633, %v1639
  %v1642 = vadd.f32 %v1634, %v1640
  %v1643 = vadd.f32 %v1625, %v64
  %v1644 = vadd.f32 %v1626, %v65
  %v1645 = vmax.f32 %v1643, 0.0
  %v1646 = vmax.f32 %v1644, 0.0
  %v1647 = vadd.f32 %v1641, %v64
  %v1648 = vadd.f32 %v1642, %v65
  %v1649 = vmax.f32 %v1647, 0.0
  %v1650 = vmax.f32 %v1648, 0.0
  %v1651 = vmax.f32 %v1645, %v1649
  %v1652 = vmax.f32 %v1646, %v1650
  %v1653 = vmul.f32 %v1502, %v38
  %v1654 = vmul.f32 %v1502, %v39
  %v1655 = vadd.f32 %v1653, 0.0
  %v1656 = vadd.f32 %v1654, 0.0
  %v1657 = vmul.f32 %v1510, %v41
  %v1658 = vmul.f32 %v1510, %v42
  %v1659 = vadd.f32 %v1655, %v1657
  %v1660 = vadd.f32 %v1656, %v1658
  %v1661 = vmul.f32 %v1518, %v44
  %v1662 = vmul.f32 %v1518, %v45
  %v1663 = vadd.f32 %v1659, %v1661
  %v1664 = vadd.f32 %v1660, %v1662
  %v1665 = vmul.f32 %v1510, %v38
  %v1666 = vmul.f32 %v1510, %v39
  %v1667 = vadd.f32 %v1665, 0.0
  %v1668 = vadd.f32 %v1666, 0.0
  %v1669 = vmul.f32 %v1518, %v41
  %v1670 = vmul.f32 %v1518, %v42
  %v1671 = vadd.f32 %v1667, %v1669
  %v1672 = vadd.f32 %v1668, %v1670
  %v1673 = vmul.f32 %v1534, %v44
  %v1674 = vmul.f32 %v1534, %v45
  %v1675 = vadd.f32 %v1671, %v1673
  %v1676 = vadd.f32 %v1672, %v1674
  %v1677 = vmul.f32 %v1606, %v47
  %v1678 = vmul.f32 %v1606, %v48
  %v1679 = vadd.f32 %v1663, %v1677
  %v1680 = vadd.f32 %v1664, %v1678
  %v1681 = vmul.f32 %v1614, %v50
  %v1682 = vmul.f32 %v1614, %v51
  %v1683 = vadd.f32 %v1679, %v1681
  %v1684 = vadd.f32 %v1680, %v1682
  %v1685 = vmul.f32 %v1622, %v53
  %v1686 = vmul.f32 %v1622, %v54
  %v1687 = vadd.f32 %v1683, %v1685
  %v1688 = vadd.f32 %v1684, %v1686
  %v1689 = vmul.f32 %v1614, %v47
  %v1690 = vmul.f32 %v1614, %v48
  %v1691 = vadd.f32 %v1675, %v1689
  %v1692 = vadd.f32 %v1676, %v1690
  %v1693 = vmul.f32 %v1622, %v50
  %v1694 = vmul.f32 %v1622, %v51
  %v1695 = vadd.f32 %v1691, %v1693
  %v1696 = vadd.f32 %v1692, %v1694
  %v1697 = vmul.f32 %v1638, %v53
  %v1698 = vmul.f32 %v1638, %v54
  %v1699 = vadd.f32 %v1695, %v1697
  %v1700 = vadd.f32 %v1696, %v1698
  %v1701 = vld [vmem:[%s0 + $0x11] sm:$0x1]
  %v1702 = vld [vmem:[%s1 + $0x11] sm:$0x1]
  %v1703 = vld [vmem:[%s2 + $0x11] sm:$0x1]
  %v1704 = vld [vmem:[%s3 + $0x11] sm:$0x1]
  %v1705 = vlaneseq
  %v1706 = vshrl.u32 %v1705, 7
  %v1707 = vsub.s32 0, %v1706
  %v1708 = vrot.slane %v1701, %v1707
  %v1709 = vmul.f32 %v1708, %v56
  %v1710 = vmul.f32 %v1708, %v57
  %v1711 = vadd.f32 %v1687, %v1709
  %v1712 = vadd.f32 %v1688, %v1710
  %v1713 = vlaneseq
  %v1714 = vshrl.u32 %v1713, 7
  %v1715 = vsub.s32 0, %v1714
  %v1716 = vrot.slane %v1702, %v1715
  %v1717 = vmul.f32 %v1716, %v59
  %v1718 = vmul.f32 %v1716, %v60
  %v1719 = vadd.f32 %v1711, %v1717
  %v1720 = vadd.f32 %v1712, %v1718
  %v1721 = vlaneseq
  %v1722 = vshrl.u32 %v1721, 7
  %v1723 = vsub.s32 0, %v1722
  %v1724 = vrot.slane %v1703, %v1723
  %v1725 = vmul.f32 %v1724, %v62
  %v1726 = vmul.f32 %v1724, %v63
  %v1727 = vadd.f32 %v1719, %v1725
  %v1728 = vadd.f32 %v1720, %v1726
  %v1729 = vmul.f32 %v1716, %v56
  %v1730 = vmul.f32 %v1716, %v57
  %v1731 = vadd.f32 %v1699, %v1729
  %v1732 = vadd.f32 %v1700, %v1730
  %v1733 = vmul.f32 %v1724, %v59
  %v1734 = vmul.f32 %v1724, %v60
  %v1735 = vadd.f32 %v1731, %v1733
  %v1736 = vadd.f32 %v1732, %v1734
  %v1737 = vlaneseq
  %v1738 = vshrl.u32 %v1737, 7
  %v1739 = vsub.s32 0, %v1738
  %v1740 = vrot.slane %v1704, %v1739
  %v1741 = vmul.f32 %v1740, %v62
  %v1742 = vmul.f32 %v1740, %v63
  %v1743 = vadd.f32 %v1735, %v1741
  %v1744 = vadd.f32 %v1736, %v1742
  %v1745 = vadd.f32 %v1727, %v64
  %v1746 = vadd.f32 %v1728, %v65
  %v1747 = vmax.f32 %v1745, 0.0
  %v1748 = vmax.f32 %v1746, 0.0
  %v1749 = vadd.f32 %v1743, %v64
  %v1750 = vadd.f32 %v1744, %v65
  %v1751 = vmax.f32 %v1749, 0.0
  %v1752 = vmax.f32 %v1750, 0.0
  %v1753 = vmax.f32 %v1747, %v1751
  %v1754 = vmax.f32 %v1748, %v1752
  %v1755 = vmax.f32 %v1651, %v1753
  %v1756 = vmax.f32 %v1652, %v1754
  %1759 = vrot.lane.b32.xlu0 %v313, 1
  %v1760 = vpop.permute.xlu0 %1759
  %1761 = vrot.lane.b32.xlu0 %v314, 1
  %v1762 = vpop.permute.xlu0 %1761
  %vm1765 = vcmask 7168
  %v1766 = vsel %vm1765, 0.0, %v1760
  %v1767 = vsel %vm1765, 0.0, %v1762
  %1768 = vrot.lane.b32.xlu0 %v313, 127
  %v1769 = vpop.permute.xlu0 %1768
  %1770 = vrot.lane.b32.xlu0 %v314, 127
  %v1771 = vpop.permute.xlu0 %1770
  %vm1774 = vcmask 1039360
  %v1775 = vsel %vm1774, %v1769, 0.0
  %v1776 = vsel %vm1774, %v1771, 0.0
  %vm1777 = vcmp.ne.s32.totalorder %v68, 0
  %v1778 = vsel %vm1777, %v1766, 0.0
  %v1779 = vsel %vm1777, %v1767, 0.0
  %vm1780 = vcmp.ne.s32.totalorder %v68, 7
  %v1781 = vsel %vm1780, %v1775, 0.0
  %v1782 = vsel %vm1780, %v1776, 0.0
  %1785 = vrot.lane.b32.xlu0 %v519, 1
  %v1786 = vpop.permute.xlu0 %1785
  %1787 = vrot.lane.b32.xlu0 %v520, 1
  %v1788 = vpop.permute.xlu0 %1787
  %v1791 = vsel %vm1765, 0.0, %v1786
  %v1792 = vsel %vm1765, 0.0, %v1788
  %1793 = vrot.lane.b32.xlu0 %v519, 127
  %v1794 = vpop.permute.xlu0 %1793
  %1795 = vrot.lane.b32.xlu0 %v520, 127
  %v1796 = vpop.permute.xlu0 %1795
  %v1799 = vsel %vm1774, %v1794, 0.0
  %v1800 = vsel %vm1774, %v1796, 0.0
  %v1801 = vsel %vm1777, %v1791, 0.0
  %v1802 = vsel %vm1777, %v1792, 0.0
  %v1803 = vsel %vm1780, %v1799, 0.0
  %v1804 = vsel %vm1780, %v1800, 0.0
  %1807 = vrot.lane.b32.xlu0 %v725, 1
  %v1808 = vpop.permute.xlu0 %1807
  %1809 = vrot.lane.b32.xlu0 %v726, 1
  %v1810 = vpop.permute.xlu0 %1809
  %v1813 = vsel %vm1765, 0.0, %v1808
  %v1814 = vsel %vm1765, 0.0, %v1810
  %1815 = vrot.lane.b32.xlu0 %v725, 127
  %v1816 = vpop.permute.xlu0 %1815
  %1817 = vrot.lane.b32.xlu0 %v726, 127
  %v1818 = vpop.permute.xlu0 %1817
  %v1821 = vsel %vm1774, %v1816, 0.0
  %v1822 = vsel %vm1774, %v1818, 0.0
  %v1823 = vsel %vm1777, %v1813, 0.0
  %v1824 = vsel %vm1777, %v1814, 0.0
  %v1825 = vsel %vm1780, %v1821, 0.0
  %v1826 = vsel %vm1780, %v1822, 0.0
  %1829 = vrot.lane.b32.xlu0 %v931, 1
  %v1830 = vpop.permute.xlu0 %1829
  %1831 = vrot.lane.b32.xlu0 %v932, 1
  %v1832 = vpop.permute.xlu0 %1831
  %v1835 = vsel %vm1765, 0.0, %v1830
  %v1836 = vsel %vm1765, 0.0, %v1832
  %1837 = vrot.lane.b32.xlu0 %v931, 127
  %v1838 = vpop.permute.xlu0 %1837
  %1839 = vrot.lane.b32.xlu0 %v932, 127
  %v1840 = vpop.permute.xlu0 %1839
  %v1843 = vsel %vm1774, %v1838, 0.0
  %v1844 = vsel %vm1774, %v1840, 0.0
  %v1845 = vsel %vm1777, %v1835, 0.0
  %v1846 = vsel %vm1777, %v1836, 0.0
  %v1847 = vsel %vm1780, %v1843, 0.0
  %v1848 = vsel %vm1780, %v1844, 0.0
  %1851 = vrot.lane.b32.xlu0 %v1137, 1
  %v1852 = vpop.permute.xlu0 %1851
  %1853 = vrot.lane.b32.xlu0 %v1138, 1
  %v1854 = vpop.permute.xlu0 %1853
  %v1857 = vsel %vm1765, 0.0, %v1852
  %v1858 = vsel %vm1765, 0.0, %v1854
  %1859 = vrot.lane.b32.xlu0 %v1137, 127
  %v1860 = vpop.permute.xlu0 %1859
  %1861 = vrot.lane.b32.xlu0 %v1138, 127
  %v1862 = vpop.permute.xlu0 %1861
  %v1865 = vsel %vm1774, %v1860, 0.0
  %v1866 = vsel %vm1774, %v1862, 0.0
  %v1867 = vsel %vm1777, %v1857, 0.0
  %v1868 = vsel %vm1777, %v1858, 0.0
  %v1869 = vsel %vm1780, %v1865, 0.0
  %v1870 = vsel %vm1780, %v1866, 0.0
  %1873 = vrot.lane.b32.xlu0 %v1343, 1
  %v1874 = vpop.permute.xlu0 %1873
  %1875 = vrot.lane.b32.xlu0 %v1344, 1
  %v1876 = vpop.permute.xlu0 %1875
  %v1879 = vsel %vm1765, 0.0, %v1874
  %v1880 = vsel %vm1765, 0.0, %v1876
  %1881 = vrot.lane.b32.xlu0 %v1343, 127
  %v1882 = vpop.permute.xlu0 %1881
  %1883 = vrot.lane.b32.xlu0 %v1344, 127
  %v1884 = vpop.permute.xlu0 %1883
  %v1887 = vsel %vm1774, %v1882, 0.0
  %v1888 = vsel %vm1774, %v1884, 0.0
  %v1889 = vsel %vm1777, %v1879, 0.0
  %v1890 = vsel %vm1777, %v1880, 0.0
  %v1891 = vsel %vm1780, %v1887, 0.0
  %v1892 = vsel %vm1780, %v1888, 0.0
  %1895 = vrot.lane.b32.xlu0 %v1549, 1
  %v1896 = vpop.permute.xlu0 %1895
  %1897 = vrot.lane.b32.xlu0 %v1550, 1
  %v1898 = vpop.permute.xlu0 %1897
  %v1901 = vsel %vm1765, 0.0, %v1896
  %v1902 = vsel %vm1765, 0.0, %v1898
  %1903 = vrot.lane.b32.xlu0 %v1549, 127
  %v1904 = vpop.permute.xlu0 %1903
  %1905 = vrot.lane.b32.xlu0 %v1550, 127
  %v1906 = vpop.permute.xlu0 %1905
  %v1909 = vsel %vm1774, %v1904, 0.0
  %v1910 = vsel %vm1774, %v1906, 0.0
  %v1911 = vsel %vm1777, %v1901, 0.0
  %v1912 = vsel %vm1777, %v1902, 0.0
  %v1913 = vsel %vm1780, %v1909, 0.0
  %v1914 = vsel %vm1780, %v1910, 0.0
  %1917 = vrot.lane.b32.xlu0 %v1755, 1
  %v1918 = vpop.permute.xlu0 %1917
  %1919 = vrot.lane.b32.xlu0 %v1756, 1
  %v1920 = vpop.permute.xlu0 %1919
  %v1923 = vsel %vm1765, 0.0, %v1918
  %v1924 = vsel %vm1765, 0.0, %v1920
  %1925 = vrot.lane.b32.xlu0 %v1755, 127
  %v1926 = vpop.permute.xlu0 %1925
  %1927 = vrot.lane.b32.xlu0 %v1756, 127
  %v1928 = vpop.permute.xlu0 %1927
  %v1931 = vsel %vm1774, %v1926, 0.0
  %v1932 = vsel %vm1774, %v1928, 0.0
  %v1933 = vsel %vm1777, %v1923, 0.0
  %v1934 = vsel %vm1777, %v1924, 0.0
  %v1935 = vsel %vm1780, %v1931, 0.0
  %v1936 = vsel %vm1780, %v1932, 0.0
  %v1937 = vld [vmem:[%s6] sm:$0xff]
  %v1938 = vld [vmem:[%s6 + $0x8] sm:$0xff]
  %v1939 = vld [vmem:[%s6 + $0x10] sm:$0xff]
  %v1940 = vld [vmem:[%s6 + $0x18] sm:$0xff]
  %v1941 = vld [vmem:[%s6 + $0x20] sm:$0xff]
  %v1942 = vld [vmem:[%s6 + $0x28] sm:$0xff]
  %v1943 = vld [vmem:[%s6 + $0x30] sm:$0xff]
  %v1944 = vld [vmem:[%s6 + $0x38] sm:$0xff]
  %v1945 = vld [vmem:[%s7] sm:$0xff]
  %v1946 = vld [vmem:[%s7 + $0x8] sm:$0xff]
  %v1947 = vld [vmem:[%s7 + $0x10] sm:$0xff]
  %v1948 = vld [vmem:[%s7 + $0x18] sm:$0xff]
  %1950 = vset.pattern.permute.xlu0 0
  %1951 = vperm.xlu0 %1950, %v1945
  %v1952 = vpop.permute.xlu0 %1951
  %1955 = vset.pattern.permute.xlu0 0
  %1956 = vperm.xlu0 %1955, %v1946
  %v1957 = vpop.permute.xlu0 %1956
  %1960 = vset.pattern.permute.xlu0 0
  %1961 = vperm.xlu0 %1960, %v1947
  %v1962 = vpop.permute.xlu0 %1961
  %1965 = vset.pattern.permute.xlu0 0
  %1966 = vperm.xlu0 %1965, %v1948
  %v1967 = vpop.permute.xlu0 %1966
  %vm1969 = vcmask 130048
  %v1971 = vsel %vm1969, %v1938, 0
  %v1974 = vsel %vm1969, %v1940, 0
  %v1977 = vsel %vm1969, %v1942, 0
  %v1980 = vsel %vm1969, %v1944, 0
  %1982 = vmatprep.subr.mxu0 %v1778
  %1983 = vmatpush1.msra.mxu0 0.0
  %1984 = vmatprep.subr.mxu0 %v1779
  %1985 = vmatpush1.msra.mxu0 0.0
  %1986 = vmatprep.subr.mxu0 %v313
  %1987 = vmatpush1.msra.mxu0 0.0
  %1988 = vmatprep.subr.mxu0 %v314
  %1989 = vmatpush1.msra.mxu0 0.0
  %1990 = vmatprep.subr.mxu0 %v1781
  %1991 = vmatpush1.msra.mxu0 0.0
  %1992 = vmatprep.subr.mxu0 %v1782
  %1993 = vmatpush1.msra.mxu0 0.0
  %1994 = vmatprep.subr.mxu0 %v1801
  %1995 = vmatpush1.msra.mxu0 %v1778
  %1996 = vmatprep.subr.mxu0 %v1802
  %1997 = vmatpush1.msra.mxu0 %v1779
  %1998 = vmatprep.subr.mxu0 %v519
  %1999 = vmatpush1.msra.mxu0 %v313
  %2000 = vmatprep.subr.mxu0 %v520
  %2001 = vmatpush1.msra.mxu0 %v314
  %2002 = vmatprep.subr.mxu0 %v1803
  %2003 = vmatpush1.msra.mxu0 %v1781
  %2004 = vmatprep.subr.mxu0 %v1804
  %2005 = vmatpush1.msra.mxu0 %v1782
  %2006 = vmatprep.subr.mxu0 %v1823
  %2007 = vmatpush1.msra.mxu0 %v1801
  %2008 = vmatprep.subr.mxu0 %v1824
  %2009 = vmatpush1.msra.mxu0 %v1802
  %2010 = vmatprep.subr.mxu0 %v725
  %2011 = vmatpush1.msra.mxu0 %v519
  %2012 = vmatprep.subr.mxu0 %v726
  %2013 = vmatpush1.msra.mxu0 %v520
  %2014 = vmatprep.subr.mxu0 %v1825
  %2015 = vmatpush1.msra.mxu0 %v1803
  %2016 = vmatprep.subr.mxu0 %v1826
  %2017 = vmatpush1.msra.mxu0 %v1804
  %2018 = vmatprep.subr.mxu0 0.0
  %2019 = vmatpush1.msra.mxu0 0.0
  %2020 = vmatprep.subr.mxu0 0.0
  %2021 = vmatpush1.msra.mxu0 0.0
  %2022 = vmatprep.subr.mxu0 0.0
  %2023 = vmatpush1.msra.mxu0 0.0
  %2024 = vmatprep.subr.mxu0 0.0
  %2025 = vmatpush1.msra.mxu0 0.0
  %2026 = vmatprep.subr.mxu0 0.0
  %2027 = vmatpush1.msra.mxu0 0.0
  %2028 = vmatprep.subr.mxu0 0.0
  %2029 = vmatpush1.msra.mxu0 0.0
  %2030 = vmatprep.subr.mxu0 0.0
  %2031 = vmatpush1.msra.mxu0 0.0
  %2032 = vmatprep.subr.mxu0 0.0
  %2033 = vmatpush1.msra.mxu0 0.0
  %2034 = vmatprep.subr.mxu0 0.0
  %2035 = vmatpush1.msra.mxu0 0.0
  %2036 = vmatprep.subr.mxu0 0.0
  %2037 = vmatpush1.msra.mxu0 0.0
  %2038 = vmatprep.subr.mxu0 0.0
  %2039 = vmatpush1.msra.mxu0 0.0
  %2040 = vmatprep.subr.mxu0 0.0
  %2041 = vmatpush1.msra.mxu0 0.0
  %2042 = vmatprep.subr.mxu0 0.0
  %2043 = vmatpush1.msra.mxu0 0.0
  %2044 = vmatprep.subr.mxu0 0.0
  %2045 = vmatpush1.msra.mxu0 0.0
  %2046 = vmatprep.mubr.f32.mxu0 %v1971
  %2047 = vmatmul.mubr.f32.gmra.mrb[0].mxu0 %v1937
  %v2048 = vpop.f32.mrb[0].mxu0
  %v2049 = vadd.f32 %v1952, %v2048
  %v2050 = vpop.f32.mrb[0].mxu0
  %v2051 = vadd.f32 %v1952, %v2050
  %2052 = vmatprep.mubr.f32.mxu0 %v1974
  %2053 = vmatmul.mubr.f32.gmra.mrb[0].mxu0 %v1939
  %v2054 = vpop.f32.mrb[0].mxu0
  %v2055 = vadd.f32 %v1957, %v2054
  %v2056 = vpop.f32.mrb[0].mxu0
  %v2057 = vadd.f32 %v1957, %v2056
  %2058 = vmatprep.mubr.f32.mxu0 %v1977
  %2059 = vmatmul.mubr.f32.gmra.mrb[0].mxu0 %v1941
  %v2060 = vpop.f32.mrb[0].mxu0
  %v2061 = vadd.f32 %v1962, %v2060
  %v2062 = vpop.f32.mrb[0].mxu0
  %v2063 = vadd.f32 %v1962, %v2062
  %2064 = vmatprep.mubr.f32.mxu0 %v1980
  %2065 = vmatmul.mubr.f32.gmra.mrb[0].mxu0 %v1943
  %v2066 = vpop.f32.mrb[0].mxu0
  %v2067 = vadd.f32 %v1967, %v2066
  %v2068 = vpop.f32.mrb[0].mxu0
  %v2069 = vadd.f32 %v1967, %v2068
  %2070 = vdwg.mxu0
  %2071 = vmatprep.subr.mxu0 %v1823
  %2072 = vmatpush1.msra.mxu0 %v1801
  %2073 = vmatprep.subr.mxu0 %v1824
  %2074 = vmatpush1.msra.mxu0 %v1802
  %2075 = vmatprep.subr.mxu0 %v725
  %2076 = vmatpush1.msra.mxu0 %v519
  %2077 = vmatprep.subr.mxu0 %v726
  %2078 = vmatpush1.msra.mxu0 %v520
  %2079 = vmatprep.subr.mxu0 %v1825
  %2080 = vmatpush1.msra.mxu0 %v1803
  %2081 = vmatprep.subr.mxu0 %v1826
  %2082 = vmatpush1.msra.mxu0 %v1804
  %2083 = vmatprep.subr.mxu0 %v1845
  %2084 = vmatpush1.msra.mxu0 %v1823
  %2085 = vmatprep.subr.mxu0 %v1846
  %2086 = vmatpush1.msra.mxu0 %v1824
  %2087 = vmatprep.subr.mxu0 %v931
  %2088 = vmatpush1.msra.mxu0 %v725
  %2089 = vmatprep.subr.mxu0 %v932
  %2090 = vmatpush1.msra.mxu0 %v726
  %2091 = vmatprep.subr.mxu0 %v1847
  %2092 = vmatpush1.msra.mxu0 %v1825
  %2093 = vmatprep.subr.mxu0 %v1848
  %2094 = vmatpush1.msra.mxu0 %v1826
  %2095 = vmatprep.subr.mxu0 %v1867
  %2096 = vmatpush1.msra.mxu0 %v1845
  %2097 = vmatprep.subr.mxu0 %v1868
  %2098 = vmatpush1.msra.mxu0 %v1846
  %2099 = vmatprep.subr.mxu0 %v1137
  %2100 = vmatpush1.msra.mxu0 %v931
  %2101 = vmatprep.subr.mxu0 %v1138
  %2102 = vmatpush1.msra.mxu0 %v932
  %2103 = vmatprep.subr.mxu0 %v1869
  %2104 = vmatpush1.msra.mxu0 %v1847
  %2105 = vmatprep.subr.mxu0 %v1870
  %2106 = vmatpush1.msra.mxu0 %v1848
  %2107 = vmatprep.subr.mxu0 0.0
  %2108 = vmatpush1.msra.mxu0 0.0
  %2109 = vmatprep.subr.mxu0 0.0
  %2110 = vmatpush1.msra.mxu0 0.0
  %2111 = vmatprep.subr.mxu0 0.0
  %2112 = vmatpush1.msra.mxu0 0.0
  %2113 = vmatprep.subr.mxu0 0.0
  %2114 = vmatpush1.msra.mxu0 0.0
  %2115 = vmatprep.subr.mxu0 0.0
  %2116 = vmatpush1.msra.mxu0 0.0
  %2117 = vmatprep.subr.mxu0 0.0
  %2118 = vmatpush1.msra.mxu0 0.0
  %2119 = vmatprep.subr.mxu0 0.0
  %2120 = vmatpush1.msra.mxu0 0.0
  %2121 = vmatprep.subr.mxu0 0.0
  %2122 = vmatpush1.msra.mxu0 0.0
  %2123 = vmatprep.subr.mxu0 0.0
  %2124 = vmatpush1.msra.mxu0 0.0
  %2125 = vmatprep.subr.mxu0 0.0
  %2126 = vmatpush1.msra.mxu0 0.0
  %2127 = vmatprep.subr.mxu0 0.0
  %2128 = vmatpush1.msra.mxu0 0.0
  %2129 = vmatprep.subr.mxu0 0.0
  %2130 = vmatpush1.msra.mxu0 0.0
  %2131 = vmatprep.subr.mxu0 0.0
  %2132 = vmatpush1.msra.mxu0 0.0
  %2133 = vmatprep.subr.mxu0 0.0
  %2134 = vmatpush1.msra.mxu0 0.0
  %2135 = vmatprep.mubr.f32.mxu0 %v1971
  %2136 = vmatmul.mubr.f32.gmra.mrb[0].mxu0 %v1937
  %v2137 = vpop.f32.mrb[0].mxu0
  %v2138 = vadd.f32 %v1952, %v2137
  %v2139 = vpop.f32.mrb[0].mxu0
  %v2140 = vadd.f32 %v1952, %v2139
  %2141 = vmatprep.mubr.f32.mxu0 %v1974
  %2142 = vmatmul.mubr.f32.gmra.mrb[0].mxu0 %v1939
  %v2143 = vpop.f32.mrb[0].mxu0
  %v2144 = vadd.f32 %v1957, %v2143
  %v2145 = vpop.f32.mrb[0].mxu0
  %v2146 = vadd.f32 %v1957, %v2145
  %2147 = vmatprep.mubr.f32.mxu0 %v1977
  %2148 = vmatmul.mubr.f32.gmra.mrb[0].mxu0 %v1941
  %v2149 = vpop.f32.mrb[0].mxu0
  %v2150 = vadd.f32 %v1962, %v2149
  %v2151 = vpop.f32.mrb[0].mxu0
  %v2152 = vadd.f32 %v1962, %v2151
  %2153 = vmatprep.mubr.f32.mxu0 %v1980
  %2154 = vmatmul.mubr.f32.gmra.mrb[0].mxu0 %v1943
  %v2155 = vpop.f32.mrb[0].mxu0
  %v2156 = vadd.f32 %v1967, %v2155
  %v2157 = vpop.f32.mrb[0].mxu0
  %v2158 = vadd.f32 %v1967, %v2157
  %2159 = vdwg.mxu0
  %2160 = vmatprep.subr.mxu0 %v1867
  %2161 = vmatpush1.msra.mxu0 %v1845
  %2162 = vmatprep.subr.mxu0 %v1868
  %2163 = vmatpush1.msra.mxu0 %v1846
  %2164 = vmatprep.subr.mxu0 %v1137
  %2165 = vmatpush1.msra.mxu0 %v931
  %2166 = vmatprep.subr.mxu0 %v1138
  %2167 = vmatpush1.msra.mxu0 %v932
  %2168 = vmatprep.subr.mxu0 %v1869
  %2169 = vmatpush1.msra.mxu0 %v1847
  %2170 = vmatprep.subr.mxu0 %v1870
  %2171 = vmatpush1.msra.mxu0 %v1848
  %2172 = vmatprep.subr.mxu0 %v1889
  %2173 = vmatpush1.msra.mxu0 %v1867
  %2174 = vmatprep.subr.mxu0 %v1890
  %2175 = vmatpush1.msra.mxu0 %v1868
  %2176 = vmatprep.subr.mxu0 %v1343
  %2177 = vmatpush1.msra.mxu0 %v1137
  %2178 = vmatprep.subr.mxu0 %v1344
  %2179 = vmatpush1.msra.mxu0 %v1138
  %2180 = vmatprep.subr.mxu0 %v1891
  %2181 = vmatpush1.msra.mxu0 %v1869
  %2182 = vmatprep.subr.mxu0 %v1892
  %2183 = vmatpush1.msra.mxu0 %v1870
  %2184 = vmatprep.subr.mxu0 %v1911
  %2185 = vmatpush1.msra.mxu0 %v1889
  %2186 = vmatprep.subr.mxu0 %v1912
  %2187 = vmatpush1.msra.mxu0 %v1890
  %2188 = vmatprep.subr.mxu0 %v1549
  %2189 = vmatpush1.msra.mxu0 %v1343
  %2190 = vmatprep.subr.mxu0 %v1550
  %2191 = vmatpush1.msra.mxu0 %v1344
  %2192 = vmatprep.subr.mxu0 %v1913
  %2193 = vmatpush1.msra.mxu0 %v1891
  %2194 = vmatprep.subr.mxu0 %v1914
  %2195 = vmatpush1.msra.mxu0 %v1892
  %2196 = vmatprep.subr.mxu0 0.0
  %2197 = vmatpush1.msra.mxu0 0.0
  %2198 = vmatprep.subr.mxu0 0.0
  %2199 = vmatpush1.msra.mxu0 0.0
  %2200 = vmatprep.subr.mxu0 0.0
  %2201 = vmatpush1.msra.mxu0 0.0
  %2202 = vmatprep.subr.mxu0 0.0
  %2203 = vmatpush1.msra.mxu0 0.0
  %2204 = vmatprep.subr.mxu0 0.0
  %2205 = vmatpush1.msra.mxu0 0.0
  %2206 = vmatprep.subr.mxu0 0.0
  %2207 = vmatpush1.msra.mxu0 0.0
  %2208 = vmatprep.subr.mxu0 0.0
  %2209 = vmatpush1.msra.mxu0 0.0
  %2210 = vmatprep.subr.mxu0 0.0
  %2211 = vmatpush1.msra.mxu0 0.0
  %2212 = vmatprep.subr.mxu0 0.0
  %2213 = vmatpush1.msra.mxu0 0.0
  %2214 = vmatprep.subr.mxu0 0.0
  %2215 = vmatpush1.msra.mxu0 0.0
  %2216 = vmatprep.subr.mxu0 0.0
  %2217 = vmatpush1.msra.mxu0 0.0
  %2218 = vmatprep.subr.mxu0 0.0
  %2219 = vmatpush1.msra.mxu0 0.0
  %2220 = vmatprep.subr.mxu0 0.0
  %2221 = vmatpush1.msra.mxu0 0.0
  %2222 = vmatprep.subr.mxu0 0.0
  %2223 = vmatpush1.msra.mxu0 0.0
  %2224 = vmatprep.mubr.f32.mxu0 %v1971
  %2225 = vmatmul.mubr.f32.gmra.mrb[0].mxu0 %v1937
  %v2226 = vpop.f32.mrb[0].mxu0
  %v2227 = vadd.f32 %v1952, %v2226
  %v2228 = vpop.f32.mrb[0].mxu0
  %v2229 = vadd.f32 %v1952, %v2228
  %2230 = vmatprep.mubr.f32.mxu0 %v1974
  %2231 = vmatmul.mubr.f32.gmra.mrb[0].mxu0 %v1939
  %v2232 = vpop.f32.mrb[0].mxu0
  %v2233 = vadd.f32 %v1957, %v2232
  %v2234 = vpop.f32.mrb[0].mxu0
  %v2235 = vadd.f32 %v1957, %v2234
  %2236 = vmatprep.mubr.f32.mxu0 %v1977
  %2237 = vmatmul.mubr.f32.gmra.mrb[0].mxu0 %v1941
  %v2238 = vpop.f32.mrb[0].mxu0
  %v2239 = vadd.f32 %v1962, %v2238
  %v2240 = vpop.f32.mrb[0].mxu0
  %v2241 = vadd.f32 %v1962, %v2240
  %2242 = vmatprep.mubr.f32.mxu0 %v1980
  %2243 = vmatmul.mubr.f32.gmra.mrb[0].mxu0 %v1943
  %v2244 = vpop.f32.mrb[0].mxu0
  %v2245 = vadd.f32 %v1967, %v2244
  %v2246 = vpop.f32.mrb[0].mxu0
  %v2247 = vadd.f32 %v1967, %v2246
  %2248 = vdwg.mxu0
  %2249 = vmatprep.subr.mxu0 %v1911
  %2250 = vmatpush1.msra.mxu0 %v1889
  %2251 = vmatprep.subr.mxu0 %v1912
  %2252 = vmatpush1.msra.mxu0 %v1890
  %2253 = vmatprep.subr.mxu0 %v1549
  %2254 = vmatpush1.msra.mxu0 %v1343
  %2255 = vmatprep.subr.mxu0 %v1550
  %2256 = vmatpush1.msra.mxu0 %v1344
  %2257 = vmatprep.subr.mxu0 %v1913
  %2258 = vmatpush1.msra.mxu0 %v1891
  %2259 = vmatprep.subr.mxu0 %v1914
  %2260 = vmatpush1.msra.mxu0 %v1892
  %2261 = vmatprep.subr.mxu0 %v1933
  %2262 = vmatpush1.msra.mxu0 %v1911
  %2263 = vmatprep.subr.mxu0 %v1934
  %2264 = vmatpush1.msra.mxu0 %v1912
  %2265 = vmatprep.subr.mxu0 %v1755
  %2266 = vmatpush1.msra.mxu0 %v1549
  %2267 = vmatprep.subr.mxu0 %v1756
  %2268 = vmatpush1.msra.mxu0 %v1550
  %2269 = vmatprep.subr.mxu0 %v1935
  %2270 = vmatpush1.msra.mxu0 %v1913
  %2271 = vmatprep.subr.mxu0 %v1936
  %2272 = vmatpush1.msra.mxu0 %v1914
  %2273 = vmatprep.subr.mxu0 0.0
  %2274 = vmatpush1.msra.mxu0 %v1933
  %2275 = vmatprep.subr.mxu0 0.0
  %2276 = vmatpush1.msra.mxu0 %v1934
  %2277 = vmatprep.subr.mxu0 0.0
  %2278 = vmatpush1.msra.mxu0 %v1755
  %2279 = vmatprep.subr.mxu0 0.0
  %2280 = vmatpush1.msra.mxu0 %v1756
  %2281 = vmatprep.subr.mxu0 0.0
  %2282 = vmatpush1.msra.mxu0 %v1935
  %2283 = vmatprep.subr.mxu0 0.0
  %2284 = vmatpush1.msra.mxu0 %v1936
  %2285 = vmatprep.subr.mxu0 0.0
  %2286 = vmatpush1.msra.mxu0 0.0
  %2287 = vmatprep.subr.mxu0 0.0
  %2288 = vmatpush1.msra.mxu0 0.0
  %2289 = vmatprep.subr.mxu0 0.0
  %2290 = vmatpush1.msra.mxu0 0.0
  %2291 = vmatprep.subr.mxu0 0.0
  %2292 = vmatpush1.msra.mxu0 0.0
  %2293 = vmatprep.subr.mxu0 0.0
  %2294 = vmatpush1.msra.mxu0 0.0
  %2295 = vmatprep.subr.mxu0 0.0
  %2296 = vmatpush1.msra.mxu0 0.0
  %2297 = vmatprep.subr.mxu0 0.0
  %2298 = vmatpush1.msra.mxu0 0.0
  %2299 = vmatprep.subr.mxu0 0.0
  %2300 = vmatpush1.msra.mxu0 0.0
  %2301 = vmatprep.subr.mxu0 0.0
  %2302 = vmatpush1.msra.mxu0 0.0
  %2303 = vmatprep.subr.mxu0 0.0
  %2304 = vmatpush1.msra.mxu0 0.0
  %2305 = vmatprep.subr.mxu0 0.0
  %2306 = vmatpush1.msra.mxu0 0.0
  %2307 = vmatprep.subr.mxu0 0.0
  %2308 = vmatpush1.msra.mxu0 0.0
  %2309 = vmatprep.subr.mxu0 0.0
  %2310 = vmatpush1.msra.mxu0 0.0
  %2311 = vmatprep.subr.mxu0 0.0
  %2312 = vmatpush1.msra.mxu0 0.0
  %2313 = vmatprep.mubr.f32.mxu0 %v1971
  %2314 = vmatmul.mubr.f32.gmra.mrb[0].mxu0 %v1937
  %v2315 = vpop.f32.mrb[0].mxu0
  %v2316 = vadd.f32 %v1952, %v2315
  %v2317 = vpop.f32.mrb[0].mxu0
  %v2318 = vadd.f32 %v1952, %v2317
  %2319 = vmatprep.mubr.f32.mxu0 %v1974
  %2320 = vmatmul.mubr.f32.gmra.mrb[0].mxu0 %v1939
  %v2321 = vpop.f32.mrb[0].mxu0
  %v2322 = vadd.f32 %v1957, %v2321
  %v2323 = vpop.f32.mrb[0].mxu0
  %v2324 = vadd.f32 %v1957, %v2323
  %2325 = vmatprep.mubr.f32.mxu0 %v1977
  %2326 = vmatmul.mubr.f32.gmra.mrb[0].mxu0 %v1941
  %v2327 = vpop.f32.mrb[0].mxu0
  %v2328 = vadd.f32 %v1962, %v2327
  %v2329 = vpop.f32.mrb[0].mxu0
  %v2330 = vadd.f32 %v1962, %v2329
  %2331 = vmatprep.mubr.f32.mxu0 %v1980
  %2332 = vmatmul.mubr.f32.gmra.mrb[0].mxu0 %v1943
  %v2333 = vpop.f32.mrb[0].mxu0
  %v2334 = vadd.f32 %v1967, %v2333
  %v2335 = vpop.f32.mrb[0].mxu0
  %v2336 = vadd.f32 %v1967, %v2335
  %2337 = vdwg.mxu0
  %v2338 = vmax.f32 %v2049, 0.0
  %v2339 = vmax.f32 %v2051, 0.0
  %v2340 = vmax.f32 %v2138, 0.0
  %v2341 = vmax.f32 %v2140, 0.0
  %v2342 = vmax.f32 %v2227, 0.0
  %v2343 = vmax.f32 %v2229, 0.0
  %v2344 = vmax.f32 %v2316, 0.0
  %v2345 = vmax.f32 %v2318, 0.0
  %v2346 = vmax.f32 %v2055, 0.0
  %v2347 = vmax.f32 %v2057, 0.0
  %v2348 = vmax.f32 %v2144, 0.0
  %v2349 = vmax.f32 %v2146, 0.0
  %v2350 = vmax.f32 %v2233, 0.0
  %v2351 = vmax.f32 %v2235, 0.0
  %v2352 = vmax.f32 %v2322, 0.0
  %v2353 = vmax.f32 %v2324, 0.0
  %v2354 = vmax.f32 %v2061, 0.0
  %v2355 = vmax.f32 %v2063, 0.0
  %v2356 = vmax.f32 %v2150, 0.0
  %v2357 = vmax.f32 %v2152, 0.0
  %v2358 = vmax.f32 %v2239, 0.0
  %v2359 = vmax.f32 %v2241, 0.0
  %v2360 = vmax.f32 %v2328, 0.0
  %v2361 = vmax.f32 %v2330, 0.0
  %v2362 = vmax.f32 %v2067, 0.0
  %v2363 = vmax.f32 %v2069, 0.0
  %v2364 = vmax.f32 %v2156, 0.0
  %v2365 = vmax.f32 %v2158, 0.0
  %v2366 = vmax.f32 %v2245, 0.0
  %v2367 = vmax.f32 %v2247, 0.0
  %v2368 = vmax.f32 %v2334, 0.0
  %v2369 = vmax.f32 %v2336, 0.0
  %v2370 = vld [vmem:[%s8] sm:$0xff]
  %v2371 = vld [vmem:[%s8 + $0x8] sm:$0xff]
  %v2372 = vld [vmem:[%s8 + $0x10] sm:$0xff]
  %v2373 = vld [vmem:[%s8 + $0x18] sm:$0xff]
  %v2374 = vld [vmem:[%s8 + $0x20] sm:$0xff]
  %v2375 = vld [vmem:[%s8 + $0x28] sm:$0xff]
  %v2376 = vld [vmem:[%s8 + $0x30] sm:$0xff]
  %v2377 = vld [vmem:[%s8 + $0x38] sm:$0xff]
  %v2378 = vld [vmem:[%s8 + $0x40] sm:$0xff]
  %v2379 = vld [vmem:[%s8 + $0x48] sm:$0xff]
  %v2380 = vld [vmem:[%s8 + $0x50] sm:$0xff]
  %v2381 = vld [vmem:[%s8 + $0x58] sm:$0xff]
  %v2382 = vld [vmem:[%s8 + $0x60] sm:$0xff]
  %v2383 = vld [vmem:[%s8 + $0x68] sm:$0xff]
  %v2384 = vld [vmem:[%s8 + $0x70] sm:$0xff]
  %v2385 = vld [vmem:[%s8 + $0x78] sm:$0xff]
  %v2386 = vld [vmem:[%s8 + $0x80] sm:$0xff]
  %v2387 = vld [vmem:[%s8 + $0x88] sm:$0xff]
  %v2388 = vld [vmem:[%s8 + $0x90] sm:$0xff]
  %v2389 = vld [vmem:[%s8 + $0x98] sm:$0xff]
  %v2390 = vld [vmem:[%s8 + $0xa0] sm:$0xff]
  %v2391 = vld [vmem:[%s8 + $0xa8] sm:$0xff]
  %v2392 = vld [vmem:[%s8 + $0xb0] sm:$0xff]
  %v2393 = vld [vmem:[%s8 + $0xb8] sm:$0xff]
  %v2394 = vld [vmem:[%s8 + $0xc0] sm:$0xff]
  %v2395 = vld [vmem:[%s8 + $0xc8] sm:$0xff]
  %v2396 = vld [vmem:[%s8 + $0xd0] sm:$0xff]
  %v2397 = vld [vmem:[%s8 + $0xd8] sm:$0xff]
  %v2398 = vld [vmem:[%s8 + $0xe0] sm:$0xff]
  %v2399 = vld [vmem:[%s8 + $0xe8] sm:$0xff]
  %v2400 = vld [vmem:[%s8 + $0xf0] sm:$0xff]
  %v2401 = vld [vmem:[%s8 + $0xf8] sm:$0xff]
  %v2402 = vld [vmem:[%s8 + $0x100] sm:$0xff]
  %v2403 = vld [vmem:[%s8 + $0x108] sm:$0xff]
  %v2404 = vld [vmem:[%s8 + $0x110] sm:$0xff]
  %v2405 = vld [vmem:[%s8 + $0x118] sm:$0xff]
  %v2406 = vld [vmem:[%s8 + $0x120] sm:$0xff]
  %v2407 = vld [vmem:[%s8 + $0x128] sm:$0xff]
  %v2408 = vld [vmem:[%s8 + $0x130] sm:$0xff]
  %v2409 = vld [vmem:[%s8 + $0x138] sm:$0xff]
  %v2410 = vld [vmem:[%s8 + $0x140] sm:$0xff]
  %v2411 = vld [vmem:[%s8 + $0x148] sm:$0xff]
  %v2412 = vld [vmem:[%s8 + $0x150] sm:$0xff]
  %v2413 = vld [vmem:[%s8 + $0x158] sm:$0xff]
  %v2414 = vld [vmem:[%s8 + $0x160] sm:$0xff]
  %v2415 = vld [vmem:[%s8 + $0x168] sm:$0xff]
  %v2416 = vld [vmem:[%s8 + $0x170] sm:$0xff]
  %v2417 = vld [vmem:[%s8 + $0x178] sm:$0xff]
  %v2418 = vld [vmem:[%s8 + $0x180] sm:$0xff]
  %v2419 = vld [vmem:[%s8 + $0x188] sm:$0xff]
  %v2420 = vld [vmem:[%s8 + $0x190] sm:$0xff]
  %v2421 = vld [vmem:[%s8 + $0x198] sm:$0xff]
  %v2422 = vld [vmem:[%s8 + $0x1a0] sm:$0xff]
  %v2423 = vld [vmem:[%s8 + $0x1a8] sm:$0xff]
  %v2424 = vld [vmem:[%s8 + $0x1b0] sm:$0xff]
  %v2425 = vld [vmem:[%s8 + $0x1b8] sm:$0xff]
  %v2426 = vld [vmem:[%s8 + $0x1c0] sm:$0xff]
  %v2427 = vld [vmem:[%s8 + $0x1c8] sm:$0xff]
  %v2428 = vld [vmem:[%s8 + $0x1d0] sm:$0xff]
  %v2429 = vld [vmem:[%s8 + $0x1d8] sm:$0xff]
  %v2430 = vld [vmem:[%s8 + $0x1e0] sm:$0xff]
  %v2431 = vld [vmem:[%s8 + $0x1e8] sm:$0xff]
  %v2432 = vld [vmem:[%s8 + $0x1f0] sm:$0xff]
  %v2433 = vld [vmem:[%s8 + $0x1f8] sm:$0xff]
  %v2434 = vld [vmem:[%s8 + $0x200] sm:$0xff]
  %v2435 = vld [vmem:[%s8 + $0x208] sm:$0xff]
  %v2436 = vld [vmem:[%s8 + $0x210] sm:$0xff]
  %v2437 = vld [vmem:[%s8 + $0x218] sm:$0xff]
  %v2438 = vld [vmem:[%s8 + $0x220] sm:$0xff]
  %v2439 = vld [vmem:[%s8 + $0x228] sm:$0xff]
  %v2440 = vld [vmem:[%s8 + $0x230] sm:$0xff]
  %v2441 = vld [vmem:[%s8 + $0x238] sm:$0xff]
  %v2442 = vld [vmem:[%s8 + $0x240] sm:$0xff]
  %v2443 = vld [vmem:[%s8 + $0x248] sm:$0xff]
  %v2444 = vld [vmem:[%s8 + $0x250] sm:$0xff]
  %v2445 = vld [vmem:[%s8 + $0x258] sm:$0xff]
  %v2446 = vld [vmem:[%s8 + $0x260] sm:$0xff]
  %v2447 = vld [vmem:[%s8 + $0x268] sm:$0xff]
  %v2448 = vld [vmem:[%s8 + $0x270] sm:$0xff]
  %v2449 = vld [vmem:[%s8 + $0x278] sm:$0xff]
  %v2450 = vld [vmem:[%s8 + $0x280] sm:$0xff]
  %v2451 = vld [vmem:[%s8 + $0x288] sm:$0xff]
  %v2452 = vld [vmem:[%s8 + $0x290] sm:$0xff]
  %v2453 = vld [vmem:[%s8 + $0x298] sm:$0xff]
  %v2454 = vld [vmem:[%s8 + $0x2a0] sm:$0xff]
  %v2455 = vld [vmem:[%s8 + $0x2a8] sm:$0xff]
  %v2456 = vld [vmem:[%s8 + $0x2b0] sm:$0xff]
  %v2457 = vld [vmem:[%s8 + $0x2b8] sm:$0xff]
  %v2458 = vld [vmem:[%s8 + $0x2c0] sm:$0xff]
  %v2459 = vld [vmem:[%s8 + $0x2c8] sm:$0xff]
  %v2460 = vld [vmem:[%s8 + $0x2d0] sm:$0xff]
  %v2461 = vld [vmem:[%s8 + $0x2d8] sm:$0xff]
  %v2462 = vld [vmem:[%s8 + $0x2e0] sm:$0xff]
  %v2463 = vld [vmem:[%s8 + $0x2e8] sm:$0xff]
  %v2464 = vld [vmem:[%s8 + $0x2f0] sm:$0xff]
  %v2465 = vld [vmem:[%s8 + $0x2f8] sm:$0xff]
  %v2466 = vld [vmem:[%s8 + $0x300] sm:$0xff]
  %v2467 = vld [vmem:[%s8 + $0x308] sm:$0xff]
  %v2468 = vld [vmem:[%s8 + $0x310] sm:$0xff]
  %v2469 = vld [vmem:[%s8 + $0x318] sm:$0xff]
  %v2470 = vld [vmem:[%s8 + $0x320] sm:$0xff]
  %v2471 = vld [vmem:[%s8 + $0x328] sm:$0xff]
  %v2472 = vld [vmem:[%s8 + $0x330] sm:$0xff]
  %v2473 = vld [vmem:[%s8 + $0x338] sm:$0xff]
  %v2474 = vld [vmem:[%s8 + $0x340] sm:$0xff]
  %v2475 = vld [vmem:[%s8 + $0x348] sm:$0xff]
  %v2476 = vld [vmem:[%s8 + $0x350] sm:$0xff]
  %v2477 = vld [vmem:[%s8 + $0x358] sm:$0xff]
  %v2478 = vld [vmem:[%s8 + $0x360] sm:$0xff]
  %v2479 = vld [vmem:[%s8 + $0x368] sm:$0xff]
  %v2480 = vld [vmem:[%s8 + $0x370] sm:$0xff]
  %v2481 = vld [vmem:[%s8 + $0x378] sm:$0xff]
  %v2482 = vld [vmem:[%s8 + $0x380] sm:$0xff]
  %v2483 = vld [vmem:[%s8 + $0x388] sm:$0xff]
  %v2484 = vld [vmem:[%s8 + $0x390] sm:$0xff]
  %v2485 = vld [vmem:[%s8 + $0x398] sm:$0xff]
  %v2486 = vld [vmem:[%s8 + $0x3a0] sm:$0xff]
  %v2487 = vld [vmem:[%s8 + $0x3a8] sm:$0xff]
  %v2488 = vld [vmem:[%s8 + $0x3b0] sm:$0xff]
  %v2489 = vld [vmem:[%s8 + $0x3b8] sm:$0xff]
  %v2490 = vld [vmem:[%s8 + $0x3c0] sm:$0xff]
  %v2491 = vld [vmem:[%s8 + $0x3c8] sm:$0xff]
  %v2492 = vld [vmem:[%s8 + $0x3d0] sm:$0xff]
  %v2493 = vld [vmem:[%s8 + $0x3d8] sm:$0xff]
  %v2494 = vld [vmem:[%s8 + $0x3e0] sm:$0xff]
  %v2495 = vld [vmem:[%s8 + $0x3e8] sm:$0xff]
  %v2496 = vld [vmem:[%s8 + $0x3f0] sm:$0xff]
  %v2497 = vld [vmem:[%s8 + $0x3f8] sm:$0xff]
  %2498 = vmatprep.subr.mxu0 0.0
  %2499 = vmatpush1.msra.mxu0 %v2370
  %2500 = vmatprep.subr.mxu0 0.0
  %2501 = vmatpush1.msra.mxu0 %v2371
  %2502 = vmatprep.subr.mxu0 0.0
  %2503 = vmatpush1.msra.mxu0 %v2372
  %2504 = vmatprep.subr.mxu0 0.0
  %2505 = vmatpush1.msra.mxu0 %v2373
  %2506 = vmatprep.subr.mxu0 0.0
  %2507 = vmatpush1.msra.mxu0 %v2374
  %2508 = vmatprep.subr.mxu0 0.0
  %2509 = vmatpush1.msra.mxu0 %v2375
  %2510 = vmatprep.subr.mxu0 0.0
  %2511 = vmatpush1.msra.mxu0 %v2376
  %2512 = vmatprep.subr.mxu0 0.0
  %2513 = vmatpush1.msra.mxu0 %v2377
  %2514 = vmatprep.subr.mxu0 0.0
  %2515 = vmatpush1.msra.mxu0 %v2378
  %2516 = vmatprep.subr.mxu0 0.0
  %2517 = vmatpush1.msra.mxu0 %v2379
  %2518 = vmatprep.subr.mxu0 0.0
  %2519 = vmatpush1.msra.mxu0 %v2380
  %2520 = vmatprep.subr.mxu0 0.0
  %2521 = vmatpush1.msra.mxu0 %v2381
  %2522 = vmatprep.subr.mxu0 0.0
  %2523 = vmatpush1.msra.mxu0 %v2382
  %2524 = vmatprep.subr.mxu0 0.0
  %2525 = vmatpush1.msra.mxu0 %v2383
  %2526 = vmatprep.subr.mxu0 0.0
  %2527 = vmatpush1.msra.mxu0 %v2384
  %2528 = vmatprep.subr.mxu0 0.0
  %2529 = vmatpush1.msra.mxu0 %v2385
  %2530 = vmatprep.subr.mxu0 0.0
  %2531 = vmatpush1.msra.mxu0 %v2386
  %2532 = vmatprep.subr.mxu0 0.0
  %2533 = vmatpush1.msra.mxu0 %v2387
  %2534 = vmatprep.subr.mxu0 0.0
  %2535 = vmatpush1.msra.mxu0 %v2388
  %2536 = vmatprep.subr.mxu0 0.0
  %2537 = vmatpush1.msra.mxu0 %v2389
  %2538 = vmatprep.subr.mxu0 0.0
  %2539 = vmatpush1.msra.mxu0 %v2390
  %2540 = vmatprep.subr.mxu0 0.0
  %2541 = vmatpush1.msra.mxu0 %v2391
  %2542 = vmatprep.subr.mxu0 0.0
  %2543 = vmatpush1.msra.mxu0 %v2392
  %2544 = vmatprep.subr.mxu0 0.0
  %2545 = vmatpush1.msra.mxu0 %v2393
  %2546 = vmatprep.subr.mxu0 0.0
  %2547 = vmatpush1.msra.mxu0 %v2394
  %2548 = vmatprep.subr.mxu0 0.0
  %2549 = vmatpush1.msra.mxu0 %v2395
  %2550 = vmatprep.subr.mxu0 0.0
  %2551 = vmatpush1.msra.mxu0 %v2396
  %2552 = vmatprep.subr.mxu0 0.0
  %2553 = vmatpush1.msra.mxu0 %v2397
  %2554 = vmatprep.subr.mxu0 0.0
  %2555 = vmatpush1.msra.mxu0 %v2398
  %2556 = vmatprep.subr.mxu0 0.0
  %2557 = vmatpush1.msra.mxu0 %v2399
  %2558 = vmatprep.subr.mxu0 0.0
  %2559 = vmatpush1.msra.mxu0 %v2400
  %2560 = vmatprep.subr.mxu0 0.0
  %2561 = vmatpush1.msra.mxu0 %v2401
  %2562 = vmatprep.mubr.f32.mxu0 %v2339
  %2563 = vmatmul.mubr.f32.gmra.mrb[0].mxu0 %v2338
  %v2564 = vpop.f32.mrb[0].mxu0
  %v2565 = vadd.f32 0.0, %v2564
  %v2566 = vpop.f32.mrb[0].mxu0
  %2567 = vmatprep.mubr.f32.mxu0 %v2347
  %2568 = vmatmul.mubr.f32.gmra.mrb[0].mxu0 %v2346
  %v2569 = vpop.f32.mrb[0].mxu0
  %v2570 = vadd.f32 0.0, %v2569
  %v2571 = vpop.f32.mrb[0].mxu0
  %2572 = vmatprep.mubr.f32.mxu0 %v2355
  %2573 = vmatmul.mubr.f32.gmra.mrb[0].mxu0 %v2354
  %v2574 = vpop.f32.mrb[0].mxu0
  %v2575 = vadd.f32 0.0, %v2574
  %v2576 = vpop.f32.mrb[0].mxu0
  %2577 = vmatprep.mubr.f32.mxu0 %v2363
  %2578 = vmatmul.mubr.f32.gmra.mrb[0].mxu0 %v2362
  %v2579 = vpop.f32.mrb[0].mxu0
  %v2580 = vadd.f32 0.0, %v2579
  %v2581 = vpop.f32.mrb[0].mxu0
  %2582 = vdwg.mxu0
  %2583 = vmatprep.subr.mxu0 0.0
  %2584 = vmatpush1.msra.mxu0 %v2402
  %2585 = vmatprep.subr.mxu0 0.0
  %2586 = vmatpush1.msra.mxu0 %v2403
  %2587 = vmatprep.subr.mxu0 0.0
  %2588 = vmatpush1.msra.mxu0 %v2404
  %2589 = vmatprep.subr.mxu0 0.0
  %2590 = vmatpush1.msra.mxu0 %v2405
  %2591 = vmatprep.subr.mxu0 0.0
  %2592 = vmatpush1.msra.mxu0 %v2406
  %2593 = vmatprep.subr.mxu0 0.0
  %2594 = vmatpush1.msra.mxu0 %v2407
  %2595 = vmatprep.subr.mxu0 0.0
  %2596 = vmatpush1.msra.mxu0 %v2408
  %2597 = vmatprep.subr.mxu0 0.0
  %2598 = vmatpush1.msra.mxu0 %v2409
  %2599 = vmatprep.subr.mxu0 0.0
  %2600 = vmatpush1.msra.mxu0 %v2410
  %2601 = vmatprep.subr.mxu0 0.0
  %2602 = vmatpush1.msra.mxu0 %v2411
  %2603 = vmatprep.subr.mxu0 0.0
  %2604 = vmatpush1.msra.mxu0 %v2412
  %2605 = vmatprep.subr.mxu0 0.0
  %2606 = vmatpush1.msra.mxu0 %v2413
  %2607 = vmatprep.subr.mxu0 0.0
  %2608 = vmatpush1.msra.mxu0 %v2414
  %2609 = vmatprep.subr.mxu0 0.0
  %2610 = vmatpush1.msra.mxu0 %v2415
  %2611 = vmatprep.subr.mxu0 0.0
  %2612 = vmatpush1.msra.mxu0 %v2416
  %2613 = vmatprep.subr.mxu0 0.0
  %2614 = vmatpush1.msra.mxu0 %v2417
  %2615 = vmatprep.subr.mxu0 0.0
  %2616 = vmatpush1.msra.mxu0 %v2418
  %2617 = vmatprep.subr.mxu0 0.0
  %2618 = vmatpush1.msra.mxu0 %v2419
  %2619 = vmatprep.subr.mxu0 0.0
  %2620 = vmatpush1.msra.mxu0 %v2420
  %2621 = vmatprep.subr.mxu0 0.0
  %2622 = vmatpush1.msra.mxu0 %v2421
  %2623 = vmatprep.subr.mxu0 0.0
  %2624 = vmatpush1.msra.mxu0 %v2422
  %2625 = vmatprep.subr.mxu0 0.0
  %2626 = vmatpush1.msra.mxu0 %v2423
  %2627 = vmatprep.subr.mxu0 0.0
  %2628 = vmatpush1.msra.mxu0 %v2424
  %2629 = vmatprep.subr.mxu0 0.0
  %2630 = vmatpush1.msra.mxu0 %v2425
  %2631 = vmatprep.subr.mxu0 0.0
  %2632 = vmatpush1.msra.mxu0 %v2426
  %2633 = vmatprep.subr.mxu0 0.0
  %2634 = vmatpush1.msra.mxu0 %v2427
  %2635 = vmatprep.subr.mxu0 0.0
  %2636 = vmatpush1.msra.mxu0 %v2428
  %2637 = vmatprep.subr.mxu0 0.0
  %2638 = vmatpush1.msra.mxu0 %v2429
  %2639 = vmatprep.subr.mxu0 0.0
  %2640 = vmatpush1.msra.mxu0 %v2430
  %2641 = vmatprep.subr.mxu0 0.0
  %2642 = vmatpush1.msra.mxu0 %v2431
  %2643 = vmatprep.subr.mxu0 0.0
  %2644 = vmatpush1.msra.mxu0 %v2432
  %2645 = vmatprep.subr.mxu0 0.0
  %2646 = vmatpush1.msra.mxu0 %v2433
  %2647 = vmatprep.mubr.f32.mxu0 %v2341
  %2648 = vmatmul.mubr.f32.gmra.mrb[0].mxu0 %v2340
  %v2649 = vpop.f32.mrb[0].mxu0
  %v2650 = vadd.f32 %v2565, %v2649
  %v2651 = vpop.f32.mrb[0].mxu0
  %2652 = vmatprep.mubr.f32.mxu0 %v2349
  %2653 = vmatmul.mubr.f32.gmra.mrb[0].mxu0 %v2348
  %v2654 = vpop.f32.mrb[0].mxu0
  %v2655 = vadd.f32 %v2570, %v2654
  %v2656 = vpop.f32.mrb[0].mxu0
  %2657 = vmatprep.mubr.f32.mxu0 %v2357
  %2658 = vmatmul.mubr.f32.gmra.mrb[0].mxu0 %v2356
  %v2659 = vpop.f32.mrb[0].mxu0
  %v2660 = vadd.f32 %v2575, %v2659
  %v2661 = vpop.f32.mrb[0].mxu0
  %2662 = vmatprep.mubr.f32.mxu0 %v2365
  %2663 = vmatmul.mubr.f32.gmra.mrb[0].mxu0 %v2364
  %v2664 = vpop.f32.mrb[0].mxu0
  %v2665 = vadd.f32 %v2580, %v2664
  %v2666 = vpop.f32.mrb[0].mxu0
  %2667 = vdwg.mxu0
  %2668 = vmatprep.subr.mxu0 0.0
  %2669 = vmatpush1.msra.mxu0 %v2434
  %2670 = vmatprep.subr.mxu0 0.0
  %2671 = vmatpush1.msra.mxu0 %v2435
  %2672 = vmatprep.subr.mxu0 0.0
  %2673 = vmatpush1.msra.mxu0 %v2436
  %2674 = vmatprep.subr.mxu0 0.0
  %2675 = vmatpush1.msra.mxu0 %v2437
  %2676 = vmatprep.subr.mxu0 0.0
  %2677 = vmatpush1.msra.mxu0 %v2438
  %2678 = vmatprep.subr.mxu0 0.0
  %2679 = vmatpush1.msra.mxu0 %v2439
  %2680 = vmatprep.subr.mxu0 0.0
  %2681 = vmatpush1.msra.mxu0 %v2440
  %2682 = vmatprep.subr.mxu0 0.0
  %2683 = vmatpush1.msra.mxu0 %v2441
  %2684 = vmatprep.subr.mxu0 0.0
  %2685 = vmatpush1.msra.mxu0 %v2442
  %2686 = vmatprep.subr.mxu0 0.0
  %2687 = vmatpush1.msra.mxu0 %v2443
  %2688 = vmatprep.subr.mxu0 0.0
  %2689 = vmatpush1.msra.mxu0 %v2444
  %2690 = vmatprep.subr.mxu0 0.0
  %2691 = vmatpush1.msra.mxu0 %v2445
  %2692 = vmatprep.subr.mxu0 0.0
  %2693 = vmatpush1.msra.mxu0 %v2446
  %2694 = vmatprep.subr.mxu0 0.0
  %2695 = vmatpush1.msra.mxu0 %v2447
  %2696 = vmatprep.subr.mxu0 0.0
  %2697 = vmatpush1.msra.mxu0 %v2448
  %2698 = vmatprep.subr.mxu0 0.0
  %2699 = vmatpush1.msra.mxu0 %v2449
  %2700 = vmatprep.subr.mxu0 0.0
  %2701 = vmatpush1.msra.mxu0 %v2450
  %2702 = vmatprep.subr.mxu0 0.0
  %2703 = vmatpush1.msra.mxu0 %v2451
  %2704 = vmatprep.subr.mxu0 0.0
  %2705 = vmatpush1.msra.mxu0 %v2452
  %2706 = vmatprep.subr.mxu0 0.0
  %2707 = vmatpush1.msra.mxu0 %v2453
  %2708 = vmatprep.subr.mxu0 0.0
  %2709 = vmatpush1.msra.mxu0 %v2454
  %2710 = vmatprep.subr.mxu0 0.0
  %2711 = vmatpush1.msra.mxu0 %v2455
  %2712 = vmatprep.subr.mxu0 0.0
  %2713 = vmatpush1.msra.mxu0 %v2456
  %2714 = vmatprep.subr.mxu0 0.0
  %2715 = vmatpush1.msra.mxu0 %v2457
  %2716 = vmatprep.subr.mxu0 0.0
  %2717 = vmatpush1.msra.mxu0 %v2458
  %2718 = vmatprep.subr.mxu0 0.0
  %2719 = vmatpush1.msra.mxu0 %v2459
  %2720 = vmatprep.subr.mxu0 0.0
  %2721 = vmatpush1.msra.mxu0 %v2460
  %2722 = vmatprep.subr.mxu0 0.0
  %2723 = vmatpush1.msra.mxu0 %v2461
  %2724 = vmatprep.subr.mxu0 0.0
  %2725 = vmatpush1.msra.mxu0 %v2462
  %2726 = vmatprep.subr.mxu0 0.0
  %2727 = vmatpush1.msra.mxu0 %v2463
  %2728 = vmatprep.subr.mxu0 0.0
  %2729 = vmatpush1.msra.mxu0 %v2464
  %2730 = vmatprep.subr.mxu0 0.0
  %2731 = vmatpush1.msra.mxu0 %v2465
  %2732 = vmatprep.mubr.f32.mxu0 %v2343
  %2733 = vmatmul.mubr.f32.gmra.mrb[0].mxu0 %v2342
  %v2734 = vpop.f32.mrb[0].mxu0
  %v2735 = vadd.f32 %v2650, %v2734
  %v2736 = vpop.f32.mrb[0].mxu0
  %2737 = vmatprep.mubr.f32.mxu0 %v2351
  %2738 = vmatmul.mubr.f32.gmra.mrb[0].mxu0 %v2350
  %v2739 = vpop.f32.mrb[0].mxu0
  %v2740 = vadd.f32 %v2655, %v2739
  %v2741 = vpop.f32.mrb[0].mxu0
  %2742 = vmatprep.mubr.f32.mxu0 %v2359
  %2743 = vmatmul.mubr.f32.gmra.mrb[0].mxu0 %v2358
  %v2744 = vpop.f32.mrb[0].mxu0
  %v2745 = vadd.f32 %v2660, %v2744
  %v2746 = vpop.f32.mrb[0].mxu0
  %2747 = vmatprep.mubr.f32.mxu0 %v2367
  %2748 = vmatmul.mubr.f32.gmra.mrb[0].mxu0 %v2366
  %v2749 = vpop.f32.mrb[0].mxu0
  %v2750 = vadd.f32 %v2665, %v2749
  %v2751 = vpop.f32.mrb[0].mxu0
  %2752 = vdwg.mxu0
  %2753 = vmatprep.subr.mxu0 0.0
  %2754 = vmatpush1.msra.mxu0 %v2466
  %2755 = vmatprep.subr.mxu0 0.0
  %2756 = vmatpush1.msra.mxu0 %v2467
  %2757 = vmatprep.subr.mxu0 0.0
  %2758 = vmatpush1.msra.mxu0 %v2468
  %2759 = vmatprep.subr.mxu0 0.0
  %2760 = vmatpush1.msra.mxu0 %v2469
  %2761 = vmatprep.subr.mxu0 0.0
  %2762 = vmatpush1.msra.mxu0 %v2470
  %2763 = vmatprep.subr.mxu0 0.0
  %2764 = vmatpush1.msra.mxu0 %v2471
  %2765 = vmatprep.subr.mxu0 0.0
  %2766 = vmatpush1.msra.mxu0 %v2472
  %2767 = vmatprep.subr.mxu0 0.0
  %2768 = vmatpush1.msra.mxu0 %v2473
  %2769 = vmatprep.subr.mxu0 0.0
  %2770 = vmatpush1.msra.mxu0 %v2474
  %2771 = vmatprep.subr.mxu0 0.0
  %2772 = vmatpush1.msra.mxu0 %v2475
  %2773 = vmatprep.subr.mxu0 0.0
  %2774 = vmatpush1.msra.mxu0 %v2476
  %2775 = vmatprep.subr.mxu0 0.0
  %2776 = vmatpush1.msra.mxu0 %v2477
  %2777 = vmatprep.subr.mxu0 0.0
  %2778 = vmatpush1.msra.mxu0 %v2478
  %2779 = vmatprep.subr.mxu0 0.0
  %2780 = vmatpush1.msra.mxu0 %v2479
  %2781 = vmatprep.subr.mxu0 0.0
  %2782 = vmatpush1.msra.mxu0 %v2480
  %2783 = vmatprep.subr.mxu0 0.0
  %2784 = vmatpush1.msra.mxu0 %v2481
  %2785 = vmatprep.subr.mxu0 0.0
  %2786 = vmatpush1.msra.mxu0 %v2482
  %2787 = vmatprep.subr.mxu0 0.0
  %2788 = vmatpush1.msra.mxu0 %v2483
  %2789 = vmatprep.subr.mxu0 0.0
  %2790 = vmatpush1.msra.mxu0 %v2484
  %2791 = vmatprep.subr.mxu0 0.0
  %2792 = vmatpush1.msra.mxu0 %v2485
  %2793 = vmatprep.subr.mxu0 0.0
  %2794 = vmatpush1.msra.mxu0 %v2486
  %2795 = vmatprep.subr.mxu0 0.0
  %2796 = vmatpush1.msra.mxu0 %v2487
  %2797 = vmatprep.subr.mxu0 0.0
  %2798 = vmatpush1.msra.mxu0 %v2488
  %2799 = vmatprep.subr.mxu0 0.0
  %2800 = vmatpush1.msra.mxu0 %v2489
  %2801 = vmatprep.subr.mxu0 0.0
  %2802 = vmatpush1.msra.mxu0 %v2490
  %2803 = vmatprep.subr.mxu0 0.0
  %2804 = vmatpush1.msra.mxu0 %v2491
  %2805 = vmatprep.subr.mxu0 0.0
  %2806 = vmatpush1.msra.mxu0 %v2492
  %2807 = vmatprep.subr.mxu0 0.0
  %2808 = vmatpush1.msra.mxu0 %v2493
  %2809 = vmatprep.subr.mxu0 0.0
  %2810 = vmatpush1.msra.mxu0 %v2494
  %2811 = vmatprep.subr.mxu0 0.0
  %2812 = vmatpush1.msra.mxu0 %v2495
  %2813 = vmatprep.subr.mxu0 0.0
  %2814 = vmatpush1.msra.mxu0 %v2496
  %2815 = vmatprep.subr.mxu0 0.0
  %2816 = vmatpush1.msra.mxu0 %v2497
  %2817 = vmatprep.mubr.f32.mxu0 %v2345
  %2818 = vmatmul.mubr.f32.gmra.mrb[0].mxu0 %v2344
  %v2819 = vpop.f32.mrb[0].mxu0
  %v2820 = vadd.f32 %v2735, %v2819
  %v2821 = vpop.f32.mrb[0].mxu0
  %2822 = vmatprep.mubr.f32.mxu0 %v2353
  %2823 = vmatmul.mubr.f32.gmra.mrb[0].mxu0 %v2352
  %v2824 = vpop.f32.mrb[0].mxu0
  %v2825 = vadd.f32 %v2740, %v2824
  %v2826 = vpop.f32.mrb[0].mxu0
  %2827 = vmatprep.mubr.f32.mxu0 %v2361
  %2828 = vmatmul.mubr.f32.gmra.mrb[0].mxu0 %v2360
  %v2829 = vpop.f32.mrb[0].mxu0
  %v2830 = vadd.f32 %v2745, %v2829
  %v2831 = vpop.f32.mrb[0].mxu0
  %2832 = vmatprep.mubr.f32.mxu0 %v2369
  %2833 = vmatmul.mubr.f32.gmra.mrb[0].mxu0 %v2368
  %v2834 = vpop.f32.mrb[0].mxu0
  %v2835 = vadd.f32 %v2750, %v2834
  %v2836 = vpop.f32.mrb[0].mxu0
  %2837 = vdwg.mxu0
  %v2838 = vld [vmem:[%s9] sm:$0x3]
  %v2839 = vld [vmem:[%s10] sm:$0x3]
  %vm2840 = vcmask 261120
  %v2842 = vsel %vm2840, %v2838, 0
  %2844 = vmatprep.subr.mxu0 0.0
  %2845 = vmatpush1.msra.mxu0 %v2820
  %2846 = vmatprep.subr.mxu0 0.0
  %2847 = vmatpush1.msra.mxu0 %v2825
  %2848 = vmatprep.subr.mxu0 0.0
  %2849 = vmatpush1.msra.mxu0 %v2830
  %2850 = vmatprep.subr.mxu0 0.0
  %2851 = vmatpush1.msra.mxu0 %v2835
  %2852 = vmatprep.subr.mxu0 0.0
  %2853 = vmatpush1.msra.mxu0 0.0
  %2854 = vmatprep.subr.mxu0 0.0
  %2855 = vmatpush1.msra.mxu0 0.0
  %2856 = vmatprep.subr.mxu0 0.0
  %2857 = vmatpush1.msra.mxu0 0.0
  %2858 = vmatprep.subr.mxu0 0.0
  %2859 = vmatpush1.msra.mxu0 0.0
  %2860 = vmatprep.subr.mxu0 0.0
  %2861 = vmatpush1.msra.mxu0 0.0
  %2862 = vmatprep.subr.mxu0 0.0
  %2863 = vmatpush1.msra.mxu0 0.0
  %2864 = vmatprep.subr.mxu0 0.0
  %2865 = vmatpush1.msra.mxu0 0.0
  %2866 = vmatprep.subr.mxu0 0.0
  %2867 = vmatpush1.msra.mxu0 0.0
  %2868 = vmatprep.subr.mxu0 0.0
  %2869 = vmatpush1.msra.mxu0 0.0
  %2870 = vmatprep.subr.mxu0 0.0
  %2871 = vmatpush1.msra.mxu0 0.0
  %2872 = vmatprep.subr.mxu0 0.0
  %2873 = vmatpush1.msra.mxu0 0.0
  %2874 = vmatprep.subr.mxu0 0.0
  %2875 = vmatpush1.msra.mxu0 0.0
  %2876 = vmatprep.subr.mxu0 0.0
  %2877 = vmatpush1.msra.mxu0 0.0
  %2878 = vmatprep.subr.mxu0 0.0
  %2879 = vmatpush1.msra.mxu0 0.0
  %2880 = vmatprep.subr.mxu0 0.0
  %2881 = vmatpush1.msra.mxu0 0.0
  %2882 = vmatprep.subr.mxu0 0.0
  %2883 = vmatpush1.msra.mxu0 0.0
  %2884 = vmatprep.subr.mxu0 0.0
  %2885 = vmatpush1.msra.mxu0 0.0
  %2886 = vmatprep.subr.mxu0 0.0
  %2887 = vmatpush1.msra.mxu0 0.0
  %2888 = vmatprep.subr.mxu0 0.0
  %2889 = vmatpush1.msra.mxu0 0.0
  %2890 = vmatprep.subr.mxu0 0.0
  %2891 = vmatpush1.msra.mxu0 0.0
  %2892 = vmatprep.subr.mxu0 0.0
  %2893 = vmatpush1.msra.mxu0 0.0
  %2894 = vmatprep.subr.mxu0 0.0
  %2895 = vmatpush1.msra.mxu0 0.0
  %2896 = vmatprep.subr.mxu0 0.0
  %2897 = vmatpush1.msra.mxu0 0.0
  %2898 = vmatprep.subr.mxu0 0.0
  %2899 = vmatpush1.msra.mxu0 0.0
  %2900 = vmatprep.subr.mxu0 0.0
  %2901 = vmatpush1.msra.mxu0 0.0
  %2902 = vmatprep.subr.mxu0 0.0
  %2903 = vmatpush1.msra.mxu0 0.0
  %2904 = vmatprep.subr.mxu0 0.0
  %2905 = vmatpush1.msra.mxu0 0.0
  %2906 = vmatprep.subr.mxu0 0.0
  %2907 = vmatpush1.msra.mxu0 0.0
  %2908 = vmatprep.mubr.f32.mxu0 0.0
  %2909 = vmatmul.mubr.f32.gmra.mrb[0].mxu0 %v2842
  %v2910 = vpop.f32.mrb[0].mxu0
  %v2911 = vadd.f32 %v2839, %v2910
  %v2912 = vpop.f32.mrb[0].mxu0
  %2913 = vdwg.mxu0
  %vm2914 = vcmask 123904
  %2915 = vst.msk [vmem:[%s11] sm:$0x3] %vm2914, %v2911
  // Predicated region
  $region46: #{forward.1} parent=0 // pred_check
    _
  $region47: #{forward.1} parent=0 // pred_check_branch
    %2917 = sbr.rel (0) target = $region49
  $region48: #{forward.1} parent=0 // pred_region
    _
  $region49: #{forward.1} parent=0 // pred_fallthru
    _
  // Predicated region
  $region50: #{forward.1} parent=0 // pred_check
    _
  $region51: #{forward.1} parent=0 // pred_check_branch
    %2919 = sbr.rel (0) target = $region53
  $region52: #{forward.1} parent=0 // pred_region
    _
  $region53: #{forward.1} parent=0 // pred_fallthru
    _

</llo_original>
